<compile_context>
chip_gen: v6e
topology: v6e:2x2x1
jax: 0.10.0
libtpu: 0.0.40
codegen_flags: <defaults>
</compile_context>

<pallas_src>
import functools
import math

import jax
import jax.numpy as jnp
from jax.experimental import pallas as pl
from jax.experimental.pallas import tpu as pltpu

ROI_SIZE = 4                         # ROI-Align output resolution (P x P)
BBOX_STD_XY = 0.1                    # mmdet default target stds for dx, dy
BBOX_STD_WH = 0.2                    # mmdet default target stds for dw, dh
WH_RATIO_CLIP = math.log(1000.0 / 16.0)   # mmdet wh_ratio_clip


# --------------------------------------------------------------------------
# Kernel 1: tiled bf16 matmul + bias (+ReLU), f32 accumulator
# --------------------------------------------------------------------------
def _matmul_bias_kernel(a_ref, b_ref, bias_ref, o_ref, acc_ref, *, relu):
    @pl.when(pl.program_id(2) == 0)
    def _init():
        acc_ref[...] = jnp.zeros_like(acc_ref)

    acc_ref[...] += jnp.dot(a_ref[...], b_ref[...],
                            preferred_element_type=jnp.float32)

    @pl.when(pl.program_id(2) == pl.num_programs(2) - 1)
    def _finalize():
        out = acc_ref[...] + bias_ref[...]
        if relu:
            out = jnp.maximum(out, 0.0)
        o_ref[...] = out.astype(o_ref.dtype)


def _pick_tile(dim, pref):
    # Use the preferred tile only when it evenly divides; otherwise fall back to
    # the full dimension (block_shape == full array dim is exempt from (8,128)).
    if dim <= pref or dim % pref != 0:
        return dim
    return pref


def pallas_matmul_bias(a, b, bias, relu=False, out_dtype=jnp.float32,
                       tm=128, tn=128, tk=512):
    """(M, K) @ (K, N) + bias[(1, N)] with optional ReLU.

    bf16 MXU operands, f32 VMEM accumulator, grid tiled over (M, N, K); the M
    axis is parallel so both v7x TensorCores get work.  No host-side operand
    padding is performed.
    """
    a = a.astype(jnp.bfloat16)
    b = b.astype(jnp.bfloat16)
    bias = bias.astype(jnp.float32)
    M, K = a.shape
    K2, N = b.shape
    assert K == K2 and bias.shape == (1, N), (a.shape, b.shape, bias.shape)

    tm = _pick_tile(M, tm)
    tn = _pick_tile(N, tn)
    tk = _pick_tile(K, tk)
    grid = (M // tm, N // tn, K // tk)

    kernel = functools.partial(_matmul_bias_kernel, relu=relu)
    return pl.pallas_call(
        kernel,
        out_shape=jax.ShapeDtypeStruct((M, N), out_dtype),
        grid=grid,
        in_specs=[
            pl.BlockSpec((tm, tk), lambda i, j, k: (i, k)),
            pl.BlockSpec((tk, tn), lambda i, j, k: (k, j)),
            pl.BlockSpec((1, tn), lambda i, j, k: (0, j)),
        ],
        out_specs=pl.BlockSpec((tm, tn), lambda i, j, k: (i, j)),
        scratch_shapes=[pltpu.VMEM((tm, tn), jnp.float32)],
        compiler_params=pltpu.CompilerParams(
            dimension_semantics=("parallel", "parallel", "arbitrary"),
            vmem_limit_bytes=32 * 1024 * 1024),
        cost_estimate=pl.CostEstimate(
            flops=2 * M * N * K, transcendentals=0,
            bytes_accessed=2 * (M * K + K * N) + 4 * M * N),
    )(a, b, bias)


# --------------------------------------------------------------------------
# Kernel 2: gather + bilinear ROI-Align (sampling_ratio=1, aligned offsets)
# --------------------------------------------------------------------------
def _roi_align_kernel(idx_ref, wts_ref, feat_ref, out_ref, *, pp):
    b = pl.program_id(0)
    for s in range(pp):                           # static unroll over P*P samples
        base = b * (pp * 4) + s * 4
        row = (wts_ref[base + 0] * feat_ref[pl.ds(idx_ref[base + 0], 1), :]
               + wts_ref[base + 1] * feat_ref[pl.ds(idx_ref[base + 1], 1), :]
               + wts_ref[base + 2] * feat_ref[pl.ds(idx_ref[base + 2], 1), :]
               + wts_ref[base + 3] * feat_ref[pl.ds(idx_ref[base + 3], 1), :])
        out_ref[pl.ds(s, 1), :] = row.astype(out_ref.dtype)


def pallas_roi_align(idx, wts, feat_flat, n_roi, pp):
    """idx/wts: flat (n_roi*pp*4,) corner indices (int32) / bilinear weights (f32).
    feat_flat: (Hf*Wf, C) f32.  Returns (n_roi, pp, C) pooled features."""
    hw, c = feat_flat.shape
    kernel = functools.partial(_roi_align_kernel, pp=pp)
    grid_spec = pltpu.PrefetchScalarGridSpec(
        num_scalar_prefetch=1,                      # corner indices -> SMEM
        grid=(n_roi,),
        in_specs=[
            pl.BlockSpec(memory_space=pltpu.MemorySpace.SMEM),      # bilinear wts
            pl.BlockSpec((hw, c), lambda b, idx_sref: (0, 0)),      # feature map
        ],
        out_specs=pl.BlockSpec((None, pp, c), lambda b, idx_sref: (b, 0, 0)),
    )
    return pl.pallas_call(
        kernel,
        out_shape=jax.ShapeDtypeStruct((n_roi, pp, c), jnp.float32),
        grid_spec=grid_spec,
        compiler_params=pltpu.CompilerParams(
            dimension_semantics=("arbitrary",)),
    )(idx, wts, feat_flat)


def roi_align_indices_weights(boxes, feat_h, feat_w, out_size, spatial_scale):
    """Flat corner indices + bilinear weights (aligned pixel-center offsets,
    sampling_ratio=1).  TODO(synk): mmdet RoIAlign zeroes samples fully outside
    the feature map and supports sampling_ratio>1; here coords are clipped."""
    x1 = boxes[:, 0] * spatial_scale - 0.5
    y1 = boxes[:, 1] * spatial_scale - 0.5
    x2 = boxes[:, 2] * spatial_scale - 0.5
    y2 = boxes[:, 3] * spatial_scale - 0.5
    bin_w = (x2 - x1) / out_size
    bin_h = (y2 - y1) / out_size
    centers = jnp.arange(out_size, dtype=jnp.float32) + 0.5
    ys = y1[:, None] + centers[None, :] * bin_h[:, None]       # (N, P)
    xs = x1[:, None] + centers[None, :] * bin_w[:, None]       # (N, P)

    def split(coord, size):
        c = jnp.clip(coord, 0.0, size - 1.0)
        lo_f = jnp.floor(c)
        frac = c - lo_f
        lo = lo_f.astype(jnp.int32)
        hi = jnp.minimum(lo + 1, size - 1)
        return lo, hi, frac

    y_lo, y_hi, fy = split(ys, feat_h)
    x_lo, x_hi, fx = split(xs, feat_w)
    y_lo, y_hi, fy = y_lo[:, :, None], y_hi[:, :, None], fy[:, :, None]
    x_lo, x_hi, fx = x_lo[:, None, :], x_hi[:, None, :], fx[:, None, :]

    idx = jnp.stack([y_lo * feat_w + x_lo, y_lo * feat_w + x_hi,
                     y_hi * feat_w + x_lo, y_hi * feat_w + x_hi], axis=-1)
    wts = jnp.stack([(1.0 - fy) * (1.0 - fx), (1.0 - fy) * fx,
                     fy * (1.0 - fx), fy * fx], axis=-1)
    return (idx.reshape(-1).astype(jnp.int32),
            wts.reshape(-1).astype(jnp.float32))


# --------------------------------------------------------------------------
# Kernel 3: fused bbox head (FC+ReLU -> cls/reg -> softmax -> delta2bbox -> rescale)
# --------------------------------------------------------------------------
def _bbox_head_kernel(roi_ref, boxes_ref, fcw_ref, fcb_ref, hw_ref, hb_ref,
                      scale_ref, out_ref, *, img_h, img_w):
    hidden = jnp.dot(roi_ref[...], fcw_ref[...],
                     preferred_element_type=jnp.float32)
    hidden = jnp.maximum(hidden + fcb_ref[...], 0.0)
    head = jnp.dot(hidden.astype(jnp.bfloat16), hw_ref[...],
                   preferred_element_type=jnp.float32) + hb_ref[...]
    cls_logits = head[:, 0:2]
    deltas = head[:, 2:6]

    # softmax over (fg, bg); keep foreground probability
    m = jnp.max(cls_logits, axis=-1, keepdims=True)
    e = jnp.exp(cls_logits - m)
    denom = jnp.sum(e, axis=-1, keepdims=True)
    fg_score = e[:, 0:1] * pl.reciprocal(denom, approx=True)

    # delta2bbox (means=0, stds=(0.1,0.1,0.2,0.2), wh_ratio_clip), clip, rescale
    boxes = boxes_ref[...]
    x1 = boxes[:, 0:1]
    y1 = boxes[:, 1:2]
    x2 = boxes[:, 2:3]
    y2 = boxes[:, 3:4]
    pw = x2 - x1
    ph = y2 - y1
    px = x1 + 0.5 * pw
    py = y1 + 0.5 * ph

    dx = deltas[:, 0:1] * BBOX_STD_XY
    dy = deltas[:, 1:2] * BBOX_STD_XY
    dw = jnp.clip(deltas[:, 2:3] * BBOX_STD_WH, -WH_RATIO_CLIP, WH_RATIO_CLIP)
    dh = jnp.clip(deltas[:, 3:4] * BBOX_STD_WH, -WH_RATIO_CLIP, WH_RATIO_CLIP)

    gx = px + pw * dx
    gy = py + ph * dy
    gw = pw * jnp.exp(dw)
    gh = ph * jnp.exp(dh)

    nx1 = jnp.clip(gx - 0.5 * gw, 0.0, img_w)
    ny1 = jnp.clip(gy - 0.5 * gh, 0.0, img_h)
    nx2 = jnp.clip(gx + 0.5 * gw, 0.0, img_w)
    ny2 = jnp.clip(gy + 0.5 * gh, 0.0, img_h)

    # rescale=True: multiply by precomputed 1/scale_factor; single lane-dense store
    result = jnp.concatenate(
        [nx1 * scale_ref[0], ny1 * scale_ref[1],
         nx2 * scale_ref[2], ny2 * scale_ref[3], fg_score], axis=1)
    out_ref[...] = result.astype(out_ref.dtype)


def pallas_bbox_head(roi_flat, boxes, fc_w, fc_b, head_w, head_b, inv_scale,
                     *, img_h, img_w):
    n, kdim = roi_flat.shape
    hdim = fc_w.shape[1]
    hout = head_w.shape[1]
    kernel = functools.partial(_bbox_head_kernel,
                               img_h=float(img_h), img_w=float(img_w))
    return pl.pallas_call(
        kernel,
        out_shape=jax.ShapeDtypeStruct((n, 5), jnp.float32),
        grid=(1,),
        in_specs=[
            pl.BlockSpec((n, kdim), lambda i: (0, 0)),
            pl.BlockSpec((n, 4), lambda i: (0, 0)),
            pl.BlockSpec((kdim, hdim), lambda i: (0, 0)),
            pl.BlockSpec((1, hdim), lambda i: (0, 0)),
            pl.BlockSpec((hdim, hout), lambda i: (0, 0)),
            pl.BlockSpec((1, hout), lambda i: (0, 0)),
            pl.BlockSpec(memory_space=pltpu.MemorySpace.SMEM),
        ],
        out_specs=pl.BlockSpec((n, 5), lambda i: (0, 0)),
    )(roi_flat, boxes, fc_w, fc_b, head_w, head_b, inv_scale)


# --------------------------------------------------------------------------
# Glue: im2col, parameter init / preprocessing (plain JAX)
# --------------------------------------------------------------------------
def im2col_nchw(x, kh, kw, stride, pad):
    """NCHW im2col; patch column ordering is (c_in, kh, kw) like torch Conv2d.
    TODO(synk): for non-toy images form patches in-kernel (halo DMA) or use
    lax.conv_general_dilated; at 16x16 the kh*kw duplication is negligible."""
    n, c, h, w = x.shape
    xp = jnp.pad(x, ((0, 0), (0, 0), (pad, pad), (pad, pad)))
    ho = (h + 2 * pad - kh) // stride + 1
    wo = (w + 2 * pad - kw) // stride + 1
    cols = []
    for i in range(kh):
        for j in range(kw):
            cols.append(xp[:, :, i:i + (ho - 1) * stride + 1:stride,
                               j:j + (wo - 1) * stride + 1:stride])
    patches = jnp.stack(cols, axis=2)                 # (n, c, kh*kw, ho, wo)
    patches = patches.transpose(0, 3, 4, 1, 2)        # (n, ho, wo, c, kh*kw)
    return patches.reshape(n * ho * wo, c * kh * kw), ho, wo


def init_raw_params(key):
    ks = jax.random.split(key, 10)

    def w_init(k, shape, scale=0.05):
        return scale * jax.random.normal(k, shape, jnp.float32)

    return {
        "conv1_w": w_init(ks[0], (16, 3, 3, 3)),
        "conv1_b": w_init(ks[1], (16,)),
        "conv2_w": w_init(ks[2], (32, 16, 3, 3)),
        "conv2_b": w_init(ks[3], (32,)),
        "fc_w":    w_init(ks[4], (ROI_SIZE * ROI_SIZE * 32, 64)),
        "fc_b":    w_init(ks[5], (64,)),
        "cls_w":   w_init(ks[6], (64, 2)),   # (fg, bg) for 1-class detector
        "cls_b":   w_init(ks[7], (2,)),
        "reg_w":   w_init(ks[8], (64, 4)),
        "reg_b":   w_init(ks[9], (4,)),
    }


def preprocess_params(raw):
    """One-time weight prep: flatten convs to (cin*kh*kw, cout), fuse cls+reg
    heads into one (64, 6) matrix, cast matmul weights to bf16, biases to f32."""
    def flat_conv(w):
        cout = w.shape[0]
        return w.reshape(cout, -1).T.astype(jnp.bfloat16)

    return {
        "conv1_w": flat_conv(raw["conv1_w"]),
        "conv1_b": raw["conv1_b"].reshape(1, -1).astype(jnp.float32),
        "conv2_w": flat_conv(raw["conv2_w"]),
        "conv2_b": raw["conv2_b"].reshape(1, -1).astype(jnp.float32),
        "fc_w":    raw["fc_w"].astype(jnp.bfloat16),
        "fc_b":    raw["fc_b"].reshape(1, -1).astype(jnp.float32),
        "head_w":  jnp.concatenate([raw["cls_w"], raw["reg_w"]],
                                   axis=1).astype(jnp.bfloat16),
        "head_b":  jnp.concatenate([raw["cls_b"], raw["reg_b"]]
                                   ).reshape(1, -1).astype(jnp.float32),
    }


# --------------------------------------------------------------------------
# Tracktor.forward equivalent
# --------------------------------------------------------------------------
def tracktor_forward(params, img, detections, img_metas):
    """img: (1, 3, H, W) NCHW f32; detections: (N, 5) [x1,y1,x2,y2,score] in
    network-input coords; img_metas['scale_factor']: (4,)."""
    # ---- detector.extract_feat(data['img']) : tiny conv backbone -----------
    p1, h1, w1 = im2col_nchw(img.astype(jnp.bfloat16), 3, 3, stride=1, pad=1)
    y1 = pallas_matmul_bias(p1, params["conv1_w"], params["conv1_b"],
                            relu=True, out_dtype=jnp.bfloat16)
    c1 = y1.shape[1]
    feat1 = y1.reshape(1, h1, w1, c1).transpose(0, 3, 1, 2)        # NCHW bf16

    p2, h2, w2 = im2col_nchw(feat1, 3, 3, stride=2, pad=1)
    y2 = pallas_matmul_bias(p2, params["conv2_w"], params["conv2_b"],
                            relu=True, out_dtype=jnp.float32)      # (Hf*Wf, C)
    hf, wf, c = h2, w2, y2.shape[1]

    # ---- if detections[0].size()[0] != 0 ------------------------------------
    if detections.shape[0] == 0:
        return None

    # ---- roi_head.simple_test(feat, detections, img_metas, rescale=True) ----
    boxes = detections[:, :4].astype(jnp.float32)
    n_roi = boxes.shape[0]
    spatial_scale = hf / img.shape[2]
    pp = ROI_SIZE * ROI_SIZE

    idx, wts = roi_align_indices_weights(boxes, hf, wf, ROI_SIZE, spatial_scale)
    roi_feats = pallas_roi_align(idx, wts, y2, n_roi, pp)          # (N, P*P, C)
    # NOTE: flattened pixel-major (P*P, C); self-consistent with the synthetic
    # fc weights here (torch/mmdet real weights expect channel-major (C, P, P)).
    roi_flat = roi_feats.reshape(n_roi, pp * c).astype(jnp.bfloat16)

    inv_scale = 1.0 / img_metas["scale_factor"].astype(jnp.float32)
    result = pallas_bbox_head(roi_flat, boxes,
                              params["fc_w"], params["fc_b"],
                              params["head_w"], params["head_b"],
                              inv_scale, img_h=img.shape[2], img_w=img.shape[3])
    # TODO(synk): mmdet test-cfg NMS / score thresholding and adaptive-crop
    # re-projection are not implemented.
    return [result]   # list-of-one-class result, like mmdet


# --------------------------------------------------------------------------
if __name__ == "__main__":
    key = jax.random.PRNGKey(0)
    kp, kd = jax.random.split(key)

    params = preprocess_params(init_raw_params(kp))

    IMG_H = IMG_W = 16
    n_det = 8
    kk = jax.random.split(kd, 5)
    img = jax.random.normal(kk[0], (1, 3, IMG_H, IMG_W), jnp.float32)

    cx = jax.random.uniform(kk[1], (n_det,), minval=4.0, maxval=12.0)
    cy = jax.random.uniform(kk[2], (n_det,), minval=4.0, maxval=12.0)
    bw = jax.random.uniform(kk[3], (n_det,), minval=2.0, maxval=6.0)
    bh = jax.random.uniform(kk[4], (n_det,), minval=2.0, maxval=6.0)
    detections = jnp.stack(
        [cx - bw / 2, cy - bh / 2, cx + bw / 2, cy + bh / 2,
         jnp.ones((n_det,), jnp.float32)], axis=1)                 # (8, 5)

    img_metas = {"scale_factor": jnp.array([0.5, 0.5, 0.5, 0.5], jnp.float32)}

    forward = jax.jit(tracktor_forward)
    result = forward(params, img, detections, img_metas)
    result = jax.block_until_ready(result[0])
    assert result.shape == (n_det, 5)
    assert bool(jnp.all(jnp.isfinite(result)))
    print("KERNEL_OK")
</pallas_src>

<mosaic_0001>
module attributes {stable_mosaic.version = 11 : i64} {
  func.func @_matmul_bias_kernel(%arg0: i32, %arg1: i32, %arg2: i32, %arg3: memref<128x27xbf16, #tpu.memory_space<vmem>>, %arg4: memref<27x16xbf16, #tpu.memory_space<vmem>>, %arg5: memref<1x16xf32, #tpu.memory_space<vmem>>, %arg6: memref<128x16xbf16, #tpu.memory_space<vmem>>, %arg7: memref<128x16xf32, #tpu.memory_space<vmem>>) attributes {dimension_semantics = [#tpu.dimension_semantics<parallel>, #tpu.dimension_semantics<parallel>, #tpu.dimension_semantics<arbitrary>], iteration_bounds = array<i64: 2, 1, 1>, scalar_prefetch = 0 : i64, scratch_operands = 1 : i64, tpu.core_type = #tpu.core_type<tc>, window_params = [{transform_indices = @transform_0, window_bounds = array<i64: 128, 27>}, {transform_indices = @transform_1, window_bounds = array<i64: 27, 16>}, {transform_indices = @transform_2, window_bounds = array<i64: 1, 16>}, {transform_indices = @transform_3, window_bounds = array<i64: 128, 16>}]} {
    %c0_i32 = arith.constant 0 : i32
    %0 = arith.cmpi eq, %arg2, %c0_i32 : i32
    %1 = arith.extui %0 : i1 to i32
    %c0_i32_0 = arith.constant 0 : i32
    %2 = arith.cmpi ne, %1, %c0_i32_0 : i32
    scf.if %2 {
      %cst_10 = arith.constant 0.000000e+00 : f32
      %12 = vector.broadcast %cst_10 : f32 to vector<128x16xf32>
      %c0_11 = arith.constant 0 : index
      %c0_12 = arith.constant 0 : index
      %13 = vector.load %arg7[%c0_11, %c0_12] : memref<128x16xf32, #tpu.memory_space<vmem>>, vector<128x16xf32>
      tpu.vector_store %arg7[%c0_11, %c0_12], %12 {strides = array<i32>} : memref<128x16xf32, #tpu.memory_space<vmem>>, vector<128x16xf32>,
    } else {
    }
    %c0 = arith.constant 0 : index
    %c0_1 = arith.constant 0 : index
    %3 = vector.load %arg7[%c0, %c0_1] : memref<128x16xf32, #tpu.memory_space<vmem>>, vector<128x16xf32>
    %c0_2 = arith.constant 0 : index
    %c0_3 = arith.constant 0 : index
    %4 = vector.load %arg3[%c0_2, %c0_3] : memref<128x27xbf16, #tpu.memory_space<vmem>>, vector<128x27xbf16>
    %c0_4 = arith.constant 0 : index
    %c0_5 = arith.constant 0 : index
    %5 = vector.load %arg4[%c0_4, %c0_5] : memref<27x16xbf16, #tpu.memory_space<vmem>>, vector<27x16xbf16>
    %cst = arith.constant dense<0.000000e+00> : vector<128x16xf32>
    %6 = tpu.matmul %4, %5, %cst {dimension_numbers = #tpu.dot_dimension_numbers<[1], [0], [0], [1], [0, 0, 1, 1], [], []>} : vector<128x27xbf16>, vector<27x16xbf16>, vector<128x16xf32> -> vector<128x16xf32>
    %7 = arith.addf %3, %6 : vector<128x16xf32>
    %c0_6 = arith.constant 0 : index
    %c0_7 = arith.constant 0 : index
    %8 = vector.load %arg7[%c0_6, %c0_7] : memref<128x16xf32, #tpu.memory_space<vmem>>, vector<128x16xf32>
    tpu.vector_store %arg7[%c0_6, %c0_7], %7 {strides = array<i32>} : memref<128x16xf32, #tpu.memory_space<vmem>>, vector<128x16xf32>,
    %c0_i32_8 = arith.constant 0 : i32
    %9 = arith.cmpi eq, %arg2, %c0_i32_8 : i32
    %10 = arith.extui %9 : i1 to i32
    %c0_i32_9 = arith.constant 0 : i32
    %11 = arith.cmpi ne, %10, %c0_i32_9 : i32
    scf.if %11 {
      %c0_10 = arith.constant 0 : index
      %c0_11 = arith.constant 0 : index
      %12 = vector.load %arg7[%c0_10, %c0_11] : memref<128x16xf32, #tpu.memory_space<vmem>>, vector<128x16xf32>
      %c0_12 = arith.constant 0 : index
      %c0_13 = arith.constant 0 : index
      %13 = vector.load %arg5[%c0_12, %c0_13] : memref<1x16xf32, #tpu.memory_space<vmem>>, vector<1x16xf32>
      %14 = vector.broadcast %13 : vector<1x16xf32> to vector<128x16xf32>
      %15 = arith.addf %12, %14 : vector<128x16xf32>
      %cst_14 = arith.constant 0.000000e+00 : f32
      %16 = vector.broadcast %cst_14 : f32 to vector<128x16xf32>
      %17 = arith.maximumf %15, %16 : vector<128x16xf32>
      %18 = arith.truncf %17 : vector<128x16xf32> to vector<128x16xbf16>
      %c0_15 = arith.constant 0 : index
      %c0_16 = arith.constant 0 : index
      %19 = vector.load %arg6[%c0_15, %c0_16] : memref<128x16xbf16, #tpu.memory_space<vmem>>, vector<128x16xbf16>
      tpu.vector_store %arg6[%c0_15, %c0_16], %18 {strides = array<i32>} : memref<128x16xbf16, #tpu.memory_space<vmem>>, vector<128x16xbf16>,
    } else {
    }
    return
  }
  func.func @transform_0(%arg0: i32, %arg1: i32, %arg2: i32) -> (i32, i32) {
    %c0_i32 = arith.constant 0 : i32
    return %arg0, %arg2 : i32, i32
  }
  func.func @transform_1(%arg0: i32, %arg1: i32, %arg2: i32) -> (i32, i32) {
    %c0_i32 = arith.constant 0 : i32
    return %arg2, %arg1 : i32, i32
  }
  func.func @transform_2(%arg0: i32, %arg1: i32, %arg2: i32) -> (i32, i32) {
    %c0_i32 = arith.constant 0 : i32
    %c0_i32_0 = arith.constant 0 : i32
    return %c0_i32, %arg1 : i32, i32
  }
  func.func @transform_3(%arg0: i32, %arg1: i32, %arg2: i32) -> (i32, i32) {
    %c0_i32 = arith.constant 0 : i32
    return %arg0, %arg1 : i32, i32
  }
}

module attributes {stable_mosaic.version = 11 : i64} {
  func.func @_matmul_bias_kernel(%arg0: i32, %arg1: i32, %arg2: i32, %arg3: memref<64x144xbf16, #tpu.memory_space<vmem>>, %arg4: memref<144x32xbf16, #tpu.memory_space<vmem>>, %arg5: memref<1x32xf32, #tpu.memory_space<vmem>>, %arg6: memref<64x32xf32, #tpu.memory_space<vmem>>, %arg7: memref<64x32xf32, #tpu.memory_space<vmem>>) attributes {dimension_semantics = [#tpu.dimension_semantics<parallel>, #tpu.dimension_semantics<parallel>, #tpu.dimension_semantics<arbitrary>], iteration_bounds = array<i64: 1, 1, 1>, scalar_prefetch = 0 : i64, scratch_operands = 1 : i64, tpu.core_type = #tpu.core_type<tc>, window_params = [{transform_indices = @transform_0, window_bounds = array<i64: 64, 144>}, {transform_indices = @transform_1, window_bounds = array<i64: 144, 32>}, {transform_indices = @transform_2, window_bounds = array<i64: 1, 32>}, {transform_indices = @transform_3, window_bounds = array<i64: 64, 32>}]} {
    %c0_i32 = arith.constant 0 : i32
    %0 = arith.cmpi eq, %arg2, %c0_i32 : i32
    %1 = arith.extui %0 : i1 to i32
    %c0_i32_0 = arith.constant 0 : i32
    %2 = arith.cmpi ne, %1, %c0_i32_0 : i32
    scf.if %2 {
      %cst_10 = arith.constant 0.000000e+00 : f32
      %12 = vector.broadcast %cst_10 : f32 to vector<64x32xf32>
      %c0_11 = arith.constant 0 : index
      %c0_12 = arith.constant 0 : index
      %13 = vector.load %arg7[%c0_11, %c0_12] : memref<64x32xf32, #tpu.memory_space<vmem>>, vector<64x32xf32>
      tpu.vector_store %arg7[%c0_11, %c0_12], %12 {strides = array<i32>} : memref<64x32xf32, #tpu.memory_space<vmem>>, vector<64x32xf32>,
    } else {
    }
    %c0 = arith.constant 0 : index
    %c0_1 = arith.constant 0 : index
    %3 = vector.load %arg7[%c0, %c0_1] : memref<64x32xf32, #tpu.memory_space<vmem>>, vector<64x32xf32>
    %c0_2 = arith.constant 0 : index
    %c0_3 = arith.constant 0 : index
    %4 = vector.load %arg3[%c0_2, %c0_3] : memref<64x144xbf16, #tpu.memory_space<vmem>>, vector<64x144xbf16>
    %c0_4 = arith.constant 0 : index
    %c0_5 = arith.constant 0 : index
    %5 = vector.load %arg4[%c0_4, %c0_5] : memref<144x32xbf16, #tpu.memory_space<vmem>>, vector<144x32xbf16>
    %cst = arith.constant dense<0.000000e+00> : vector<64x32xf32>
    %6 = tpu.matmul %4, %5, %cst {dimension_numbers = #tpu.dot_dimension_numbers<[1], [0], [0], [1], [0, 0, 1, 1], [], []>} : vector<64x144xbf16>, vector<144x32xbf16>, vector<64x32xf32> -> vector<64x32xf32>
    %7 = arith.addf %3, %6 : vector<64x32xf32>
    %c0_6 = arith.constant 0 : index
    %c0_7 = arith.constant 0 : index
    %8 = vector.load %arg7[%c0_6, %c0_7] : memref<64x32xf32, #tpu.memory_space<vmem>>, vector<64x32xf32>
    tpu.vector_store %arg7[%c0_6, %c0_7], %7 {strides = array<i32>} : memref<64x32xf32, #tpu.memory_space<vmem>>, vector<64x32xf32>,
    %c0_i32_8 = arith.constant 0 : i32
    %9 = arith.cmpi eq, %arg2, %c0_i32_8 : i32
    %10 = arith.extui %9 : i1 to i32
    %c0_i32_9 = arith.constant 0 : i32
    %11 = arith.cmpi ne, %10, %c0_i32_9 : i32
    scf.if %11 {
      %c0_10 = arith.constant 0 : index
      %c0_11 = arith.constant 0 : index
      %12 = vector.load %arg7[%c0_10, %c0_11] : memref<64x32xf32, #tpu.memory_space<vmem>>, vector<64x32xf32>
      %c0_12 = arith.constant 0 : index
      %c0_13 = arith.constant 0 : index
      %13 = vector.load %arg5[%c0_12, %c0_13] : memref<1x32xf32, #tpu.memory_space<vmem>>, vector<1x32xf32>
      %14 = vector.broadcast %13 : vector<1x32xf32> to vector<64x32xf32>
      %15 = arith.addf %12, %14 : vector<64x32xf32>
      %cst_14 = arith.constant 0.000000e+00 : f32
      %16 = vector.broadcast %cst_14 : f32 to vector<64x32xf32>
      %17 = arith.maximumf %15, %16 : vector<64x32xf32>
      %c0_15 = arith.constant 0 : index
      %c0_16 = arith.constant 0 : index
      %18 = vector.load %arg6[%c0_15, %c0_16] : memref<64x32xf32, #tpu.memory_space<vmem>>, vector<64x32xf32>
      tpu.vector_store %arg6[%c0_15, %c0_16], %17 {strides = array<i32>} : memref<64x32xf32, #tpu.memory_space<vmem>>, vector<64x32xf32>,
    } else {
    }
    return
  }
  func.func @transform_0(%arg0: i32, %arg1: i32, %arg2: i32) -> (i32, i32) {
    %c0_i32 = arith.constant 0 : i32
    return %arg0, %arg2 : i32, i32
  }
  func.func @transform_1(%arg0: i32, %arg1: i32, %arg2: i32) -> (i32, i32) {
    %c0_i32 = arith.constant 0 : i32
    return %arg2, %arg1 : i32, i32
  }
  func.func @transform_2(%arg0: i32, %arg1: i32, %arg2: i32) -> (i32, i32) {
    %c0_i32 = arith.constant 0 : i32
    %c0_i32_0 = arith.constant 0 : i32
    return %c0_i32, %arg1 : i32, i32
  }
  func.func @transform_3(%arg0: i32, %arg1: i32, %arg2: i32) -> (i32, i32) {
    %c0_i32 = arith.constant 0 : i32
    return %arg0, %arg1 : i32, i32
  }
}

module attributes {stable_mosaic.version = 11 : i64} {
  func.func @_bbox_head_kernel(%arg0: i32, %arg1: memref<8x512xbf16, #tpu.memory_space<vmem>>, %arg2: memref<8x4xf32, #tpu.memory_space<vmem>>, %arg3: memref<512x64xbf16, #tpu.memory_space<vmem>>, %arg4: memref<1x64xf32, #tpu.memory_space<vmem>>, %arg5: memref<64x6xbf16, #tpu.memory_space<vmem>>, %arg6: memref<1x6xf32, #tpu.memory_space<vmem>>, %arg7: memref<4xf32, #tpu.memory_space<smem>>, %arg8: memref<8x5xf32, #tpu.memory_space<vmem>>) attributes {dimension_semantics = [#tpu.dimension_semantics<arbitrary>], iteration_bounds = array<i64: 1>, scalar_prefetch = 0 : i64, scratch_operands = 0 : i64, tpu.core_type = #tpu.core_type<tc>, window_params = [{pipeline_mode = #tpu.pipeline_mode<synchronous>, transform_indices = @transform_0, window_bounds = array<i64: 8, 512>}, {pipeline_mode = #tpu.pipeline_mode<synchronous>, transform_indices = @transform_1, window_bounds = array<i64: 8, 4>}, {pipeline_mode = #tpu.pipeline_mode<synchronous>, transform_indices = @transform_2, window_bounds = array<i64: 512, 64>}, {pipeline_mode = #tpu.pipeline_mode<synchronous>, transform_indices = @transform_3, window_bounds = array<i64: 1, 64>}, {pipeline_mode = #tpu.pipeline_mode<synchronous>, transform_indices = @transform_4, window_bounds = array<i64: 64, 6>}, {pipeline_mode = #tpu.pipeline_mode<synchronous>, transform_indices = @transform_5, window_bounds = array<i64: 1, 6>}, {transform_indices = @transform_6, window_bounds = array<i64: 4>}, {pipeline_mode = #tpu.pipeline_mode<synchronous>, transform_indices = @transform_7, window_bounds = array<i64: 8, 5>}]} {
    %c0 = arith.constant 0 : index
    %c0_0 = arith.constant 0 : index
    %0 = vector.load %arg1[%c0, %c0_0] : memref<8x512xbf16, #tpu.memory_space<vmem>>, vector<8x512xbf16>
    %c0_1 = arith.constant 0 : index
    %c0_2 = arith.constant 0 : index
    %1 = vector.load %arg3[%c0_1, %c0_2] : memref<512x64xbf16, #tpu.memory_space<vmem>>, vector<512x64xbf16>
    %cst = arith.constant dense<0.000000e+00> : vector<8x64xf32>
    %2 = tpu.matmul %0, %1, %cst {dimension_numbers = #tpu.dot_dimension_numbers<[1], [0], [0], [1], [0, 0, 1, 1], [], []>} : vector<8x512xbf16>, vector<512x64xbf16>, vector<8x64xf32> -> vector<8x64xf32>
    %c0_3 = arith.constant 0 : index
    %c0_4 = arith.constant 0 : index
    %3 = vector.load %arg4[%c0_3, %c0_4] : memref<1x64xf32, #tpu.memory_space<vmem>>, vector<1x64xf32>
    %4 = vector.broadcast %3 : vector<1x64xf32> to vector<8x64xf32>
    %5 = arith.addf %2, %4 : vector<8x64xf32>
    %cst_5 = arith.constant 0.000000e+00 : f32
    %6 = vector.broadcast %cst_5 : f32 to vector<8x64xf32>
    %7 = arith.maximumf %5, %6 : vector<8x64xf32>
    %8 = arith.truncf %7 : vector<8x64xf32> to vector<8x64xbf16>
    %c0_6 = arith.constant 0 : index
    %c0_7 = arith.constant 0 : index
    %9 = vector.load %arg5[%c0_6, %c0_7] : memref<64x6xbf16, #tpu.memory_space<vmem>>, vector<64x6xbf16>
    %cst_8 = arith.constant dense<0.000000e+00> : vector<8x6xf32>
    %10 = tpu.matmul %8, %9, %cst_8 {dimension_numbers = #tpu.dot_dimension_numbers<[1], [0], [0], [1], [0, 0, 1, 1], [], []>} : vector<8x64xbf16>, vector<64x6xbf16>, vector<8x6xf32> -> vector<8x6xf32>
    %c0_9 = arith.constant 0 : index
    %c0_10 = arith.constant 0 : index
    %11 = vector.load %arg6[%c0_9, %c0_10] : memref<1x6xf32, #tpu.memory_space<vmem>>, vector<1x6xf32>
    %12 = vector.broadcast %11 : vector<1x6xf32> to vector<8x6xf32>
    %13 = arith.addf %10, %12 : vector<8x6xf32>
    %14 = vector.extract_strided_slice %13 {offsets = [0, 0], sizes = [8, 2], strides = [1, 1]} : vector<8x6xf32> to vector<8x2xf32>
    %15 = vector.extract_strided_slice %13 {offsets = [0, 2], sizes = [8, 4], strides = [1, 1]} : vector<8x6xf32> to vector<8x4xf32>
    %cst_11 = arith.constant dense<0xFF800000> : vector<8xf32>
    %16 = vector.multi_reduction <maximumf>, %14, %cst_11 [1] : vector<8x2xf32> to vector<8xf32>
    %17 = vector.shape_cast %16 : vector<8xf32> to vector<8x1xf32>
    %18 = vector.broadcast %17 : vector<8x1xf32> to vector<8x2xf32>
    %19 = arith.subf %14, %18 : vector<8x2xf32>
    %20 = math.exp %19 : vector<8x2xf32>
    %cst_12 = arith.constant dense<0.000000e+00> : vector<8xf32>
    %21 = vector.multi_reduction <add>, %20, %cst_12 [1] : vector<8x2xf32> to vector<8xf32>
    %22 = vector.shape_cast %21 : vector<8xf32> to vector<8x1xf32>
    %23 = vector.extract_strided_slice %20 {offsets = [0, 0], sizes = [8, 1], strides = [1, 1]} : vector<8x2xf32> to vector<8x1xf32>
    %24 = tpu.reciprocal %22 {approx = true} : vector<8x1xf32> -> vector<8x1xf32>
    %25 = arith.mulf %23, %24 : vector<8x1xf32>
    %c0_13 = arith.constant 0 : index
    %c0_14 = arith.constant 0 : index
    %26 = vector.load %arg2[%c0_13, %c0_14] : memref<8x4xf32, #tpu.memory_space<vmem>>, vector<8x4xf32>
    %27 = vector.extract_strided_slice %26 {offsets = [0, 0], sizes = [8, 1], strides = [1, 1]} : vector<8x4xf32> to vector<8x1xf32>
    %28 = vector.extract_strided_slice %26 {offsets = [0, 1], sizes = [8, 1], strides = [1, 1]} : vector<8x4xf32> to vector<8x1xf32>
    %29 = vector.extract_strided_slice %26 {offsets = [0, 2], sizes = [8, 1], strides = [1, 1]} : vector<8x4xf32> to vector<8x1xf32>
    %30 = vector.extract_strided_slice %26 {offsets = [0, 3], sizes = [8, 1], strides = [1, 1]} : vector<8x4xf32> to vector<8x1xf32>
    %31 = arith.subf %29, %27 : vector<8x1xf32>
    %32 = arith.subf %30, %28 : vector<8x1xf32>
    %cst_15 = arith.constant 5.000000e-01 : f32
    %33 = vector.broadcast %cst_15 : f32 to vector<8x1xf32>
    %34 = arith.mulf %33, %31 : vector<8x1xf32>
    %35 = arith.addf %27, %34 : vector<8x1xf32>
    %cst_16 = arith.constant 5.000000e-01 : f32
    %36 = vector.broadcast %cst_16 : f32 to vector<8x1xf32>
    %37 = arith.mulf %36, %32 : vector<8x1xf32>
    %38 = arith.addf %28, %37 : vector<8x1xf32>
    %39 = vector.extract_strided_slice %15 {offsets = [0, 0], sizes = [8, 1], strides = [1, 1]} : vector<8x4xf32> to vector<8x1xf32>
    %cst_17 = arith.constant 1.000000e-01 : f32
    %40 = vector.broadcast %cst_17 : f32 to vector<8x1xf32>
    %41 = arith.mulf %39, %40 : vector<8x1xf32>
    %42 = vector.extract_strided_slice %15 {offsets = [0, 1], sizes = [8, 1], strides = [1, 1]} : vector<8x4xf32> to vector<8x1xf32>
    %cst_18 = arith.constant 1.000000e-01 : f32
    %43 = vector.broadcast %cst_18 : f32 to vector<8x1xf32>
    %44 = arith.mulf %42, %43 : vector<8x1xf32>
    %45 = vector.extract_strided_slice %15 {offsets = [0, 2], sizes = [8, 1], strides = [1, 1]} : vector<8x4xf32> to vector<8x1xf32>
    %cst_19 = arith.constant 2.000000e-01 : f32
    %46 = vector.broadcast %cst_19 : f32 to vector<8x1xf32>
    %47 = arith.mulf %45, %46 : vector<8x1xf32>
    %cst_20 = arith.constant -4.13516665 : f32
    %cst_21 = arith.constant 4.13516665 : f32
    %48 = vector.broadcast %cst_20 : f32 to vector<8x1xf32>
    %49 = arith.maximumf %48, %47 : vector<8x1xf32>
    %50 = vector.broadcast %cst_21 : f32 to vector<8x1xf32>
    %51 = arith.minimumf %50, %49 : vector<8x1xf32>
    %52 = vector.extract_strided_slice %15 {offsets = [0, 3], sizes = [8, 1], strides = [1, 1]} : vector<8x4xf32> to vector<8x1xf32>
    %cst_22 = arith.constant 2.000000e-01 : f32
    %53 = vector.broadcast %cst_22 : f32 to vector<8x1xf32>
    %54 = arith.mulf %52, %53 : vector<8x1xf32>
    %cst_23 = arith.constant -4.13516665 : f32
    %cst_24 = arith.constant 4.13516665 : f32
    %55 = vector.broadcast %cst_23 : f32 to vector<8x1xf32>
    %56 = arith.maximumf %55, %54 : vector<8x1xf32>
    %57 = vector.broadcast %cst_24 : f32 to vector<8x1xf32>
    %58 = arith.minimumf %57, %56 : vector<8x1xf32>
    %59 = arith.mulf %31, %41 : vector<8x1xf32>
    %60 = arith.addf %35, %59 : vector<8x1xf32>
    %61 = arith.mulf %32, %44 : vector<8x1xf32>
    %62 = arith.addf %38, %61 : vector<8x1xf32>
    %63 = math.exp %51 : vector<8x1xf32>
    %64 = arith.mulf %31, %63 : vector<8x1xf32>
    %65 = math.exp %58 : vector<8x1xf32>
    %66 = arith.mulf %32, %65 : vector<8x1xf32>
    %cst_25 = arith.constant 5.000000e-01 : f32
    %67 = vector.broadcast %cst_25 : f32 to vector<8x1xf32>
    %68 = arith.mulf %67, %64 : vector<8x1xf32>
    %69 = arith.subf %60, %68 : vector<8x1xf32>
    %cst_26 = arith.constant 0.000000e+00 : f32
    %cst_27 = arith.constant 1.600000e+01 : f32
    %70 = vector.broadcast %cst_26 : f32 to vector<8x1xf32>
    %71 = arith.maximumf %70, %69 : vector<8x1xf32>
    %72 = vector.broadcast %cst_27 : f32 to vector<8x1xf32>
    %73 = arith.minimumf %72, %71 : vector<8x1xf32>
    %cst_28 = arith.constant 5.000000e-01 : f32
    %74 = vector.broadcast %cst_28 : f32 to vector<8x1xf32>
    %75 = arith.mulf %74, %66 : vector<8x1xf32>
    %76 = arith.subf %62, %75 : vector<8x1xf32>
    %cst_29 = arith.constant 0.000000e+00 : f32
    %cst_30 = arith.constant 1.600000e+01 : f32
    %77 = vector.broadcast %cst_29 : f32 to vector<8x1xf32>
    %78 = arith.maximumf %77, %76 : vector<8x1xf32>
    %79 = vector.broadcast %cst_30 : f32 to vector<8x1xf32>
    %80 = arith.minimumf %79, %78 : vector<8x1xf32>
    %cst_31 = arith.constant 5.000000e-01 : f32
    %81 = vector.broadcast %cst_31 : f32 to vector<8x1xf32>
    %82 = arith.mulf %81, %64 : vector<8x1xf32>
    %83 = arith.addf %60, %82 : vector<8x1xf32>
    %cst_32 = arith.constant 0.000000e+00 : f32
    %cst_33 = arith.constant 1.600000e+01 : f32
    %84 = vector.broadcast %cst_32 : f32 to vector<8x1xf32>
    %85 = arith.maximumf %84, %83 : vector<8x1xf32>
    %86 = vector.broadcast %cst_33 : f32 to vector<8x1xf32>
    %87 = arith.minimumf %86, %85 : vector<8x1xf32>
    %cst_34 = arith.constant 5.000000e-01 : f32
    %88 = vector.broadcast %cst_34 : f32 to vector<8x1xf32>
    %89 = arith.mulf %88, %66 : vector<8x1xf32>
    %90 = arith.addf %62, %89 : vector<8x1xf32>
    %cst_35 = arith.constant 0.000000e+00 : f32
    %cst_36 = arith.constant 1.600000e+01 : f32
    %91 = vector.broadcast %cst_35 : f32 to vector<8x1xf32>
    %92 = arith.maximumf %91, %90 : vector<8x1xf32>
    %93 = vector.broadcast %cst_36 : f32 to vector<8x1xf32>
    %94 = arith.minimumf %93, %92 : vector<8x1xf32>
    %c0_37 = arith.constant 0 : index
    %95 = memref.load %arg7[%c0_37] : memref<4xf32, #tpu.memory_space<smem>>
    %96 = vector.broadcast %95 : f32 to vector<8x1xf32>
    %97 = arith.mulf %73, %96 : vector<8x1xf32>
    %c1 = arith.constant 1 : index
    %98 = memref.load %arg7[%c1] : memref<4xf32, #tpu.memory_space<smem>>
    %99 = vector.broadcast %98 : f32 to vector<8x1xf32>
    %100 = arith.mulf %80, %99 : vector<8x1xf32>
    %c2 = arith.constant 2 : index
    %101 = memref.load %arg7[%c2] : memref<4xf32, #tpu.memory_space<smem>>
    %102 = vector.broadcast %101 : f32 to vector<8x1xf32>
    %103 = arith.mulf %87, %102 : vector<8x1xf32>
    %c3 = arith.constant 3 : index
    %104 = memref.load %arg7[%c3] : memref<4xf32, #tpu.memory_space<smem>>
    %105 = vector.broadcast %104 : f32 to vector<8x1xf32>
    %106 = arith.mulf %94, %105 : vector<8x1xf32>
    %107 = tpu.concatenate %97, %100, %103, %106, %25 in 1 : vector<8x1xf32>, vector<8x1xf32>, vector<8x1xf32>, vector<8x1xf32>, vector<8x1xf32> -> vector<8x5xf32>
    %c0_38 = arith.constant 0 : index
    %c0_39 = arith.constant 0 : index
    %108 = vector.load %arg8[%c0_38, %c0_39] : memref<8x5xf32, #tpu.memory_space<vmem>>, vector<8x5xf32>
    tpu.vector_store %arg8[%c0_38, %c0_39], %107 {strides = array<i32>} : memref<8x5xf32, #tpu.memory_space<vmem>>, vector<8x5xf32>,
    return
  }
  func.func @transform_0(%arg0: i32) -> (i32, i32) {
    %c0_i32 = arith.constant 0 : i32
    %c0_i32_0 = arith.constant 0 : i32
    %c0_i32_1 = arith.constant 0 : i32
    return %c0_i32, %c0_i32_0 : i32, i32
  }
  func.func @transform_1(%arg0: i32) -> (i32, i32) {
    %c0_i32 = arith.constant 0 : i32
    %c0_i32_0 = arith.constant 0 : i32
    %c0_i32_1 = arith.constant 0 : i32
    return %c0_i32, %c0_i32_0 : i32, i32
  }
  func.func @transform_2(%arg0: i32) -> (i32, i32) {
    %c0_i32 = arith.constant 0 : i32
    %c0_i32_0 = arith.constant 0 : i32
    %c0_i32_1 = arith.constant 0 : i32
    return %c0_i32, %c0_i32_0 : i32, i32
  }
  func.func @transform_3(%arg0: i32) -> (i32, i32) {
    %c0_i32 = arith.constant 0 : i32
    %c0_i32_0 = arith.constant 0 : i32
    %c0_i32_1 = arith.constant 0 : i32
    return %c0_i32, %c0_i32_0 : i32, i32
  }
  func.func @transform_4(%arg0: i32) -> (i32, i32) {
    %c0_i32 = arith.constant 0 : i32
    %c0_i32_0 = arith.constant 0 : i32
    %c0_i32_1 = arith.constant 0 : i32
    return %c0_i32, %c0_i32_0 : i32, i32
  }
  func.func @transform_5(%arg0: i32) -> (i32, i32) {
    %c0_i32 = arith.constant 0 : i32
    %c0_i32_0 = arith.constant 0 : i32
    %c0_i32_1 = arith.constant 0 : i32
    return %c0_i32, %c0_i32_0 : i32, i32
  }
  func.func @transform_6(%arg0: i32) -> i32 {
    %c0_i32 = arith.constant 0 : i32
    %c0_i32_0 = arith.constant 0 : i32
    return %c0_i32 : i32
  }
  func.func @transform_7(%arg0: i32) -> (i32, i32) {
    %c0_i32 = arith.constant 0 : i32
    %c0_i32_0 = arith.constant 0 : i32
    %c0_i32_1 = arith.constant 0 : i32
    return %c0_i32, %c0_i32_0 : i32, i32
  }
}

module attributes {stable_mosaic.version = 11 : i64} {
  func.func @_roi_align_kernel(%arg0: i32, %arg1: memref<512xi32, #tpu.memory_space<smem>>, %arg2: memref<512xf32, #tpu.memory_space<smem>>, %arg3: memref<64x32xf32, #tpu.memory_space<vmem>>, %arg4: memref<1x16x32xf32, #tpu.memory_space<vmem>>) attributes {dimension_semantics = [#tpu.dimension_semantics<arbitrary>], iteration_bounds = array<i64: 8>, scalar_prefetch = 1 : i64, scratch_operands = 0 : i64, tpu.core_type = #tpu.core_type<tc>, window_params = [{transform_indices = @transform_0, window_bounds = array<i64: 512>}, {pipeline_mode = #tpu.pipeline_mode<synchronous>, transform_indices = @transform_1, window_bounds = array<i64: 64, 32>}, {transform_indices = @transform_2, window_bounds = array<i64: 1, 16, 32>}]} {
    %c64_i32 = arith.constant 64 : i32
    %0 = arith.muli %arg0, %c64_i32 : i32
    %c0_i32 = arith.constant 0 : i32
    %1 = arith.addi %0, %c0_i32 : i32
    %c0_i32_0 = arith.constant 0 : i32
    %2 = arith.addi %1, %c0_i32_0 : i32
    %3 = arith.index_cast %2 : i32 to index
    %4 = memref.load %arg2[%3] : memref<512xf32, #tpu.memory_space<smem>>
    %c0_i32_1 = arith.constant 0 : i32
    %5 = arith.addi %1, %c0_i32_1 : i32
    %6 = arith.index_cast %5 : i32 to index
    %7 = memref.load %arg1[%6] : memref<512xi32, #tpu.memory_space<smem>>
    %8 = arith.index_cast %7 : i32 to index
    %c0 = arith.constant 0 : index
    %9 = vector.load %arg3[%8, %c0] : memref<64x32xf32, #tpu.memory_space<vmem>>, vector<1x32xf32>
    %10 = vector.broadcast %4 : f32 to vector<1x32xf32>
    %11 = arith.mulf %10, %9 : vector<1x32xf32>
    %c1_i32 = arith.constant 1 : i32
    %12 = arith.addi %1, %c1_i32 : i32
    %13 = arith.index_cast %12 : i32 to index
    %14 = memref.load %arg2[%13] : memref<512xf32, #tpu.memory_space<smem>>
    %c1_i32_2 = arith.constant 1 : i32
    %15 = arith.addi %1, %c1_i32_2 : i32
    %16 = arith.index_cast %15 : i32 to index
    %17 = memref.load %arg1[%16] : memref<512xi32, #tpu.memory_space<smem>>
    %18 = arith.index_cast %17 : i32 to index
    %c0_3 = arith.constant 0 : index
    %19 = vector.load %arg3[%18, %c0_3] : memref<64x32xf32, #tpu.memory_space<vmem>>, vector<1x32xf32>
    %20 = vector.broadcast %14 : f32 to vector<1x32xf32>
    %21 = arith.mulf %20, %19 : vector<1x32xf32>
    %22 = arith.addf %11, %21 : vector<1x32xf32>
    %c2_i32 = arith.constant 2 : i32
    %23 = arith.addi %1, %c2_i32 : i32
    %24 = arith.index_cast %23 : i32 to index
    %25 = memref.load %arg2[%24] : memref<512xf32, #tpu.memory_space<smem>>
    %c2_i32_4 = arith.constant 2 : i32
    %26 = arith.addi %1, %c2_i32_4 : i32
    %27 = arith.index_cast %26 : i32 to index
    %28 = memref.load %arg1[%27] : memref<512xi32, #tpu.memory_space<smem>>
    %29 = arith.index_cast %28 : i32 to index
    %c0_5 = arith.constant 0 : index
    %30 = vector.load %arg3[%29, %c0_5] : memref<64x32xf32, #tpu.memory_space<vmem>>, vector<1x32xf32>
    %31 = vector.broadcast %25 : f32 to vector<1x32xf32>
    %32 = arith.mulf %31, %30 : vector<1x32xf32>
    %33 = arith.addf %22, %32 : vector<1x32xf32>
    %c3_i32 = arith.constant 3 : i32
    %34 = arith.addi %1, %c3_i32 : i32
    %35 = arith.index_cast %34 : i32 to index
    %36 = memref.load %arg2[%35] : memref<512xf32, #tpu.memory_space<smem>>
    %c3_i32_6 = arith.constant 3 : i32
    %37 = arith.addi %1, %c3_i32_6 : i32
    %38 = arith.index_cast %37 : i32 to index
    %39 = memref.load %arg1[%38] : memref<512xi32, #tpu.memory_space<smem>>
    %40 = arith.index_cast %39 : i32 to index
    %c0_7 = arith.constant 0 : index
    %41 = vector.load %arg3[%40, %c0_7] : memref<64x32xf32, #tpu.memory_space<vmem>>, vector<1x32xf32>
    %42 = vector.broadcast %36 : f32 to vector<1x32xf32>
    %43 = arith.mulf %42, %41 : vector<1x32xf32>
    %44 = arith.addf %33, %43 : vector<1x32xf32>
    %c0_8 = arith.constant 0 : index
    %c0_9 = arith.constant 0 : index
    %c0_10 = arith.constant 0 : index
    %45 = vector.load %arg4[%c0_8, %c0_9, %c0_10] : memref<1x16x32xf32, #tpu.memory_space<vmem>>, vector<1x1x32xf32>
    %46 = vector.shape_cast %45 : vector<1x1x32xf32> to vector<1x32xf32>
    %47 = vector.shape_cast %44 : vector<1x32xf32> to vector<1x1x32xf32>
    tpu.vector_store %arg4[%c0_8, %c0_9, %c0_10], %47 {strides = array<i32>} : memref<1x16x32xf32, #tpu.memory_space<vmem>>, vector<1x1x32xf32>,
    %c64_i32_11 = arith.constant 64 : i32
    %48 = arith.muli %arg0, %c64_i32_11 : i32
    %c4_i32 = arith.constant 4 : i32
    %49 = arith.addi %48, %c4_i32 : i32
    %c0_i32_12 = arith.constant 0 : i32
    %50 = arith.addi %49, %c0_i32_12 : i32
    %51 = arith.index_cast %50 : i32 to index
    %52 = memref.load %arg2[%51] : memref<512xf32, #tpu.memory_space<smem>>
    %c0_i32_13 = arith.constant 0 : i32
    %53 = arith.addi %49, %c0_i32_13 : i32
    %54 = arith.index_cast %53 : i32 to index
    %55 = memref.load %arg1[%54] : memref<512xi32, #tpu.memory_space<smem>>
    %56 = arith.index_cast %55 : i32 to index
    %c0_14 = arith.constant 0 : index
    %57 = vector.load %arg3[%56, %c0_14] : memref<64x32xf32, #tpu.memory_space<vmem>>, vector<1x32xf32>
    %58 = vector.broadcast %52 : f32 to vector<1x32xf32>
    %59 = arith.mulf %58, %57 : vector<1x32xf32>
    %c1_i32_15 = arith.constant 1 : i32
    %60 = arith.addi %49, %c1_i32_15 : i32
    %61 = arith.index_cast %60 : i32 to index
    %62 = memref.load %arg2[%61] : memref<512xf32, #tpu.memory_space<smem>>
    %c1_i32_16 = arith.constant 1 : i32
    %63 = arith.addi %49, %c1_i32_16 : i32
    %64 = arith.index_cast %63 : i32 to index
    %65 = memref.load %arg1[%64] : memref<512xi32, #tpu.memory_space<smem>>
    %66 = arith.index_cast %65 : i32 to index
    %c0_17 = arith.constant 0 : index
    %67 = vector.load %arg3[%66, %c0_17] : memref<64x32xf32, #tpu.memory_space<vmem>>, vector<1x32xf32>
    %68 = vector.broadcast %62 : f32 to vector<1x32xf32>
    %69 = arith.mulf %68, %67 : vector<1x32xf32>
    %70 = arith.addf %59, %69 : vector<1x32xf32>
    %c2_i32_18 = arith.constant 2 : i32
    %71 = arith.addi %49, %c2_i32_18 : i32
    %72 = arith.index_cast %71 : i32 to index
    %73 = memref.load %arg2[%72] : memref<512xf32, #tpu.memory_space<smem>>
    %c2_i32_19 = arith.constant 2 : i32
    %74 = arith.addi %49, %c2_i32_19 : i32
    %75 = arith.index_cast %74 : i32 to index
    %76 = memref.load %arg1[%75] : memref<512xi32, #tpu.memory_space<smem>>
    %77 = arith.index_cast %76 : i32 to index
    %c0_20 = arith.constant 0 : index
    %78 = vector.load %arg3[%77, %c0_20] : memref<64x32xf32, #tpu.memory_space<vmem>>, vector<1x32xf32>
    %79 = vector.broadcast %73 : f32 to vector<1x32xf32>
    %80 = arith.mulf %79, %78 : vector<1x32xf32>
    %81 = arith.addf %70, %80 : vector<1x32xf32>
    %c3_i32_21 = arith.constant 3 : i32
    %82 = arith.addi %49, %c3_i32_21 : i32
    %83 = arith.index_cast %82 : i32 to index
    %84 = memref.load %arg2[%83] : memref<512xf32, #tpu.memory_space<smem>>
    %c3_i32_22 = arith.constant 3 : i32
    %85 = arith.addi %49, %c3_i32_22 : i32
    %86 = arith.index_cast %85 : i32 to index
    %87 = memref.load %arg1[%86] : memref<512xi32, #tpu.memory_space<smem>>
    %88 = arith.index_cast %87 : i32 to index
    %c0_23 = arith.constant 0 : index
    %89 = vector.load %arg3[%88, %c0_23] : memref<64x32xf32, #tpu.memory_space<vmem>>, vector<1x32xf32>
    %90 = vector.broadcast %84 : f32 to vector<1x32xf32>
    %91 = arith.mulf %90, %89 : vector<1x32xf32>
    %92 = arith.addf %81, %91 : vector<1x32xf32>
    %c0_24 = arith.constant 0 : index
    %c1 = arith.constant 1 : index
    %c0_25 = arith.constant 0 : index
    %93 = vector.load %arg4[%c0_24, %c1, %c0_25] : memref<1x16x32xf32, #tpu.memory_space<vmem>>, vector<1x1x32xf32>
    %94 = vector.shape_cast %93 : vector<1x1x32xf32> to vector<1x32xf32>
    %95 = vector.shape_cast %92 : vector<1x32xf32> to vector<1x1x32xf32>
    tpu.vector_store %arg4[%c0_24, %c1, %c0_25], %95 {strides = array<i32>} : memref<1x16x32xf32, #tpu.memory_space<vmem>>, vector<1x1x32xf32>,
    %c64_i32_26 = arith.constant 64 : i32
    %96 = arith.muli %arg0, %c64_i32_26 : i32
    %c8_i32 = arith.constant 8 : i32
    %97 = arith.addi %96, %c8_i32 : i32
    %c0_i32_27 = arith.constant 0 : i32
    %98 = arith.addi %97, %c0_i32_27 : i32
    %99 = arith.index_cast %98 : i32 to index
    %100 = memref.load %arg2[%99] : memref<512xf32, #tpu.memory_space<smem>>
    %c0_i32_28 = arith.constant 0 : i32
    %101 = arith.addi %97, %c0_i32_28 : i32
    %102 = arith.index_cast %101 : i32 to index
    %103 = memref.load %arg1[%102] : memref<512xi32, #tpu.memory_space<smem>>
    %104 = arith.index_cast %103 : i32 to index
    %c0_29 = arith.constant 0 : index
    %105 = vector.load %arg3[%104, %c0_29] : memref<64x32xf32, #tpu.memory_space<vmem>>, vector<1x32xf32>
    %106 = vector.broadcast %100 : f32 to vector<1x32xf32>
    %107 = arith.mulf %106, %105 : vector<1x32xf32>
    %c1_i32_30 = arith.constant 1 : i32
    %108 = arith.addi %97, %c1_i32_30 : i32
    %109 = arith.index_cast %108 : i32 to index
    %110 = memref.load %arg2[%109] : memref<512xf32, #tpu.memory_space<smem>>
    %c1_i32_31 = arith.constant 1 : i32
    %111 = arith.addi %97, %c1_i32_31 : i32
    %112 = arith.index_cast %111 : i32 to index
    %113 = memref.load %arg1[%112] : memref<512xi32, #tpu.memory_space<smem>>
    %114 = arith.index_cast %113 : i32 to index
    %c0_32 = arith.constant 0 : index
    %115 = vector.load %arg3[%114, %c0_32] : memref<64x32xf32, #tpu.memory_space<vmem>>, vector<1x32xf32>
    %116 = vector.broadcast %110 : f32 to vector<1x32xf32>
    %117 = arith.mulf %116, %115 : vector<1x32xf32>
    %118 = arith.addf %107, %117 : vector<1x32xf32>
    %c2_i32_33 = arith.constant 2 : i32
    %119 = arith.addi %97, %c2_i32_33 : i32
    %120 = arith.index_cast %119 : i32 to index
    %121 = memref.load %arg2[%120] : memref<512xf32, #tpu.memory_space<smem>>
    %c2_i32_34 = arith.constant 2 : i32
    %122 = arith.addi %97, %c2_i32_34 : i32
    %123 = arith.index_cast %122 : i32 to index
    %124 = memref.load %arg1[%123] : memref<512xi32, #tpu.memory_space<smem>>
    %125 = arith.index_cast %124 : i32 to index
    %c0_35 = arith.constant 0 : index
    %126 = vector.load %arg3[%125, %c0_35] : memref<64x32xf32, #tpu.memory_space<vmem>>, vector<1x32xf32>
    %127 = vector.broadcast %121 : f32 to vector<1x32xf32>
    %128 = arith.mulf %127, %126 : vector<1x32xf32>
    %129 = arith.addf %118, %128 : vector<1x32xf32>
    %c3_i32_36 = arith.constant 3 : i32
    %130 = arith.addi %97, %c3_i32_36 : i32
    %131 = arith.index_cast %130 : i32 to index
    %132 = memref.load %arg2[%131] : memref<512xf32, #tpu.memory_space<smem>>
    %c3_i32_37 = arith.constant 3 : i32
    %133 = arith.addi %97, %c3_i32_37 : i32
    %134 = arith.index_cast %133 : i32 to index
    %135 = memref.load %arg1[%134] : memref<512xi32, #tpu.memory_space<smem>>
    %136 = arith.index_cast %135 : i32 to index
    %c0_38 = arith.constant 0 : index
    %137 = vector.load %arg3[%136, %c0_38] : memref<64x32xf32, #tpu.memory_space<vmem>>, vector<1x32xf32>
    %138 = vector.broadcast %132 : f32 to vector<1x32xf32>
    %139 = arith.mulf %138, %137 : vector<1x32xf32>
    %140 = arith.addf %129, %139 : vector<1x32xf32>
    %c0_39 = arith.constant 0 : index
    %c2 = arith.constant 2 : index
    %c0_40 = arith.constant 0 : index
    %141 = vector.load %arg4[%c0_39, %c2, %c0_40] : memref<1x16x32xf32, #tpu.memory_space<vmem>>, vector<1x1x32xf32>
    %142 = vector.shape_cast %141 : vector<1x1x32xf32> to vector<1x32xf32>
    %143 = vector.shape_cast %140 : vector<1x32xf32> to vector<1x1x32xf32>
    tpu.vector_store %arg4[%c0_39, %c2, %c0_40], %143 {strides = array<i32>} : memref<1x16x32xf32, #tpu.memory_space<vmem>>, vector<1x1x32xf32>,
    %c64_i32_41 = arith.constant 64 : i32
    %144 = arith.muli %arg0, %c64_i32_41 : i32
    %c12_i32 = arith.constant 12 : i32
    %145 = arith.addi %144, %c12_i32 : i32
    %c0_i32_42 = arith.constant 0 : i32
    %146 = arith.addi %145, %c0_i32_42 : i32
    %147 = arith.index_cast %146 : i32 to index
    %148 = memref.load %arg2[%147] : memref<512xf32, #tpu.memory_space<smem>>
    %c0_i32_43 = arith.constant 0 : i32
    %149 = arith.addi %145, %c0_i32_43 : i32
    %150 = arith.index_cast %149 : i32 to index
    %151 = memref.load %arg1[%150] : memref<512xi32, #tpu.memory_space<smem>>
    %152 = arith.index_cast %151 : i32 to index
    %c0_44 = arith.constant 0 : index
    %153 = vector.load %arg3[%152, %c0_44] : memref<64x32xf32, #tpu.memory_space<vmem>>, vector<1x32xf32>
    %154 = vector.broadcast %148 : f32 to vector<1x32xf32>
    %155 = arith.mulf %154, %153 : vector<1x32xf32>
    %c1_i32_45 = arith.constant 1 : i32
    %156 = arith.addi %145, %c1_i32_45 : i32
    %157 = arith.index_cast %156 : i32 to index
    %158 = memref.load %arg2[%157] : memref<512xf32, #tpu.memory_space<smem>>
    %c1_i32_46 = arith.constant 1 : i32
    %159 = arith.addi %145, %c1_i32_46 : i32
    %160 = arith.index_cast %159 : i32 to index
    %161 = memref.load %arg1[%160] : memref<512xi32, #tpu.memory_space<smem>>
    %162 = arith.index_cast %161 : i32 to index
    %c0_47 = arith.constant 0 : index
    %163 = vector.load %arg3[%162, %c0_47] : memref<64x32xf32, #tpu.memory_space<vmem>>, vector<1x32xf32>
    %164 = vector.broadcast %158 : f32 to vector<1x32xf32>
    %165 = arith.mulf %164, %163 : vector<1x32xf32>
    %166 = arith.addf %155, %165 : vector<1x32xf32>
    %c2_i32_48 = arith.constant 2 : i32
    %167 = arith.addi %145, %c2_i32_48 : i32
    %168 = arith.index_cast %167 : i32 to index
    %169 = memref.load %arg2[%168] : memref<512xf32, #tpu.memory_space<smem>>
    %c2_i32_49 = arith.constant 2 : i32
    %170 = arith.addi %145, %c2_i32_49 : i32
    %171 = arith.index_cast %170 : i32 to index
    %172 = memref.load %arg1[%171] : memref<512xi32, #tpu.memory_space<smem>>
    %173 = arith.index_cast %172 : i32 to index
    %c0_50 = arith.constant 0 : index
    %174 = vector.load %arg3[%173, %c0_50] : memref<64x32xf32, #tpu.memory_space<vmem>>, vector<1x32xf32>
    %175 = vector.broadcast %169 : f32 to vector<1x32xf32>
    %176 = arith.mulf %175, %174 : vector<1x32xf32>
    %177 = arith.addf %166, %176 : vector<1x32xf32>
    %c3_i32_51 = arith.constant 3 : i32
    %178 = arith.addi %145, %c3_i32_51 : i32
    %179 = arith.index_cast %178 : i32 to index
    %180 = memref.load %arg2[%179] : memref<512xf32, #tpu.memory_space<smem>>
    %c3_i32_52 = arith.constant 3 : i32
    %181 = arith.addi %145, %c3_i32_52 : i32
    %182 = arith.index_cast %181 : i32 to index
    %183 = memref.load %arg1[%182] : memref<512xi32, #tpu.memory_space<smem>>
    %184 = arith.index_cast %183 : i32 to index
    %c0_53 = arith.constant 0 : index
    %185 = vector.load %arg3[%184, %c0_53] : memref<64x32xf32, #tpu.memory_space<vmem>>, vector<1x32xf32>
    %186 = vector.broadcast %180 : f32 to vector<1x32xf32>
    %187 = arith.mulf %186, %185 : vector<1x32xf32>
    %188 = arith.addf %177, %187 : vector<1x32xf32>
    %c0_54 = arith.constant 0 : index
    %c3 = arith.constant 3 : index
    %c0_55 = arith.constant 0 : index
    %189 = vector.load %arg4[%c0_54, %c3, %c0_55] : memref<1x16x32xf32, #tpu.memory_space<vmem>>, vector<1x1x32xf32>
    %190 = vector.shape_cast %189 : vector<1x1x32xf32> to vector<1x32xf32>
    %191 = vector.shape_cast %188 : vector<1x32xf32> to vector<1x1x32xf32>
    tpu.vector_store %arg4[%c0_54, %c3, %c0_55], %191 {strides = array<i32>} : memref<1x16x32xf32, #tpu.memory_space<vmem>>, vector<1x1x32xf32>,
    %c64_i32_56 = arith.constant 64 : i32
    %192 = arith.muli %arg0, %c64_i32_56 : i32
    %c16_i32 = arith.constant 16 : i32
    %193 = arith.addi %192, %c16_i32 : i32
    %c0_i32_57 = arith.constant 0 : i32
    %194 = arith.addi %193, %c0_i32_57 : i32
    %195 = arith.index_cast %194 : i32 to index
    %196 = memref.load %arg2[%195] : memref<512xf32, #tpu.memory_space<smem>>
    %c0_i32_58 = arith.constant 0 : i32
    %197 = arith.addi %193, %c0_i32_58 : i32
    %198 = arith.index_cast %197 : i32 to index
    %199 = memref.load %arg1[%198] : memref<512xi32, #tpu.memory_space<smem>>
    %200 = arith.index_cast %199 : i32 to index
    %c0_59 = arith.constant 0 : index
    %201 = vector.load %arg3[%200, %c0_59] : memref<64x32xf32, #tpu.memory_space<vmem>>, vector<1x32xf32>
    %202 = vector.broadcast %196 : f32 to vector<1x32xf32>
    %203 = arith.mulf %202, %201 : vector<1x32xf32>
    %c1_i32_60 = arith.constant 1 : i32
    %204 = arith.addi %193, %c1_i32_60 : i32
    %205 = arith.index_cast %204 : i32 to index
    %206 = memref.load %arg2[%205] : memref<512xf32, #tpu.memory_space<smem>>
    %c1_i32_61 = arith.constant 1 : i32
    %207 = arith.addi %193, %c1_i32_61 : i32
    %208 = arith.index_cast %207 : i32 to index
    %209 = memref.load %arg1[%208] : memref<512xi32, #tpu.memory_space<smem>>
    %210 = arith.index_cast %209 : i32 to index
    %c0_62 = arith.constant 0 : index
    %211 = vector.load %arg3[%210, %c0_62] : memref<64x32xf32, #tpu.memory_space<vmem>>, vector<1x32xf32>
    %212 = vector.broadcast %206 : f32 to vector<1x32xf32>
    %213 = arith.mulf %212, %211 : vector<1x32xf32>
    %214 = arith.addf %203, %213 : vector<1x32xf32>
    %c2_i32_63 = arith.constant 2 : i32
    %215 = arith.addi %193, %c2_i32_63 : i32
    %216 = arith.index_cast %215 : i32 to index
    %217 = memref.load %arg2[%216] : memref<512xf32, #tpu.memory_space<smem>>
    %c2_i32_64 = arith.constant 2 : i32
    %218 = arith.addi %193, %c2_i32_64 : i32
    %219 = arith.index_cast %218 : i32 to index
    %220 = memref.load %arg1[%219] : memref<512xi32, #tpu.memory_space<smem>>
    %221 = arith.index_cast %220 : i32 to index
    %c0_65 = arith.constant 0 : index
    %222 = vector.load %arg3[%221, %c0_65] : memref<64x32xf32, #tpu.memory_space<vmem>>, vector<1x32xf32>
    %223 = vector.broadcast %217 : f32 to vector<1x32xf32>
    %224 = arith.mulf %223, %222 : vector<1x32xf32>
    %225 = arith.addf %214, %224 : vector<1x32xf32>
    %c3_i32_66 = arith.constant 3 : i32
    %226 = arith.addi %193, %c3_i32_66 : i32
    %227 = arith.index_cast %226 : i32 to index
    %228 = memref.load %arg2[%227] : memref<512xf32, #tpu.memory_space<smem>>
    %c3_i32_67 = arith.constant 3 : i32
    %229 = arith.addi %193, %c3_i32_67 : i32
    %230 = arith.index_cast %229 : i32 to index
    %231 = memref.load %arg1[%230] : memref<512xi32, #tpu.memory_space<smem>>
    %232 = arith.index_cast %231 : i32 to index
    %c0_68 = arith.constant 0 : index
    %233 = vector.load %arg3[%232, %c0_68] : memref<64x32xf32, #tpu.memory_space<vmem>>, vector<1x32xf32>
    %234 = vector.broadcast %228 : f32 to vector<1x32xf32>
    %235 = arith.mulf %234, %233 : vector<1x32xf32>
    %236 = arith.addf %225, %235 : vector<1x32xf32>
    %c0_69 = arith.constant 0 : index
    %c4 = arith.constant 4 : index
    %c0_70 = arith.constant 0 : index
    %237 = vector.load %arg4[%c0_69, %c4, %c0_70] : memref<1x16x32xf32, #tpu.memory_space<vmem>>, vector<1x1x32xf32>
    %238 = vector.shape_cast %237 : vector<1x1x32xf32> to vector<1x32xf32>
    %239 = vector.shape_cast %236 : vector<1x32xf32> to vector<1x1x32xf32>
    tpu.vector_store %arg4[%c0_69, %c4, %c0_70], %239 {strides = array<i32>} : memref<1x16x32xf32, #tpu.memory_space<vmem>>, vector<1x1x32xf32>,
    %c64_i32_71 = arith.constant 64 : i32
    %240 = arith.muli %arg0, %c64_i32_71 : i32
    %c20_i32 = arith.constant 20 : i32
    %241 = arith.addi %240, %c20_i32 : i32
    %c0_i32_72 = arith.constant 0 : i32
    %242 = arith.addi %241, %c0_i32_72 : i32
    %243 = arith.index_cast %242 : i32 to index
    %244 = memref.load %arg2[%243] : memref<512xf32, #tpu.memory_space<smem>>
    %c0_i32_73 = arith.constant 0 : i32
    %245 = arith.addi %241, %c0_i32_73 : i32
    %246 = arith.index_cast %245 : i32 to index
    %247 = memref.load %arg1[%246] : memref<512xi32, #tpu.memory_space<smem>>
    %248 = arith.index_cast %247 : i32 to index
    %c0_74 = arith.constant 0 : index
    %249 = vector.load %arg3[%248, %c0_74] : memref<64x32xf32, #tpu.memory_space<vmem>>, vector<1x32xf32>
    %250 = vector.broadcast %244 : f32 to vector<1x32xf32>
    %251 = arith.mulf %250, %249 : vector<1x32xf32>
    %c1_i32_75 = arith.constant 1 : i32
    %252 = arith.addi %241, %c1_i32_75 : i32
    %253 = arith.index_cast %252 : i32 to index
    %254 = memref.load %arg2[%253] : memref<512xf32, #tpu.memory_space<smem>>
    %c1_i32_76 = arith.constant 1 : i32
    %255 = arith.addi %241, %c1_i32_76 : i32
    %256 = arith.index_cast %255 : i32 to index
    %257 = memref.load %arg1[%256] : memref<512xi32, #tpu.memory_space<smem>>
    %258 = arith.index_cast %257 : i32 to index
    %c0_77 = arith.constant 0 : index
    %259 = vector.load %arg3[%258, %c0_77] : memref<64x32xf32, #tpu.memory_space<vmem>>, vector<1x32xf32>
    %260 = vector.broadcast %254 : f32 to vector<1x32xf32>
    %261 = arith.mulf %260, %259 : vector<1x32xf32>
    %262 = arith.addf %251, %261 : vector<1x32xf32>
    %c2_i32_78 = arith.constant 2 : i32
    %263 = arith.addi %241, %c2_i32_78 : i32
    %264 = arith.index_cast %263 : i32 to index
    %265 = memref.load %arg2[%264] : memref<512xf32, #tpu.memory_space<smem>>
    %c2_i32_79 = arith.constant 2 : i32
    %266 = arith.addi %241, %c2_i32_79 : i32
    %267 = arith.index_cast %266 : i32 to index
    %268 = memref.load %arg1[%267] : memref<512xi32, #tpu.memory_space<smem>>
    %269 = arith.index_cast %268 : i32 to index
    %c0_80 = arith.constant 0 : index
    %270 = vector.load %arg3[%269, %c0_80] : memref<64x32xf32, #tpu.memory_space<vmem>>, vector<1x32xf32>
    %271 = vector.broadcast %265 : f32 to vector<1x32xf32>
    %272 = arith.mulf %271, %270 : vector<1x32xf32>
    %273 = arith.addf %262, %272 : vector<1x32xf32>
    %c3_i32_81 = arith.constant 3 : i32
    %274 = arith.addi %241, %c3_i32_81 : i32
    %275 = arith.index_cast %274 : i32 to index
    %276 = memref.load %arg2[%275] : memref<512xf32, #tpu.memory_space<smem>>
    %c3_i32_82 = arith.constant 3 : i32
    %277 = arith.addi %241, %c3_i32_82 : i32
    %278 = arith.index_cast %277 : i32 to index
    %279 = memref.load %arg1[%278] : memref<512xi32, #tpu.memory_space<smem>>
    %280 = arith.index_cast %279 : i32 to index
    %c0_83 = arith.constant 0 : index
    %281 = vector.load %arg3[%280, %c0_83] : memref<64x32xf32, #tpu.memory_space<vmem>>, vector<1x32xf32>
    %282 = vector.broadcast %276 : f32 to vector<1x32xf32>
    %283 = arith.mulf %282, %281 : vector<1x32xf32>
    %284 = arith.addf %273, %283 : vector<1x32xf32>
    %c0_84 = arith.constant 0 : index
    %c5 = arith.constant 5 : index
    %c0_85 = arith.constant 0 : index
    %285 = vector.load %arg4[%c0_84, %c5, %c0_85] : memref<1x16x32xf32, #tpu.memory_space<vmem>>, vector<1x1x32xf32>
    %286 = vector.shape_cast %285 : vector<1x1x32xf32> to vector<1x32xf32>
    %287 = vector.shape_cast %284 : vector<1x32xf32> to vector<1x1x32xf32>
    tpu.vector_store %arg4[%c0_84, %c5, %c0_85], %287 {strides = array<i32>} : memref<1x16x32xf32, #tpu.memory_space<vmem>>, vector<1x1x32xf32>,
    %c64_i32_86 = arith.constant 64 : i32
    %288 = arith.muli %arg0, %c64_i32_86 : i32
    %c24_i32 = arith.constant 24 : i32
    %289 = arith.addi %288, %c24_i32 : i32
    %c0_i32_87 = arith.constant 0 : i32
    %290 = arith.addi %289, %c0_i32_87 : i32
    %291 = arith.index_cast %290 : i32 to index
    %292 = memref.load %arg2[%291] : memref<512xf32, #tpu.memory_space<smem>>
    %c0_i32_88 = arith.constant 0 : i32
    %293 = arith.addi %289, %c0_i32_88 : i32
    %294 = arith.index_cast %293 : i32 to index
    %295 = memref.load %arg1[%294] : memref<512xi32, #tpu.memory_space<smem>>
    %296 = arith.index_cast %295 : i32 to index
    %c0_89 = arith.constant 0 : index
    %297 = vector.load %arg3[%296, %c0_89] : memref<64x32xf32, #tpu.memory_space<vmem>>, vector<1x32xf32>
    %298 = vector.broadcast %292 : f32 to vector<1x32xf32>
    %299 = arith.mulf %298, %297 : vector<1x32xf32>
    %c1_i32_90 = arith.constant 1 : i32
    %300 = arith.addi %289, %c1_i32_90 : i32
    %301 = arith.index_cast %300 : i32 to index
    %302 = memref.load %arg2[%301] : memref<512xf32, #tpu.memory_space<smem>>
    %c1_i32_91 = arith.constant 1 : i32
    %303 = arith.addi %289, %c1_i32_91 : i32
    %304 = arith.index_cast %303 : i32 to index
    %305 = memref.load %arg1[%304] : memref<512xi32, #tpu.memory_space<smem>>
    %306 = arith.index_cast %305 : i32 to index
    %c0_92 = arith.constant 0 : index
    %307 = vector.load %arg3[%306, %c0_92] : memref<64x32xf32, #tpu.memory_space<vmem>>, vector<1x32xf32>
    %308 = vector.broadcast %302 : f32 to vector<1x32xf32>
    %309 = arith.mulf %308, %307 : vector<1x32xf32>
    %310 = arith.addf %299, %309 : vector<1x32xf32>
    %c2_i32_93 = arith.constant 2 : i32
    %311 = arith.addi %289, %c2_i32_93 : i32
    %312 = arith.index_cast %311 : i32 to index
    %313 = memref.load %arg2[%312] : memref<512xf32, #tpu.memory_space<smem>>
    %c2_i32_94 = arith.constant 2 : i32
    %314 = arith.addi %289, %c2_i32_94 : i32
    %315 = arith.index_cast %314 : i32 to index
    %316 = memref.load %arg1[%315] : memref<512xi32, #tpu.memory_space<smem>>
    %317 = arith.index_cast %316 : i32 to index
    %c0_95 = arith.constant 0 : index
    %318 = vector.load %arg3[%317, %c0_95] : memref<64x32xf32, #tpu.memory_space<vmem>>, vector<1x32xf32>
    %319 = vector.broadcast %313 : f32 to vector<1x32xf32>
    %320 = arith.mulf %319, %318 : vector<1x32xf32>
    %321 = arith.addf %310, %320 : vector<1x32xf32>
    %c3_i32_96 = arith.constant 3 : i32
    %322 = arith.addi %289, %c3_i32_96 : i32
    %323 = arith.index_cast %322 : i32 to index
    %324 = memref.load %arg2[%323] : memref<512xf32, #tpu.memory_space<smem>>
    %c3_i32_97 = arith.constant 3 : i32
    %325 = arith.addi %289, %c3_i32_97 : i32
    %326 = arith.index_cast %325 : i32 to index
    %327 = memref.load %arg1[%326] : memref<512xi32, #tpu.memory_space<smem>>
    %328 = arith.index_cast %327 : i32 to index
    %c0_98 = arith.constant 0 : index
    %329 = vector.load %arg3[%328, %c0_98] : memref<64x32xf32, #tpu.memory_space<vmem>>, vector<1x32xf32>
    %330 = vector.broadcast %324 : f32 to vector<1x32xf32>
    %331 = arith.mulf %330, %329 : vector<1x32xf32>
    %332 = arith.addf %321, %331 : vector<1x32xf32>
    %c0_99 = arith.constant 0 : index
    %c6 = arith.constant 6 : index
    %c0_100 = arith.constant 0 : index
    %333 = vector.load %arg4[%c0_99, %c6, %c0_100] : memref<1x16x32xf32, #tpu.memory_space<vmem>>, vector<1x1x32xf32>
    %334 = vector.shape_cast %333 : vector<1x1x32xf32> to vector<1x32xf32>
    %335 = vector.shape_cast %332 : vector<1x32xf32> to vector<1x1x32xf32>
    tpu.vector_store %arg4[%c0_99, %c6, %c0_100], %335 {strides = array<i32>} : memref<1x16x32xf32, #tpu.memory_space<vmem>>, vector<1x1x32xf32>,
    %c64_i32_101 = arith.constant 64 : i32
    %336 = arith.muli %arg0, %c64_i32_101 : i32
    %c28_i32 = arith.constant 28 : i32
    %337 = arith.addi %336, %c28_i32 : i32
    %c0_i32_102 = arith.constant 0 : i32
    %338 = arith.addi %337, %c0_i32_102 : i32
    %339 = arith.index_cast %338 : i32 to index
    %340 = memref.load %arg2[%339] : memref<512xf32, #tpu.memory_space<smem>>
    %c0_i32_103 = arith.constant 0 : i32
    %341 = arith.addi %337, %c0_i32_103 : i32
    %342 = arith.index_cast %341 : i32 to index
    %343 = memref.load %arg1[%342] : memref<512xi32, #tpu.memory_space<smem>>
    %344 = arith.index_cast %343 : i32 to index
    %c0_104 = arith.constant 0 : index
    %345 = vector.load %arg3[%344, %c0_104] : memref<64x32xf32, #tpu.memory_space<vmem>>, vector<1x32xf32>
    %346 = vector.broadcast %340 : f32 to vector<1x32xf32>
    %347 = arith.mulf %346, %345 : vector<1x32xf32>
    %c1_i32_105 = arith.constant 1 : i32
    %348 = arith.addi %337, %c1_i32_105 : i32
    %349 = arith.index_cast %348 : i32 to index
    %350 = memref.load %arg2[%349] : memref<512xf32, #tpu.memory_space<smem>>
    %c1_i32_106 = arith.constant 1 : i32
    %351 = arith.addi %337, %c1_i32_106 : i32
    %352 = arith.index_cast %351 : i32 to index
    %353 = memref.load %arg1[%352] : memref<512xi32, #tpu.memory_space<smem>>
    %354 = arith.index_cast %353 : i32 to index
    %c0_107 = arith.constant 0 : index
    %355 = vector.load %arg3[%354, %c0_107] : memref<64x32xf32, #tpu.memory_space<vmem>>, vector<1x32xf32>
    %356 = vector.broadcast %350 : f32 to vector<1x32xf32>
    %357 = arith.mulf %356, %355 : vector<1x32xf32>
    %358 = arith.addf %347, %357 : vector<1x32xf32>
    %c2_i32_108 = arith.constant 2 : i32
    %359 = arith.addi %337, %c2_i32_108 : i32
    %360 = arith.index_cast %359 : i32 to index
    %361 = memref.load %arg2[%360] : memref<512xf32, #tpu.memory_space<smem>>
    %c2_i32_109 = arith.constant 2 : i32
    %362 = arith.addi %337, %c2_i32_109 : i32
    %363 = arith.index_cast %362 : i32 to index
    %364 = memref.load %arg1[%363] : memref<512xi32, #tpu.memory_space<smem>>
    %365 = arith.index_cast %364 : i32 to index
    %c0_110 = arith.constant 0 : index
    %366 = vector.load %arg3[%365, %c0_110] : memref<64x32xf32, #tpu.memory_space<vmem>>, vector<1x32xf32>
    %367 = vector.broadcast %361 : f32 to vector<1x32xf32>
    %368 = arith.mulf %367, %366 : vector<1x32xf32>
    %369 = arith.addf %358, %368 : vector<1x32xf32>
    %c3_i32_111 = arith.constant 3 : i32
    %370 = arith.addi %337, %c3_i32_111 : i32
    %371 = arith.index_cast %370 : i32 to index
    %372 = memref.load %arg2[%371] : memref<512xf32, #tpu.memory_space<smem>>
    %c3_i32_112 = arith.constant 3 : i32
    %373 = arith.addi %337, %c3_i32_112 : i32
    %374 = arith.index_cast %373 : i32 to index
    %375 = memref.load %arg1[%374] : memref<512xi32, #tpu.memory_space<smem>>
    %376 = arith.index_cast %375 : i32 to index
    %c0_113 = arith.constant 0 : index
    %377 = vector.load %arg3[%376, %c0_113] : memref<64x32xf32, #tpu.memory_space<vmem>>, vector<1x32xf32>
    %378 = vector.broadcast %372 : f32 to vector<1x32xf32>
    %379 = arith.mulf %378, %377 : vector<1x32xf32>
    %380 = arith.addf %369, %379 : vector<1x32xf32>
    %c0_114 = arith.constant 0 : index
    %c7 = arith.constant 7 : index
    %c0_115 = arith.constant 0 : index
    %381 = vector.load %arg4[%c0_114, %c7, %c0_115] : memref<1x16x32xf32, #tpu.memory_space<vmem>>, vector<1x1x32xf32>
    %382 = vector.shape_cast %381 : vector<1x1x32xf32> to vector<1x32xf32>
    %383 = vector.shape_cast %380 : vector<1x32xf32> to vector<1x1x32xf32>
    tpu.vector_store %arg4[%c0_114, %c7, %c0_115], %383 {strides = array<i32>} : memref<1x16x32xf32, #tpu.memory_space<vmem>>, vector<1x1x32xf32>,
    %c64_i32_116 = arith.constant 64 : i32
    %384 = arith.muli %arg0, %c64_i32_116 : i32
    %c32_i32 = arith.constant 32 : i32
    %385 = arith.addi %384, %c32_i32 : i32
    %c0_i32_117 = arith.constant 0 : i32
    %386 = arith.addi %385, %c0_i32_117 : i32
    %387 = arith.index_cast %386 : i32 to index
    %388 = memref.load %arg2[%387] : memref<512xf32, #tpu.memory_space<smem>>
    %c0_i32_118 = arith.constant 0 : i32
    %389 = arith.addi %385, %c0_i32_118 : i32
    %390 = arith.index_cast %389 : i32 to index
    %391 = memref.load %arg1[%390] : memref<512xi32, #tpu.memory_space<smem>>
    %392 = arith.index_cast %391 : i32 to index
    %c0_119 = arith.constant 0 : index
    %393 = vector.load %arg3[%392, %c0_119] : memref<64x32xf32, #tpu.memory_space<vmem>>, vector<1x32xf32>
    %394 = vector.broadcast %388 : f32 to vector<1x32xf32>
    %395 = arith.mulf %394, %393 : vector<1x32xf32>
    %c1_i32_120 = arith.constant 1 : i32
    %396 = arith.addi %385, %c1_i32_120 : i32
    %397 = arith.index_cast %396 : i32 to index
    %398 = memref.load %arg2[%397] : memref<512xf32, #tpu.memory_space<smem>>
    %c1_i32_121 = arith.constant 1 : i32
    %399 = arith.addi %385, %c1_i32_121 : i32
    %400 = arith.index_cast %399 : i32 to index
    %401 = memref.load %arg1[%400] : memref<512xi32, #tpu.memory_space<smem>>
    %402 = arith.index_cast %401 : i32 to index
    %c0_122 = arith.constant 0 : index
    %403 = vector.load %arg3[%402, %c0_122] : memref<64x32xf32, #tpu.memory_space<vmem>>, vector<1x32xf32>
    %404 = vector.broadcast %398 : f32 to vector<1x32xf32>
    %405 = arith.mulf %404, %403 : vector<1x32xf32>
    %406 = arith.addf %395, %405 : vector<1x32xf32>
    %c2_i32_123 = arith.constant 2 : i32
    %407 = arith.addi %385, %c2_i32_123 : i32
    %408 = arith.index_cast %407 : i32 to index
    %409 = memref.load %arg2[%408] : memref<512xf32, #tpu.memory_space<smem>>
    %c2_i32_124 = arith.constant 2 : i32
    %410 = arith.addi %385, %c2_i32_124 : i32
    %411 = arith.index_cast %410 : i32 to index
    %412 = memref.load %arg1[%411] : memref<512xi32, #tpu.memory_space<smem>>
    %413 = arith.index_cast %412 : i32 to index
    %c0_125 = arith.constant 0 : index
    %414 = vector.load %arg3[%413, %c0_125] : memref<64x32xf32, #tpu.memory_space<vmem>>, vector<1x32xf32>
    %415 = vector.broadcast %409 : f32 to vector<1x32xf32>
    %416 = arith.mulf %415, %414 : vector<1x32xf32>
    %417 = arith.addf %406, %416 : vector<1x32xf32>
    %c3_i32_126 = arith.constant 3 : i32
    %418 = arith.addi %385, %c3_i32_126 : i32
    %419 = arith.index_cast %418 : i32 to index
    %420 = memref.load %arg2[%419] : memref<512xf32, #tpu.memory_space<smem>>
    %c3_i32_127 = arith.constant 3 : i32
    %421 = arith.addi %385, %c3_i32_127 : i32
    %422 = arith.index_cast %421 : i32 to index
    %423 = memref.load %arg1[%422] : memref<512xi32, #tpu.memory_space<smem>>
    %424 = arith.index_cast %423 : i32 to index
    %c0_128 = arith.constant 0 : index
    %425 = vector.load %arg3[%424, %c0_128] : memref<64x32xf32, #tpu.memory_space<vmem>>, vector<1x32xf32>
    %426 = vector.broadcast %420 : f32 to vector<1x32xf32>
    %427 = arith.mulf %426, %425 : vector<1x32xf32>
    %428 = arith.addf %417, %427 : vector<1x32xf32>
    %c0_129 = arith.constant 0 : index
    %c8 = arith.constant 8 : index
    %c0_130 = arith.constant 0 : index
    %429 = vector.load %arg4[%c0_129, %c8, %c0_130] : memref<1x16x32xf32, #tpu.memory_space<vmem>>, vector<1x1x32xf32>
    %430 = vector.shape_cast %429 : vector<1x1x32xf32> to vector<1x32xf32>
    %431 = vector.shape_cast %428 : vector<1x32xf32> to vector<1x1x32xf32>
    tpu.vector_store %arg4[%c0_129, %c8, %c0_130], %431 {strides = array<i32>} : memref<1x16x32xf32, #tpu.memory_space<vmem>>, vector<1x1x32xf32>,
    %c64_i32_131 = arith.constant 64 : i32
    %432 = arith.muli %arg0, %c64_i32_131 : i32
    %c36_i32 = arith.constant 36 : i32
    %433 = arith.addi %432, %c36_i32 : i32
    %c0_i32_132 = arith.constant 0 : i32
    %434 = arith.addi %433, %c0_i32_132 : i32
    %435 = arith.index_cast %434 : i32 to index
    %436 = memref.load %arg2[%435] : memref<512xf32, #tpu.memory_space<smem>>
    %c0_i32_133 = arith.constant 0 : i32
    %437 = arith.addi %433, %c0_i32_133 : i32
    %438 = arith.index_cast %437 : i32 to index
    %439 = memref.load %arg1[%438] : memref<512xi32, #tpu.memory_space<smem>>
    %440 = arith.index_cast %439 : i32 to index
    %c0_134 = arith.constant 0 : index
    %441 = vector.load %arg3[%440, %c0_134] : memref<64x32xf32, #tpu.memory_space<vmem>>, vector<1x32xf32>
    %442 = vector.broadcast %436 : f32 to vector<1x32xf32>
    %443 = arith.mulf %442, %441 : vector<1x32xf32>
    %c1_i32_135 = arith.constant 1 : i32
    %444 = arith.addi %433, %c1_i32_135 : i32
    %445 = arith.index_cast %444 : i32 to index
    %446 = memref.load %arg2[%445] : memref<512xf32, #tpu.memory_space<smem>>
    %c1_i32_136 = arith.constant 1 : i32
    %447 = arith.addi %433, %c1_i32_136 : i32
    %448 = arith.index_cast %447 : i32 to index
    %449 = memref.load %arg1[%448] : memref<512xi32, #tpu.memory_space<smem>>
    %450 = arith.index_cast %449 : i32 to index
    %c0_137 = arith.constant 0 : index
    %451 = vector.load %arg3[%450, %c0_137] : memref<64x32xf32, #tpu.memory_space<vmem>>, vector<1x32xf32>
    %452 = vector.broadcast %446 : f32 to vector<1x32xf32>
    %453 = arith.mulf %452, %451 : vector<1x32xf32>
    %454 = arith.addf %443, %453 : vector<1x32xf32>
    %c2_i32_138 = arith.constant 2 : i32
    %455 = arith.addi %433, %c2_i32_138 : i32
    %456 = arith.index_cast %455 : i32 to index
    %457 = memref.load %arg2[%456] : memref<512xf32, #tpu.memory_space<smem>>
    %c2_i32_139 = arith.constant 2 : i32
    %458 = arith.addi %433, %c2_i32_139 : i32
    %459 = arith.index_cast %458 : i32 to index
    %460 = memref.load %arg1[%459] : memref<512xi32, #tpu.memory_space<smem>>
    %461 = arith.index_cast %460 : i32 to index
    %c0_140 = arith.constant 0 : index
    %462 = vector.load %arg3[%461, %c0_140] : memref<64x32xf32, #tpu.memory_space<vmem>>, vector<1x32xf32>
    %463 = vector.broadcast %457 : f32 to vector<1x32xf32>
    %464 = arith.mulf %463, %462 : vector<1x32xf32>
    %465 = arith.addf %454, %464 : vector<1x32xf32>
    %c3_i32_141 = arith.constant 3 : i32
    %466 = arith.addi %433, %c3_i32_141 : i32
    %467 = arith.index_cast %466 : i32 to index
    %468 = memref.load %arg2[%467] : memref<512xf32, #tpu.memory_space<smem>>
    %c3_i32_142 = arith.constant 3 : i32
    %469 = arith.addi %433, %c3_i32_142 : i32
    %470 = arith.index_cast %469 : i32 to index
    %471 = memref.load %arg1[%470] : memref<512xi32, #tpu.memory_space<smem>>
    %472 = arith.index_cast %471 : i32 to index
    %c0_143 = arith.constant 0 : index
    %473 = vector.load %arg3[%472, %c0_143] : memref<64x32xf32, #tpu.memory_space<vmem>>, vector<1x32xf32>
    %474 = vector.broadcast %468 : f32 to vector<1x32xf32>
    %475 = arith.mulf %474, %473 : vector<1x32xf32>
    %476 = arith.addf %465, %475 : vector<1x32xf32>
    %c0_144 = arith.constant 0 : index
    %c9 = arith.constant 9 : index
    %c0_145 = arith.constant 0 : index
    %477 = vector.load %arg4[%c0_144, %c9, %c0_145] : memref<1x16x32xf32, #tpu.memory_space<vmem>>, vector<1x1x32xf32>
    %478 = vector.shape_cast %477 : vector<1x1x32xf32> to vector<1x32xf32>
    %479 = vector.shape_cast %476 : vector<1x32xf32> to vector<1x1x32xf32>
    tpu.vector_store %arg4[%c0_144, %c9, %c0_145], %479 {strides = array<i32>} : memref<1x16x32xf32, #tpu.memory_space<vmem>>, vector<1x1x32xf32>,
    %c64_i32_146 = arith.constant 64 : i32
    %480 = arith.muli %arg0, %c64_i32_146 : i32
    %c40_i32 = arith.constant 40 : i32
    %481 = arith.addi %480, %c40_i32 : i32
    %c0_i32_147 = arith.constant 0 : i32
    %482 = arith.addi %481, %c0_i32_147 : i32
    %483 = arith.index_cast %482 : i32 to index
    %484 = memref.load %arg2[%483] : memref<512xf32, #tpu.memory_space<smem>>
    %c0_i32_148 = arith.constant 0 : i32
    %485 = arith.addi %481, %c0_i32_148 : i32
    %486 = arith.index_cast %485 : i32 to index
    %487 = memref.load %arg1[%486] : memref<512xi32, #tpu.memory_space<smem>>
    %488 = arith.index_cast %487 : i32 to index
    %c0_149 = arith.constant 0 : index
    %489 = vector.load %arg3[%488, %c0_149] : memref<64x32xf32, #tpu.memory_space<vmem>>, vector<1x32xf32>
    %490 = vector.broadcast %484 : f32 to vector<1x32xf32>
    %491 = arith.mulf %490, %489 : vector<1x32xf32>
    %c1_i32_150 = arith.constant 1 : i32
    %492 = arith.addi %481, %c1_i32_150 : i32
    %493 = arith.index_cast %492 : i32 to index
    %494 = memref.load %arg2[%493] : memref<512xf32, #tpu.memory_space<smem>>
    %c1_i32_151 = arith.constant 1 : i32
    %495 = arith.addi %481, %c1_i32_151 : i32
    %496 = arith.index_cast %495 : i32 to index
    %497 = memref.load %arg1[%496] : memref<512xi32, #tpu.memory_space<smem>>
    %498 = arith.index_cast %497 : i32 to index
    %c0_152 = arith.constant 0 : index
    %499 = vector.load %arg3[%498, %c0_152] : memref<64x32xf32, #tpu.memory_space<vmem>>, vector<1x32xf32>
    %500 = vector.broadcast %494 : f32 to vector<1x32xf32>
    %501 = arith.mulf %500, %499 : vector<1x32xf32>
    %502 = arith.addf %491, %501 : vector<1x32xf32>
    %c2_i32_153 = arith.constant 2 : i32
    %503 = arith.addi %481, %c2_i32_153 : i32
    %504 = arith.index_cast %503 : i32 to index
    %505 = memref.load %arg2[%504] : memref<512xf32, #tpu.memory_space<smem>>
    %c2_i32_154 = arith.constant 2 : i32
    %506 = arith.addi %481, %c2_i32_154 : i32
    %507 = arith.index_cast %506 : i32 to index
    %508 = memref.load %arg1[%507] : memref<512xi32, #tpu.memory_space<smem>>
    %509 = arith.index_cast %508 : i32 to index
    %c0_155 = arith.constant 0 : index
    %510 = vector.load %arg3[%509, %c0_155] : memref<64x32xf32, #tpu.memory_space<vmem>>, vector<1x32xf32>
    %511 = vector.broadcast %505 : f32 to vector<1x32xf32>
    %512 = arith.mulf %511, %510 : vector<1x32xf32>
    %513 = arith.addf %502, %512 : vector<1x32xf32>
    %c3_i32_156 = arith.constant 3 : i32
    %514 = arith.addi %481, %c3_i32_156 : i32
    %515 = arith.index_cast %514 : i32 to index
    %516 = memref.load %arg2[%515] : memref<512xf32, #tpu.memory_space<smem>>
    %c3_i32_157 = arith.constant 3 : i32
    %517 = arith.addi %481, %c3_i32_157 : i32
    %518 = arith.index_cast %517 : i32 to index
    %519 = memref.load %arg1[%518] : memref<512xi32, #tpu.memory_space<smem>>
    %520 = arith.index_cast %519 : i32 to index
    %c0_158 = arith.constant 0 : index
    %521 = vector.load %arg3[%520, %c0_158] : memref<64x32xf32, #tpu.memory_space<vmem>>, vector<1x32xf32>
    %522 = vector.broadcast %516 : f32 to vector<1x32xf32>
    %523 = arith.mulf %522, %521 : vector<1x32xf32>
    %524 = arith.addf %513, %523 : vector<1x32xf32>
    %c0_159 = arith.constant 0 : index
    %c10 = arith.constant 10 : index
    %c0_160 = arith.constant 0 : index
    %525 = vector.load %arg4[%c0_159, %c10, %c0_160] : memref<1x16x32xf32, #tpu.memory_space<vmem>>, vector<1x1x32xf32>
    %526 = vector.shape_cast %525 : vector<1x1x32xf32> to vector<1x32xf32>
    %527 = vector.shape_cast %524 : vector<1x32xf32> to vector<1x1x32xf32>
    tpu.vector_store %arg4[%c0_159, %c10, %c0_160], %527 {strides = array<i32>} : memref<1x16x32xf32, #tpu.memory_space<vmem>>, vector<1x1x32xf32>,
    %c64_i32_161 = arith.constant 64 : i32
    %528 = arith.muli %arg0, %c64_i32_161 : i32
    %c44_i32 = arith.constant 44 : i32
    %529 = arith.addi %528, %c44_i32 : i32
    %c0_i32_162 = arith.constant 0 : i32
    %530 = arith.addi %529, %c0_i32_162 : i32
    %531 = arith.index_cast %530 : i32 to index
    %532 = memref.load %arg2[%531] : memref<512xf32, #tpu.memory_space<smem>>
    %c0_i32_163 = arith.constant 0 : i32
    %533 = arith.addi %529, %c0_i32_163 : i32
    %534 = arith.index_cast %533 : i32 to index
    %535 = memref.load %arg1[%534] : memref<512xi32, #tpu.memory_space<smem>>
    %536 = arith.index_cast %535 : i32 to index
    %c0_164 = arith.constant 0 : index
    %537 = vector.load %arg3[%536, %c0_164] : memref<64x32xf32, #tpu.memory_space<vmem>>, vector<1x32xf32>
    %538 = vector.broadcast %532 : f32 to vector<1x32xf32>
    %539 = arith.mulf %538, %537 : vector<1x32xf32>
    %c1_i32_165 = arith.constant 1 : i32
    %540 = arith.addi %529, %c1_i32_165 : i32
    %541 = arith.index_cast %540 : i32 to index
    %542 = memref.load %arg2[%541] : memref<512xf32, #tpu.memory_space<smem>>
    %c1_i32_166 = arith.constant 1 : i32
    %543 = arith.addi %529, %c1_i32_166 : i32
    %544 = arith.index_cast %543 : i32 to index
    %545 = memref.load %arg1[%544] : memref<512xi32, #tpu.memory_space<smem>>
    %546 = arith.index_cast %545 : i32 to index
    %c0_167 = arith.constant 0 : index
    %547 = vector.load %arg3[%546, %c0_167] : memref<64x32xf32, #tpu.memory_space<vmem>>, vector<1x32xf32>
    %548 = vector.broadcast %542 : f32 to vector<1x32xf32>
    %549 = arith.mulf %548, %547 : vector<1x32xf32>
    %550 = arith.addf %539, %549 : vector<1x32xf32>
    %c2_i32_168 = arith.constant 2 : i32
    %551 = arith.addi %529, %c2_i32_168 : i32
    %552 = arith.index_cast %551 : i32 to index
    %553 = memref.load %arg2[%552] : memref<512xf32, #tpu.memory_space<smem>>
    %c2_i32_169 = arith.constant 2 : i32
    %554 = arith.addi %529, %c2_i32_169 : i32
    %555 = arith.index_cast %554 : i32 to index
    %556 = memref.load %arg1[%555] : memref<512xi32, #tpu.memory_space<smem>>
    %557 = arith.index_cast %556 : i32 to index
    %c0_170 = arith.constant 0 : index
    %558 = vector.load %arg3[%557, %c0_170] : memref<64x32xf32, #tpu.memory_space<vmem>>, vector<1x32xf32>
    %559 = vector.broadcast %553 : f32 to vector<1x32xf32>
    %560 = arith.mulf %559, %558 : vector<1x32xf32>
    %561 = arith.addf %550, %560 : vector<1x32xf32>
    %c3_i32_171 = arith.constant 3 : i32
    %562 = arith.addi %529, %c3_i32_171 : i32
    %563 = arith.index_cast %562 : i32 to index
    %564 = memref.load %arg2[%563] : memref<512xf32, #tpu.memory_space<smem>>
    %c3_i32_172 = arith.constant 3 : i32
    %565 = arith.addi %529, %c3_i32_172 : i32
    %566 = arith.index_cast %565 : i32 to index
    %567 = memref.load %arg1[%566] : memref<512xi32, #tpu.memory_space<smem>>
    %568 = arith.index_cast %567 : i32 to index
    %c0_173 = arith.constant 0 : index
    %569 = vector.load %arg3[%568, %c0_173] : memref<64x32xf32, #tpu.memory_space<vmem>>, vector<1x32xf32>
    %570 = vector.broadcast %564 : f32 to vector<1x32xf32>
    %571 = arith.mulf %570, %569 : vector<1x32xf32>
    %572 = arith.addf %561, %571 : vector<1x32xf32>
    %c0_174 = arith.constant 0 : index
    %c11 = arith.constant 11 : index
    %c0_175 = arith.constant 0 : index
    %573 = vector.load %arg4[%c0_174, %c11, %c0_175] : memref<1x16x32xf32, #tpu.memory_space<vmem>>, vector<1x1x32xf32>
    %574 = vector.shape_cast %573 : vector<1x1x32xf32> to vector<1x32xf32>
    %575 = vector.shape_cast %572 : vector<1x32xf32> to vector<1x1x32xf32>
    tpu.vector_store %arg4[%c0_174, %c11, %c0_175], %575 {strides = array<i32>} : memref<1x16x32xf32, #tpu.memory_space<vmem>>, vector<1x1x32xf32>,
    %c64_i32_176 = arith.constant 64 : i32
    %576 = arith.muli %arg0, %c64_i32_176 : i32
    %c48_i32 = arith.constant 48 : i32
    %577 = arith.addi %576, %c48_i32 : i32
    %c0_i32_177 = arith.constant 0 : i32
    %578 = arith.addi %577, %c0_i32_177 : i32
    %579 = arith.index_cast %578 : i32 to index
    %580 = memref.load %arg2[%579] : memref<512xf32, #tpu.memory_space<smem>>
    %c0_i32_178 = arith.constant 0 : i32
    %581 = arith.addi %577, %c0_i32_178 : i32
    %582 = arith.index_cast %581 : i32 to index
    %583 = memref.load %arg1[%582] : memref<512xi32, #tpu.memory_space<smem>>
    %584 = arith.index_cast %583 : i32 to index
    %c0_179 = arith.constant 0 : index
    %585 = vector.load %arg3[%584, %c0_179] : memref<64x32xf32, #tpu.memory_space<vmem>>, vector<1x32xf32>
    %586 = vector.broadcast %580 : f32 to vector<1x32xf32>
    %587 = arith.mulf %586, %585 : vector<1x32xf32>
    %c1_i32_180 = arith.constant 1 : i32
    %588 = arith.addi %577, %c1_i32_180 : i32
    %589 = arith.index_cast %588 : i32 to index
    %590 = memref.load %arg2[%589] : memref<512xf32, #tpu.memory_space<smem>>
    %c1_i32_181 = arith.constant 1 : i32
    %591 = arith.addi %577, %c1_i32_181 : i32
    %592 = arith.index_cast %591 : i32 to index
    %593 = memref.load %arg1[%592] : memref<512xi32, #tpu.memory_space<smem>>
    %594 = arith.index_cast %593 : i32 to index
    %c0_182 = arith.constant 0 : index
    %595 = vector.load %arg3[%594, %c0_182] : memref<64x32xf32, #tpu.memory_space<vmem>>, vector<1x32xf32>
    %596 = vector.broadcast %590 : f32 to vector<1x32xf32>
    %597 = arith.mulf %596, %595 : vector<1x32xf32>
    %598 = arith.addf %587, %597 : vector<1x32xf32>
    %c2_i32_183 = arith.constant 2 : i32
    %599 = arith.addi %577, %c2_i32_183 : i32
    %600 = arith.index_cast %599 : i32 to index
    %601 = memref.load %arg2[%600] : memref<512xf32, #tpu.memory_space<smem>>
    %c2_i32_184 = arith.constant 2 : i32
    %602 = arith.addi %577, %c2_i32_184 : i32
    %603 = arith.index_cast %602 : i32 to index
    %604 = memref.load %arg1[%603] : memref<512xi32, #tpu.memory_space<smem>>
    %605 = arith.index_cast %604 : i32 to index
    %c0_185 = arith.constant 0 : index
    %606 = vector.load %arg3[%605, %c0_185] : memref<64x32xf32, #tpu.memory_space<vmem>>, vector<1x32xf32>
    %607 = vector.broadcast %601 : f32 to vector<1x32xf32>
    %608 = arith.mulf %607, %606 : vector<1x32xf32>
    %609 = arith.addf %598, %608 : vector<1x32xf32>
    %c3_i32_186 = arith.constant 3 : i32
    %610 = arith.addi %577, %c3_i32_186 : i32
    %611 = arith.index_cast %610 : i32 to index
    %612 = memref.load %arg2[%611] : memref<512xf32, #tpu.memory_space<smem>>
    %c3_i32_187 = arith.constant 3 : i32
    %613 = arith.addi %577, %c3_i32_187 : i32
    %614 = arith.index_cast %613 : i32 to index
    %615 = memref.load %arg1[%614] : memref<512xi32, #tpu.memory_space<smem>>
    %616 = arith.index_cast %615 : i32 to index
    %c0_188 = arith.constant 0 : index
    %617 = vector.load %arg3[%616, %c0_188] : memref<64x32xf32, #tpu.memory_space<vmem>>, vector<1x32xf32>
    %618 = vector.broadcast %612 : f32 to vector<1x32xf32>
    %619 = arith.mulf %618, %617 : vector<1x32xf32>
    %620 = arith.addf %609, %619 : vector<1x32xf32>
    %c0_189 = arith.constant 0 : index
    %c12 = arith.constant 12 : index
    %c0_190 = arith.constant 0 : index
    %621 = vector.load %arg4[%c0_189, %c12, %c0_190] : memref<1x16x32xf32, #tpu.memory_space<vmem>>, vector<1x1x32xf32>
    %622 = vector.shape_cast %621 : vector<1x1x32xf32> to vector<1x32xf32>
    %623 = vector.shape_cast %620 : vector<1x32xf32> to vector<1x1x32xf32>
    tpu.vector_store %arg4[%c0_189, %c12, %c0_190], %623 {strides = array<i32>} : memref<1x16x32xf32, #tpu.memory_space<vmem>>, vector<1x1x32xf32>,
    %c64_i32_191 = arith.constant 64 : i32
    %624 = arith.muli %arg0, %c64_i32_191 : i32
    %c52_i32 = arith.constant 52 : i32
    %625 = arith.addi %624, %c52_i32 : i32
    %c0_i32_192 = arith.constant 0 : i32
    %626 = arith.addi %625, %c0_i32_192 : i32
    %627 = arith.index_cast %626 : i32 to index
    %628 = memref.load %arg2[%627] : memref<512xf32, #tpu.memory_space<smem>>
    %c0_i32_193 = arith.constant 0 : i32
    %629 = arith.addi %625, %c0_i32_193 : i32
    %630 = arith.index_cast %629 : i32 to index
    %631 = memref.load %arg1[%630] : memref<512xi32, #tpu.memory_space<smem>>
    %632 = arith.index_cast %631 : i32 to index
    %c0_194 = arith.constant 0 : index
    %633 = vector.load %arg3[%632, %c0_194] : memref<64x32xf32, #tpu.memory_space<vmem>>, vector<1x32xf32>
    %634 = vector.broadcast %628 : f32 to vector<1x32xf32>
    %635 = arith.mulf %634, %633 : vector<1x32xf32>
    %c1_i32_195 = arith.constant 1 : i32
    %636 = arith.addi %625, %c1_i32_195 : i32
    %637 = arith.index_cast %636 : i32 to index
    %638 = memref.load %arg2[%637] : memref<512xf32, #tpu.memory_space<smem>>
    %c1_i32_196 = arith.constant 1 : i32
    %639 = arith.addi %625, %c1_i32_196 : i32
    %640 = arith.index_cast %639 : i32 to index
    %641 = memref.load %arg1[%640] : memref<512xi32, #tpu.memory_space<smem>>
    %642 = arith.index_cast %641 : i32 to index
    %c0_197 = arith.constant 0 : index
    %643 = vector.load %arg3[%642, %c0_197] : memref<64x32xf32, #tpu.memory_space<vmem>>, vector<1x32xf32>
    %644 = vector.broadcast %638 : f32 to vector<1x32xf32>
    %645 = arith.mulf %644, %643 : vector<1x32xf32>
    %646 = arith.addf %635, %645 : vector<1x32xf32>
    %c2_i32_198 = arith.constant 2 : i32
    %647 = arith.addi %625, %c2_i32_198 : i32
    %648 = arith.index_cast %647 : i32 to index
    %649 = memref.load %arg2[%648] : memref<512xf32, #tpu.memory_space<smem>>
    %c2_i32_199 = arith.constant 2 : i32
    %650 = arith.addi %625, %c2_i32_199 : i32
    %651 = arith.index_cast %650 : i32 to index
    %652 = memref.load %arg1[%651] : memref<512xi32, #tpu.memory_space<smem>>
    %653 = arith.index_cast %652 : i32 to index
    %c0_200 = arith.constant 0 : index
    %654 = vector.load %arg3[%653, %c0_200] : memref<64x32xf32, #tpu.memory_space<vmem>>, vector<1x32xf32>
    %655 = vector.broadcast %649 : f32 to vector<1x32xf32>
    %656 = arith.mulf %655, %654 : vector<1x32xf32>
    %657 = arith.addf %646, %656 : vector<1x32xf32>
    %c3_i32_201 = arith.constant 3 : i32
    %658 = arith.addi %625, %c3_i32_201 : i32
    %659 = arith.index_cast %658 : i32 to index
    %660 = memref.load %arg2[%659] : memref<512xf32, #tpu.memory_space<smem>>
    %c3_i32_202 = arith.constant 3 : i32
    %661 = arith.addi %625, %c3_i32_202 : i32
    %662 = arith.index_cast %661 : i32 to index
    %663 = memref.load %arg1[%662] : memref<512xi32, #tpu.memory_space<smem>>
    %664 = arith.index_cast %663 : i32 to index
    %c0_203 = arith.constant 0 : index
    %665 = vector.load %arg3[%664, %c0_203] : memref<64x32xf32, #tpu.memory_space<vmem>>, vector<1x32xf32>
    %666 = vector.broadcast %660 : f32 to vector<1x32xf32>
    %667 = arith.mulf %666, %665 : vector<1x32xf32>
    %668 = arith.addf %657, %667 : vector<1x32xf32>
    %c0_204 = arith.constant 0 : index
    %c13 = arith.constant 13 : index
    %c0_205 = arith.constant 0 : index
    %669 = vector.load %arg4[%c0_204, %c13, %c0_205] : memref<1x16x32xf32, #tpu.memory_space<vmem>>, vector<1x1x32xf32>
    %670 = vector.shape_cast %669 : vector<1x1x32xf32> to vector<1x32xf32>
    %671 = vector.shape_cast %668 : vector<1x32xf32> to vector<1x1x32xf32>
    tpu.vector_store %arg4[%c0_204, %c13, %c0_205], %671 {strides = array<i32>} : memref<1x16x32xf32, #tpu.memory_space<vmem>>, vector<1x1x32xf32>,
    %c64_i32_206 = arith.constant 64 : i32
    %672 = arith.muli %arg0, %c64_i32_206 : i32
    %c56_i32 = arith.constant 56 : i32
    %673 = arith.addi %672, %c56_i32 : i32
    %c0_i32_207 = arith.constant 0 : i32
    %674 = arith.addi %673, %c0_i32_207 : i32
    %675 = arith.index_cast %674 : i32 to index
    %676 = memref.load %arg2[%675] : memref<512xf32, #tpu.memory_space<smem>>
    %c0_i32_208 = arith.constant 0 : i32
    %677 = arith.addi %673, %c0_i32_208 : i32
    %678 = arith.index_cast %677 : i32 to index
    %679 = memref.load %arg1[%678] : memref<512xi32, #tpu.memory_space<smem>>
    %680 = arith.index_cast %679 : i32 to index
    %c0_209 = arith.constant 0 : index
    %681 = vector.load %arg3[%680, %c0_209] : memref<64x32xf32, #tpu.memory_space<vmem>>, vector<1x32xf32>
    %682 = vector.broadcast %676 : f32 to vector<1x32xf32>
    %683 = arith.mulf %682, %681 : vector<1x32xf32>
    %c1_i32_210 = arith.constant 1 : i32
    %684 = arith.addi %673, %c1_i32_210 : i32
    %685 = arith.index_cast %684 : i32 to index
    %686 = memref.load %arg2[%685] : memref<512xf32, #tpu.memory_space<smem>>
    %c1_i32_211 = arith.constant 1 : i32
    %687 = arith.addi %673, %c1_i32_211 : i32
    %688 = arith.index_cast %687 : i32 to index
    %689 = memref.load %arg1[%688] : memref<512xi32, #tpu.memory_space<smem>>
    %690 = arith.index_cast %689 : i32 to index
    %c0_212 = arith.constant 0 : index
    %691 = vector.load %arg3[%690, %c0_212] : memref<64x32xf32, #tpu.memory_space<vmem>>, vector<1x32xf32>
    %692 = vector.broadcast %686 : f32 to vector<1x32xf32>
    %693 = arith.mulf %692, %691 : vector<1x32xf32>
    %694 = arith.addf %683, %693 : vector<1x32xf32>
    %c2_i32_213 = arith.constant 2 : i32
    %695 = arith.addi %673, %c2_i32_213 : i32
    %696 = arith.index_cast %695 : i32 to index
    %697 = memref.load %arg2[%696] : memref<512xf32, #tpu.memory_space<smem>>
    %c2_i32_214 = arith.constant 2 : i32
    %698 = arith.addi %673, %c2_i32_214 : i32
    %699 = arith.index_cast %698 : i32 to index
    %700 = memref.load %arg1[%699] : memref<512xi32, #tpu.memory_space<smem>>
    %701 = arith.index_cast %700 : i32 to index
    %c0_215 = arith.constant 0 : index
    %702 = vector.load %arg3[%701, %c0_215] : memref<64x32xf32, #tpu.memory_space<vmem>>, vector<1x32xf32>
    %703 = vector.broadcast %697 : f32 to vector<1x32xf32>
    %704 = arith.mulf %703, %702 : vector<1x32xf32>
    %705 = arith.addf %694, %704 : vector<1x32xf32>
    %c3_i32_216 = arith.constant 3 : i32
    %706 = arith.addi %673, %c3_i32_216 : i32
    %707 = arith.index_cast %706 : i32 to index
    %708 = memref.load %arg2[%707] : memref<512xf32, #tpu.memory_space<smem>>
    %c3_i32_217 = arith.constant 3 : i32
    %709 = arith.addi %673, %c3_i32_217 : i32
    %710 = arith.index_cast %709 : i32 to index
    %711 = memref.load %arg1[%710] : memref<512xi32, #tpu.memory_space<smem>>
    %712 = arith.index_cast %711 : i32 to index
    %c0_218 = arith.constant 0 : index
    %713 = vector.load %arg3[%712, %c0_218] : memref<64x32xf32, #tpu.memory_space<vmem>>, vector<1x32xf32>
    %714 = vector.broadcast %708 : f32 to vector<1x32xf32>
    %715 = arith.mulf %714, %713 : vector<1x32xf32>
    %716 = arith.addf %705, %715 : vector<1x32xf32>
    %c0_219 = arith.constant 0 : index
    %c14 = arith.constant 14 : index
    %c0_220 = arith.constant 0 : index
    %717 = vector.load %arg4[%c0_219, %c14, %c0_220] : memref<1x16x32xf32, #tpu.memory_space<vmem>>, vector<1x1x32xf32>
    %718 = vector.shape_cast %717 : vector<1x1x32xf32> to vector<1x32xf32>
    %719 = vector.shape_cast %716 : vector<1x32xf32> to vector<1x1x32xf32>
    tpu.vector_store %arg4[%c0_219, %c14, %c0_220], %719 {strides = array<i32>} : memref<1x16x32xf32, #tpu.memory_space<vmem>>, vector<1x1x32xf32>,
    %c64_i32_221 = arith.constant 64 : i32
    %720 = arith.muli %arg0, %c64_i32_221 : i32
    %c60_i32 = arith.constant 60 : i32
    %721 = arith.addi %720, %c60_i32 : i32
    %c0_i32_222 = arith.constant 0 : i32
    %722 = arith.addi %721, %c0_i32_222 : i32
    %723 = arith.index_cast %722 : i32 to index
    %724 = memref.load %arg2[%723] : memref<512xf32, #tpu.memory_space<smem>>
    %c0_i32_223 = arith.constant 0 : i32
    %725 = arith.addi %721, %c0_i32_223 : i32
    %726 = arith.index_cast %725 : i32 to index
    %727 = memref.load %arg1[%726] : memref<512xi32, #tpu.memory_space<smem>>
    %728 = arith.index_cast %727 : i32 to index
    %c0_224 = arith.constant 0 : index
    %729 = vector.load %arg3[%728, %c0_224] : memref<64x32xf32, #tpu.memory_space<vmem>>, vector<1x32xf32>
    %730 = vector.broadcast %724 : f32 to vector<1x32xf32>
    %731 = arith.mulf %730, %729 : vector<1x32xf32>
    %c1_i32_225 = arith.constant 1 : i32
    %732 = arith.addi %721, %c1_i32_225 : i32
    %733 = arith.index_cast %732 : i32 to index
    %734 = memref.load %arg2[%733] : memref<512xf32, #tpu.memory_space<smem>>
    %c1_i32_226 = arith.constant 1 : i32
    %735 = arith.addi %721, %c1_i32_226 : i32
    %736 = arith.index_cast %735 : i32 to index
    %737 = memref.load %arg1[%736] : memref<512xi32, #tpu.memory_space<smem>>
    %738 = arith.index_cast %737 : i32 to index
    %c0_227 = arith.constant 0 : index
    %739 = vector.load %arg3[%738, %c0_227] : memref<64x32xf32, #tpu.memory_space<vmem>>, vector<1x32xf32>
    %740 = vector.broadcast %734 : f32 to vector<1x32xf32>
    %741 = arith.mulf %740, %739 : vector<1x32xf32>
    %742 = arith.addf %731, %741 : vector<1x32xf32>
    %c2_i32_228 = arith.constant 2 : i32
    %743 = arith.addi %721, %c2_i32_228 : i32
    %744 = arith.index_cast %743 : i32 to index
    %745 = memref.load %arg2[%744] : memref<512xf32, #tpu.memory_space<smem>>
    %c2_i32_229 = arith.constant 2 : i32
    %746 = arith.addi %721, %c2_i32_229 : i32
    %747 = arith.index_cast %746 : i32 to index
    %748 = memref.load %arg1[%747] : memref<512xi32, #tpu.memory_space<smem>>
    %749 = arith.index_cast %748 : i32 to index
    %c0_230 = arith.constant 0 : index
    %750 = vector.load %arg3[%749, %c0_230] : memref<64x32xf32, #tpu.memory_space<vmem>>, vector<1x32xf32>
    %751 = vector.broadcast %745 : f32 to vector<1x32xf32>
    %752 = arith.mulf %751, %750 : vector<1x32xf32>
    %753 = arith.addf %742, %752 : vector<1x32xf32>
    %c3_i32_231 = arith.constant 3 : i32
    %754 = arith.addi %721, %c3_i32_231 : i32
    %755 = arith.index_cast %754 : i32 to index
    %756 = memref.load %arg2[%755] : memref<512xf32, #tpu.memory_space<smem>>
    %c3_i32_232 = arith.constant 3 : i32
    %757 = arith.addi %721, %c3_i32_232 : i32
    %758 = arith.index_cast %757 : i32 to index
    %759 = memref.load %arg1[%758] : memref<512xi32, #tpu.memory_space<smem>>
    %760 = arith.index_cast %759 : i32 to index
    %c0_233 = arith.constant 0 : index
    %761 = vector.load %arg3[%760, %c0_233] : memref<64x32xf32, #tpu.memory_space<vmem>>, vector<1x32xf32>
    %762 = vector.broadcast %756 : f32 to vector<1x32xf32>
    %763 = arith.mulf %762, %761 : vector<1x32xf32>
    %764 = arith.addf %753, %763 : vector<1x32xf32>
    %c0_234 = arith.constant 0 : index
    %c15 = arith.constant 15 : index
    %c0_235 = arith.constant 0 : index
    %765 = vector.load %arg4[%c0_234, %c15, %c0_235] : memref<1x16x32xf32, #tpu.memory_space<vmem>>, vector<1x1x32xf32>
    %766 = vector.shape_cast %765 : vector<1x1x32xf32> to vector<1x32xf32>
    %767 = vector.shape_cast %764 : vector<1x32xf32> to vector<1x1x32xf32>
    tpu.vector_store %arg4[%c0_234, %c15, %c0_235], %767 {strides = array<i32>} : memref<1x16x32xf32, #tpu.memory_space<vmem>>, vector<1x1x32xf32>,
    return
  }
  func.func @transform_0(%arg0: i32, %arg1: memref<512xi32, #tpu.memory_space<smem>>) -> i32 {
    %c0_i32 = arith.constant 0 : i32
    %c0_i32_0 = arith.constant 0 : i32
    return %c0_i32 : i32
  }
  func.func @transform_1(%arg0: i32, %arg1: memref<512xi32, #tpu.memory_space<smem>>) -> (i32, i32) {
    %c0_i32 = arith.constant 0 : i32
    %c0_i32_0 = arith.constant 0 : i32
    %c0_i32_1 = arith.constant 0 : i32
    return %c0_i32, %c0_i32_0 : i32, i32
  }
  func.func @transform_2(%arg0: i32, %arg1: memref<512xi32, #tpu.memory_space<smem>>) -> (i32, i32, i32) {
    %c0_i32 = arith.constant 0 : i32
    %c0_i32_0 = arith.constant 0 : i32
    %c0_i32_1 = arith.constant 0 : i32
    return %arg0, %c0_i32, %c0_i32_0 : i32, i32, i32
  }
}

</mosaic_0001>

<llo_original>
// kernel: tracktor_forward.4
$region0: #{tracktor_forward.4}
  #allocation0 [shape = 'u32[]', space=smem, size = 0x4, offset = 0x4, fixed_abs, tag = 'smem constant byte address 0x4 - core index']
  #allocation1 [shape = 'u32[144,128]{1,0:T(1,128)}', space=vmem, size = 0x12000, scoped, tag = 'internal scratch']
  #allocation2 [shape = 'f32[128,16]{1,0:T(8,128)}', space=vmem, size = 0x10000, scoped, tag = 'scratch operand']
  %s0 = inlined_call_operand.vmem [shape: bf16[256,27], index: 0, kind: input, shape index: {}]
  %s1 = inlined_call_operand.vmem [shape: bf16[27,16], index: 1, kind: input, shape index: {}]
  %s2 = inlined_call_operand.vmem [shape: f32[1,16], index: 2, kind: input, shape index: {}]
  %s3 = inlined_call_operand.vmem [shape: bf16[256,16], index: 3, kind: output, shape index: {}]
  %s4 = sld [smem:[#allocation0]]
  $region53: #{tracktor_forward.4} parent=0
    _
  %s6 = ssub.s32 1, %s4
  %s7 = scalar_select 0, %s6, %s4
  loop: start=0, step=1, limit=4
  $region2: #{tracktor_forward.4} parent=0 // loop_pre_header
    _
  $region3: #{tracktor_forward.4} parent=0 // loop_header
    %s9 = sphi 0, %s13
    %p10 = scmp.ge.s32.totalorder %s9, 4
    %s16 = sphi 0, %s35
    %s17 = sphi 0, %s31
    %s18 = sphi 0, %s27
    %s19 = sphi 0, %s16
    %s20 = sphi 0, %s17
    %s21 = sphi 0, %s18
    %s22 = sphi 0, %s19
    %s23 = sphi 0, %s20
    %s24 = sphi 0, %s21
    %s40 = sphi 0, %s42
    %s43 = sphi 0, %s40
    %s44 = sphi 0, %s43
    %s60 = sphi 0, %s44
    %s68 = sphi 0, %s70
    %s71 = sphi 0, %s68
    %s72 = sphi 0, %s71
    %s88 = sphi 0, %s72
    %s94 = sphi 0, %s96
    %s97 = sphi 0, %s94
    %s98 = sphi 0, %s97
    %s114 = sphi 0, %s98
    %s122 = sphi 0, %s124
    %s125 = sphi 0, %s122
    %s126 = sphi 0, %s125
    %s142 = sphi 0, %s126
  $region4: #{tracktor_forward.4} parent=0 // loop_header_branch
    %12 = sbr.rel (%p10) target = $region8
  $region5: #{tracktor_forward.4} parent=0 // loop_body
    %s14 = ssub.s32 %s9, 1
    %s15 = ssub.s32 %s9, 2
    %s25 = sadd.s32 1, %s18
    %p26 = scmp.ge.s32.totalorder %s25, 1
    %s27 = scalar_select %p26, 0, %s25
    %s28 = sadd.s32 1, %s17
    %s29 = scalar_select %p26, %s28, %s17
    %p30 = scmp.ge.s32.totalorder %s29, 1
    %s31 = scalar_select %p30, 0, %s29
    %s32 = sadd.s32 1, %s16
    %s33 = scalar_select %p30, %s32, %s16
    %p34 = scmp.ge.s32.totalorder %s33, 2
    %s35 = scalar_select %p34, 0, %s33
    %s36 = ssub.s32 %s16, %s35
    %s37 = ssub.s32 %s18, %s27
    %s38 = sor.u32 %s36, %s37
    %p39 = scmp.eq.s32.totalorder %s38, 0
    %s41 = sadd.s32 %s40, 1
    %s42 = scalar_select %p39, %s40, %s41
    %p45 = pneg %p39
    %p46 = scmp.eq.s32.totalorder %s9, 1
    %p47 = por %p45, %p46
    %p48 = scmp.ne.s32.totalorder %s40, %s43
    %p49 = scmp.eq.s32.totalorder %s9, 0
    %p50 = por %p48, %p49
    %p51 = scmp.ne.s32.totalorder %s40, %s43
    %p52 = scmp.eq.s32.totalorder %s14, 1
    %p53 = por %p51, %p52
    %p54 = scmp.ne.s32.totalorder %s43, %s44
    %p55 = scmp.eq.s32.totalorder %s14, 0
    %p56 = por %p54, %p55
    %p57 = scmp.ne.s32.totalorder %s43, %s44
    %p58 = scmp.eq.s32.totalorder %s15, 1
    %p59 = por %p57, %p58
    %p61 = scmp.ne.s32.totalorder %s44, %s60
    %p62 = scmp.eq.s32.totalorder %s15, 0
    %p63 = por %p61, %p62
    %s64 = ssub.s32 %s18, %s27
    %s65 = ssub.s32 %s17, %s31
    %s66 = sor.u32 %s64, %s65
    %p67 = scmp.eq.s32.totalorder %s66, 0
    %s69 = sadd.s32 %s68, 1
    %s70 = scalar_select %p67, %s68, %s69
    %p73 = pneg %p67
    %p74 = scmp.eq.s32.totalorder %s9, 1
    %p75 = por %p73, %p74
    %p76 = scmp.ne.s32.totalorder %s68, %s71
    %p77 = scmp.eq.s32.totalorder %s9, 0
    %p78 = por %p76, %p77
    %p79 = scmp.ne.s32.totalorder %s68, %s71
    %p80 = scmp.eq.s32.totalorder %s14, 1
    %p81 = por %p79, %p80
    %p82 = scmp.ne.s32.totalorder %s71, %s72
    %p83 = scmp.eq.s32.totalorder %s14, 0
    %p84 = por %p82, %p83
    %p85 = scmp.ne.s32.totalorder %s71, %s72
    %p86 = scmp.eq.s32.totalorder %s15, 1
    %p87 = por %p85, %p86
    %p89 = scmp.ne.s32.totalorder %s72, %s88
    %p90 = scmp.eq.s32.totalorder %s15, 0
    %p91 = por %p89, %p90
    %s92 = ssub.s32 %s17, %s31
    %p93 = scmp.eq.s32.totalorder %s92, 0
    %s95 = sadd.s32 %s94, 1
    %s96 = scalar_select %p93, %s94, %s95
    %p99 = pneg %p93
    %p100 = scmp.eq.s32.totalorder %s9, 1
    %p101 = por %p99, %p100
    %p102 = scmp.ne.s32.totalorder %s94, %s97
    %p103 = scmp.eq.s32.totalorder %s9, 0
    %p104 = por %p102, %p103
    %p105 = scmp.ne.s32.totalorder %s94, %s97
    %p106 = scmp.eq.s32.totalorder %s14, 1
    %p107 = por %p105, %p106
    %p108 = scmp.ne.s32.totalorder %s97, %s98
    %p109 = scmp.eq.s32.totalorder %s14, 0
    %p110 = por %p108, %p109
    %p111 = scmp.ne.s32.totalorder %s97, %s98
    %p112 = scmp.eq.s32.totalorder %s15, 1
    %p113 = por %p111, %p112
    %p115 = scmp.ne.s32.totalorder %s98, %s114
    %p116 = scmp.eq.s32.totalorder %s15, 0
    %p117 = por %p115, %p116
    %s118 = ssub.s32 %s16, %s35
    %s119 = ssub.s32 %s17, %s31
    %s120 = sor.u32 %s118, %s119
    %p121 = scmp.eq.s32.totalorder %s120, 0
    %s123 = sadd.s32 %s122, 1
    %s124 = scalar_select %p121, %s122, %s123
    %p127 = pneg %p121
    %p128 = scmp.eq.s32.totalorder %s9, 1
    %p129 = por %p127, %p128
    %p130 = scmp.ne.s32.totalorder %s122, %s125
    %p131 = scmp.eq.s32.totalorder %s9, 0
    %p132 = por %p130, %p131
    %p133 = scmp.ne.s32.totalorder %s122, %s125
    %p134 = scmp.eq.s32.totalorder %s14, 1
    %p135 = por %p133, %p134
    %p136 = scmp.ne.s32.totalorder %s125, %s126
    %p137 = scmp.eq.s32.totalorder %s14, 0
    %p138 = por %p136, %p137
    %p139 = scmp.ne.s32.totalorder %s125, %s126
    %p140 = scmp.eq.s32.totalorder %s15, 1
    %p141 = por %p139, %p140
    %p143 = scmp.ne.s32.totalorder %s126, %s142
    %p144 = scmp.eq.s32.totalorder %s15, 0
    %p145 = por %p143, %p144
    %p146 = scmp.le.s32.totalorder 1, %s9
    %p147 = scmp.lt.s32.totalorder %s9, 3
    %p148 = pnand %p146, %p147
    %p149 = pneg %p148
    // Predicated region
    $region9: #{tracktor_forward.4} parent=5 // pred_check
      _
    $region10: #{tracktor_forward.4} parent=5 // pred_check_branch
      %151 = sbr.rel (%p148) target = $region12
    $region11: #{tracktor_forward.4} parent=5 // pred_region
      %s152 = ssub.s32 %s9, 1
      // Predicated region
      $region13: #{tracktor_forward.4} parent=11 // pred_check
        %p153 = pneg %p84
      $region14: #{tracktor_forward.4} parent=11 // pred_check_branch
        %155 = sbr.rel (%p153) target = $region16
      $region15: #{tracktor_forward.4} parent=11 // pred_region
        %s156 = smul.u32 4, %s21
        %p157 = scmp.lt.s32.totalorder %s156, 3
        %s158 = scalar_select %p157, %s156, 3
        %p159 = scmp.lt.s32.totalorder %s20, 0
        %s160 = scalar_select %p159, %s20, 0
        %s161 = sadd.s32 %s160, %s158
        %s162 = smul.addr %s161, 4
        %s163 = scalar_lea.vmem %s1, %s162
        %s164 = smul.u32 4, %s21
      $region16: #{tracktor_forward.4} parent=11 // pred_fallthru
        _
      // Predicated region
      $region17: #{tracktor_forward.4} parent=11 // pred_check
        %p165 = pneg %p110
      $region18: #{tracktor_forward.4} parent=11 // pred_check_branch
        %167 = sbr.rel (%p165) target = $region20
      $region19: #{tracktor_forward.4} parent=11 // pred_region
        %p168 = scmp.lt.s32.totalorder %s20, 0
        %s169 = scalar_select %p168, %s20, 0
        %s170 = scalar_lea.vmem %s2, %s169
      $region20: #{tracktor_forward.4} parent=11 // pred_fallthru
        _
    $region12: #{tracktor_forward.4} parent=5 // pred_fallthru
      _
    %p171 = scmp.lt.s32.totalorder %s9, 2
    // Predicated region
    $region21: #{tracktor_forward.4} parent=5 // pred_check
      %p172 = pneg %p171
    $region22: #{tracktor_forward.4} parent=5 // pred_check_branch
      %174 = sbr.rel (%p172) target = $region24
    $region23: #{tracktor_forward.4} parent=5 // pred_region
      // Predicated region
      $region25: #{tracktor_forward.4} parent=23 // pred_check
        %p175 = pneg %p50
      $region26: #{tracktor_forward.4} parent=23 // pred_check_branch
        %177 = sbr.rel (%p175) target = $region28
      $region27: #{tracktor_forward.4} parent=23 // pred_region
        %s178 = smul.u32 16, %s16
        %p179 = scmp.lt.s32.totalorder %s178, 31
        %s180 = scalar_select %p179, %s178, 31
        %p181 = scmp.lt.s32.totalorder %s18, 0
        %s182 = scalar_select %p181, %s18, 0
        %s183 = sadd.s32 %s182, %s180
        %s184 = smul.addr %s183, 4
        %s185 = scalar_lea.vmem %s0, %s184
        %s186 = smul.u32 16, %s16
      $region28: #{tracktor_forward.4} parent=23 // pred_fallthru
        _
    $region24: #{tracktor_forward.4} parent=5 // pred_fallthru
      _
    %p187 = scmp.le.s32.totalorder 1, %s9
    %p188 = scmp.lt.s32.totalorder %s9, 3
    %p189 = pnand %p187, %p188
    %p190 = pneg %p189
    // Predicated region
    $region29: #{tracktor_forward.4} parent=5 // pred_check
      _
    $region30: #{tracktor_forward.4} parent=5 // pred_check_branch
      %192 = sbr.rel (%p189) target = $region32
    $region31: #{tracktor_forward.4} parent=5 // pred_region
      %s193 = ssub.s32 %s9, 1
      %s194 = smul.u32 16, %s19
      %p195 = scmp.lt.s32.totalorder %s194, 31
      %s196 = scalar_select %p195, %s194, 31
      %p197 = scmp.lt.s32.totalorder %s21, 0
      %s198 = scalar_select %p197, %s21, 0
      %s199 = sadd.s32 %s198, %s196
      %s200 = smul.addr %s199, 4
      %s201 = scalar_lea.vmem %s0, %s200
      %p202 = pneg %p56
      %p203 = pneg %p53
      %s204 = smul.u32 4, %s21
      %p205 = scmp.lt.s32.totalorder %s204, 3
      %s206 = scalar_select %p205, %s204, 3
      %p207 = scmp.lt.s32.totalorder %s20, 0
      %s208 = scalar_select %p207, %s20, 0
      %s209 = sadd.s32 %s208, %s206
      %s210 = smul.addr %s209, 4
      %s211 = scalar_lea.vmem %s1, %s210
      %p212 = pneg %p84
      %p213 = pneg %p81
      %p214 = scmp.lt.s32.totalorder %s20, 0
      %s215 = scalar_select %p214, %s20, 0
      %s216 = scalar_lea.vmem %s2, %s215
      %p217 = pneg %p110
      %p218 = pneg %p107
      %p219 = pneg %p138
      %p220 = pneg %p135
      %s221 = smul.u32 16, %s19
      %p222 = scmp.lt.s32.totalorder %s221, 31
      %s223 = scalar_select %p222, %s221, 31
      %p224 = scmp.lt.s32.totalorder %s20, 0
      %s225 = scalar_select %p224, %s20, 0
      %s226 = sadd.s32 %s225, %s223
      %s227 = smul.addr %s226, 4
      %s228 = scalar_lea.vmem %s3, %s227
      %s229 = smul.u32 16, %s19
      %p230 = scmp.lt.s32.totalorder %s229, 31
      %s231 = scalar_select %p230, %s229, 31
      %p232 = scmp.lt.s32.totalorder %s21, 0
      %s233 = scalar_select %p232, %s21, 0
      %s234 = sadd.s32 %s233, %s231
      %s235 = smul.addr %s234, 4
      %s236 = scalar_lea.vmem %s0, %s235
      %s237 = smul.u32 16, %s19
      %s238 = smul.u32 4, %s21
      %p239 = scmp.lt.s32.totalorder %s238, 3
      %s240 = scalar_select %p239, %s238, 3
      %p241 = scmp.lt.s32.totalorder %s20, 0
      %s242 = scalar_select %p241, %s20, 0
      %s243 = sadd.s32 %s242, %s240
      %s244 = smul.addr %s243, 4
      %s245 = scalar_lea.vmem %s1, %s244
      %s246 = smul.u32 4, %s21
      %p247 = scmp.lt.s32.totalorder %s20, 0
      %s248 = scalar_select %p247, %s20, 0
      %s249 = scalar_lea.vmem %s2, %s248
      %s250 = smul.u32 16, %s19
      %p251 = scmp.lt.s32.totalorder %s250, 31
      %s252 = scalar_select %p251, %s250, 31
      %p253 = scmp.lt.s32.totalorder %s20, 0
      %s254 = scalar_select %p253, %s20, 0
      %s255 = sadd.s32 %s254, %s252
      %s256 = smul.addr %s255, 4
      %s257 = scalar_lea.vmem %s3, %s256
      %s258 = smul.u32 16, %s19
      %p260 = scmp.eq.s32.totalorder %s21, 0
      // Predicated region
      $region33: #{tracktor_forward.4} parent=31 // pred_check
        %p261 = pneg %p260
      $region34: #{tracktor_forward.4} parent=31 // pred_check_branch
        %263 = sbr.rel (%p261) target = $region36
      $region35: #{tracktor_forward.4} parent=31 // pred_region
        %vm264 = vcmask 130048
        %265 = vst.msk [vmem:[#allocation2] sm:$0xff] %vm264, 0.0
        %266 = vst.msk [vmem:[#allocation2 + $0x8] sm:$0xff] %vm264, 0.0
        %267 = vst.msk [vmem:[#allocation2 + $0x10] sm:$0xff] %vm264, 0.0
        %268 = vst.msk [vmem:[#allocation2 + $0x18] sm:$0xff] %vm264, 0.0
        %269 = vst.msk [vmem:[#allocation2 + $0x20] sm:$0xff] %vm264, 0.0
        %270 = vst.msk [vmem:[#allocation2 + $0x28] sm:$0xff] %vm264, 0.0
        %271 = vst.msk [vmem:[#allocation2 + $0x30] sm:$0xff] %vm264, 0.0
        %272 = vst.msk [vmem:[#allocation2 + $0x38] sm:$0xff] %vm264, 0.0
        %273 = vst.msk [vmem:[#allocation2 + $0x40] sm:$0xff] %vm264, 0.0
        %274 = vst.msk [vmem:[#allocation2 + $0x48] sm:$0xff] %vm264, 0.0
        %275 = vst.msk [vmem:[#allocation2 + $0x50] sm:$0xff] %vm264, 0.0
        %276 = vst.msk [vmem:[#allocation2 + $0x58] sm:$0xff] %vm264, 0.0
        %277 = vst.msk [vmem:[#allocation2 + $0x60] sm:$0xff] %vm264, 0.0
        %278 = vst.msk [vmem:[#allocation2 + $0x68] sm:$0xff] %vm264, 0.0
        %279 = vst.msk [vmem:[#allocation2 + $0x70] sm:$0xff] %vm264, 0.0
        %280 = vst.msk [vmem:[#allocation2 + $0x78] sm:$0xff] %vm264, 0.0
      $region36: #{tracktor_forward.4} parent=31 // pred_fallthru
        _
      %v281 = vld [vmem:[#allocation2] sm:$0xff]
      %v282 = vld [vmem:[#allocation2 + $0x8] sm:$0xff]
      %v283 = vld [vmem:[#allocation2 + $0x10] sm:$0xff]
      %v284 = vld [vmem:[#allocation2 + $0x18] sm:$0xff]
      %v285 = vld [vmem:[#allocation2 + $0x20] sm:$0xff]
      %v286 = vld [vmem:[#allocation2 + $0x28] sm:$0xff]
      %v287 = vld [vmem:[#allocation2 + $0x30] sm:$0xff]
      %v288 = vld [vmem:[#allocation2 + $0x38] sm:$0xff]
      %v289 = vld [vmem:[#allocation2 + $0x40] sm:$0xff]
      %v290 = vld [vmem:[#allocation2 + $0x48] sm:$0xff]
      %v291 = vld [vmem:[#allocation2 + $0x50] sm:$0xff]
      %v292 = vld [vmem:[#allocation2 + $0x58] sm:$0xff]
      %v293 = vld [vmem:[#allocation2 + $0x60] sm:$0xff]
      %v294 = vld [vmem:[#allocation2 + $0x68] sm:$0xff]
      %v295 = vld [vmem:[#allocation2 + $0x70] sm:$0xff]
      %v296 = vld [vmem:[#allocation2 + $0x78] sm:$0xff]
      %v297 = vld [vmem:[%s236] sm:$0xf]
      %v298 = vld [vmem:[%s236 + $0x4] sm:$0xf]
      %v299 = vld [vmem:[%s236 + $0x8] sm:$0xf]
      %v300 = vld [vmem:[%s236 + $0xc] sm:$0xf]
      %v301 = vld [vmem:[%s236 + $0x10] sm:$0xf]
      %v302 = vld [vmem:[%s236 + $0x14] sm:$0xf]
      %v303 = vld [vmem:[%s236 + $0x18] sm:$0xf]
      %v304 = vld [vmem:[%s236 + $0x1c] sm:$0xf]
      %v305 = vld [vmem:[%s236 + $0x20] sm:$0xf]
      %v306 = vld [vmem:[%s236 + $0x24] sm:$0xf]
      %v307 = vld [vmem:[%s236 + $0x28] sm:$0xf]
      %v308 = vld [vmem:[%s236 + $0x2c] sm:$0xf]
      %v309 = vld [vmem:[%s236 + $0x30] sm:$0xf]
      %v310 = vld [vmem:[%s236 + $0x34] sm:$0xf]
      %v311 = vld [vmem:[%s236 + $0x38] sm:$0xf]
      %v312 = vld [vmem:[%s236 + $0x3c] sm:$0xf]
      %v313 = vld [vmem:[%s245] sm:$0xf]
      %v314 = vld [vmem:[%s245 + $0x4] sm:$0xf]
      %v315 = vld [vmem:[%s245 + $0x8] sm:$0xf]
      %v316 = vld [vmem:[%s245 + $0xc] sm:$0x3]
      %v333 = vunpack.c.l.b16 %v297
      %v334 = vunpack.c.l.b16 %v298
      %v335 = vunpack.c.l.b16 %v299
      %v336 = vunpack.c.l.b16 %v300
      %v337 = vunpack.c.l.b16 %v301
      %v338 = vunpack.c.l.b16 %v302
      %v339 = vunpack.c.l.b16 %v303
      %v340 = vunpack.c.l.b16 %v304
      %v341 = vunpack.c.l.b16 %v305
      %v342 = vunpack.c.l.b16 %v306
      %v343 = vunpack.c.l.b16 %v307
      %v344 = vunpack.c.l.b16 %v308
      %v345 = vunpack.c.l.b16 %v309
      %v346 = vunpack.c.l.b16 %v310
      %v347 = vunpack.c.l.b16 %v311
      %v348 = vunpack.c.l.b16 %v312
      %v349 = vpack.c.b16 %v334, %v333
      %v350 = vpack.c.b16 %v336, %v335
      %v351 = vpack.c.b16 %v338, %v337
      %v352 = vpack.c.b16 %v340, %v339
      %v353 = vpack.c.b16 %v342, %v341
      %v354 = vpack.c.b16 %v344, %v343
      %v355 = vpack.c.b16 %v346, %v345
      %v356 = vpack.c.b16 %v348, %v347
      %v361 = vunpack.c.l.b16 %v313
      %v362 = vunpack.c.l.b16 %v314
      %v363 = vunpack.c.l.b16 %v315
      %v364 = vunpack.c.l.b16 %v316
      %v365 = vpack.c.b16 %v362, %v361
      %v366 = vpack.c.b16 %v364, %v363
      %vm368 = vcmask 220160
      %v370 = vsel %vm368, %v349, 0
      %v373 = vsel %vm368, %v350, 0
      %v376 = vsel %vm368, %v351, 0
      %v379 = vsel %vm368, %v352, 0
      %v382 = vsel %vm368, %v353, 0
      %v385 = vsel %vm368, %v354, 0
      %v388 = vsel %vm368, %v355, 0
      %v391 = vsel %vm368, %v356, 0
      %vm393 = vcmask 1044480
      %vm394 = vcmask 1045504
      %v395 = vsel %vm393, 4294967295, 65535
      %v396 = vsel %vm394, %v395, 0
      %v398 = vand.u32 %v366, %v396
      %400 = vmatprep.subr.bf16.mxu0 0
      %401 = vmatpush1.bf16.msra.mxu0 0
      %402 = vmatprep.subr.bf16.mxu0 0
      %403 = vmatpush1.bf16.msra.mxu0 0
      %404 = vmatprep.subr.bf16.mxu0 0
      %405 = vmatpush1.bf16.msra.mxu0 0
      %406 = vmatprep.subr.bf16.mxu0 0
      %407 = vmatpush1.bf16.msra.mxu0 0
      %408 = vmatprep.subr.bf16.mxu0 0
      %409 = vmatpush1.bf16.msra.mxu0 0
      %410 = vmatprep.subr.bf16.mxu0 0
      %411 = vmatpush1.bf16.msra.mxu0 0
      %412 = vmatprep.subr.bf16.mxu0 0
      %413 = vmatpush1.bf16.msra.mxu0 %v398
      %414 = vmatprep.subr.bf16.mxu0 0
      %415 = vmatpush1.bf16.msra.mxu0 %v365
      %416 = vmatprep.subr.bf16.mxu0 0
      %417 = vmatpush2.bf16.msra.mxu0 0
      %418 = vmatprep.subr.bf16.mxu0 0
      %419 = vmatpush2.bf16.msra.mxu0 0
      %420 = vmatprep.subr.bf16.mxu0 0
      %421 = vmatpush2.bf16.msra.mxu0 0
      %422 = vmatprep.subr.bf16.mxu0 0
      %423 = vmatpush2.bf16.msra.mxu0 0
      %424 = vmatprep.subr.bf16.mxu0 0
      %425 = vmatpush2.bf16.msra.mxu0 0
      %426 = vmatprep.subr.bf16.mxu0 0
      %427 = vmatpush2.bf16.msra.mxu0 0
      %428 = vmatprep.subr.bf16.mxu0 0
      %429 = vmatpush2.bf16.msra.mxu0 0
      %430 = vmatprep.subr.bf16.mxu0 0
      %431 = vmatpush2.bf16.msra.mxu0 0
      %432 = vmatprep.mubr.bf16.mxu0 0
      %433 = vmatmul.mubr.bf16.gmra.mxu0 %v370
      %v434 = vpop.f32.mrf.mxu0
      %v435 = vadd.f32 0.0, %v434
      %v436 = vpop.f32.mrf.mxu0
      %v437 = vpop.f32.mrf.mxu0
      %v438 = vadd.f32 0.0, %v437
      %v439 = vpop.f32.mrf.mxu0
      %440 = vmatprep.mubr.bf16.mxu0 0
      %441 = vmatmul.mubr.bf16.gmra.mxu0 %v373
      %v442 = vpop.f32.mrf.mxu0
      %v443 = vadd.f32 0.0, %v442
      %v444 = vpop.f32.mrf.mxu0
      %v445 = vpop.f32.mrf.mxu0
      %v446 = vadd.f32 0.0, %v445
      %v447 = vpop.f32.mrf.mxu0
      %448 = vmatprep.mubr.bf16.mxu0 0
      %449 = vmatmul.mubr.bf16.gmra.mxu0 %v376
      %v450 = vpop.f32.mrf.mxu0
      %v451 = vadd.f32 0.0, %v450
      %v452 = vpop.f32.mrf.mxu0
      %v453 = vpop.f32.mrf.mxu0
      %v454 = vadd.f32 0.0, %v453
      %v455 = vpop.f32.mrf.mxu0
      %456 = vmatprep.mubr.bf16.mxu0 0
      %457 = vmatmul.mubr.bf16.gmra.mxu0 %v379
      %v458 = vpop.f32.mrf.mxu0
      %v459 = vadd.f32 0.0, %v458
      %v460 = vpop.f32.mrf.mxu0
      %v461 = vpop.f32.mrf.mxu0
      %v462 = vadd.f32 0.0, %v461
      %v463 = vpop.f32.mrf.mxu0
      %464 = vmatprep.mubr.bf16.mxu0 0
      %465 = vmatmul.mubr.bf16.gmra.mxu0 %v382
      %v466 = vpop.f32.mrf.mxu0
      %v467 = vadd.f32 0.0, %v466
      %v468 = vpop.f32.mrf.mxu0
      %v469 = vpop.f32.mrf.mxu0
      %v470 = vadd.f32 0.0, %v469
      %v471 = vpop.f32.mrf.mxu0
      %472 = vmatprep.mubr.bf16.mxu0 0
      %473 = vmatmul.mubr.bf16.gmra.mxu0 %v385
      %v474 = vpop.f32.mrf.mxu0
      %v475 = vadd.f32 0.0, %v474
      %v476 = vpop.f32.mrf.mxu0
      %v477 = vpop.f32.mrf.mxu0
      %v478 = vadd.f32 0.0, %v477
      %v479 = vpop.f32.mrf.mxu0
      %480 = vmatprep.mubr.bf16.mxu0 0
      %481 = vmatmul.mubr.bf16.gmra.mxu0 %v388
      %v482 = vpop.f32.mrf.mxu0
      %v483 = vadd.f32 0.0, %v482
      %v484 = vpop.f32.mrf.mxu0
      %v485 = vpop.f32.mrf.mxu0
      %v486 = vadd.f32 0.0, %v485
      %v487 = vpop.f32.mrf.mxu0
      %488 = vmatprep.mubr.bf16.mxu0 0
      %489 = vmatmul.mubr.bf16.gmra.mxu0 %v391
      %v490 = vpop.f32.mrf.mxu0
      %v491 = vadd.f32 0.0, %v490
      %v492 = vpop.f32.mrf.mxu0
      %v493 = vpop.f32.mrf.mxu0
      %v494 = vadd.f32 0.0, %v493
      %v495 = vpop.f32.mrf.mxu0
      %496 = vdwg.mxu0
      %v497 = vadd.f32 %v281, %v435
      %v498 = vadd.f32 %v282, %v438
      %v499 = vadd.f32 %v283, %v443
      %v500 = vadd.f32 %v284, %v446
      %v501 = vadd.f32 %v285, %v451
      %v502 = vadd.f32 %v286, %v454
      %v503 = vadd.f32 %v287, %v459
      %v504 = vadd.f32 %v288, %v462
      %v505 = vadd.f32 %v289, %v467
      %v506 = vadd.f32 %v290, %v470
      %v507 = vadd.f32 %v291, %v475
      %v508 = vadd.f32 %v292, %v478
      %v509 = vadd.f32 %v293, %v483
      %v510 = vadd.f32 %v294, %v486
      %v511 = vadd.f32 %v295, %v491
      %v512 = vadd.f32 %v296, %v494
      %vm513 = vcmask 130048
      %514 = vst.msk [vmem:[#allocation2] sm:$0xff] %vm513, %v497
      %515 = vst.msk [vmem:[#allocation2 + $0x8] sm:$0xff] %vm513, %v498
      %516 = vst.msk [vmem:[#allocation2 + $0x10] sm:$0xff] %vm513, %v499
      %517 = vst.msk [vmem:[#allocation2 + $0x18] sm:$0xff] %vm513, %v500
      %518 = vst.msk [vmem:[#allocation2 + $0x20] sm:$0xff] %vm513, %v501
      %519 = vst.msk [vmem:[#allocation2 + $0x28] sm:$0xff] %vm513, %v502
      %520 = vst.msk [vmem:[#allocation2 + $0x30] sm:$0xff] %vm513, %v503
      %521 = vst.msk [vmem:[#allocation2 + $0x38] sm:$0xff] %vm513, %v504
      %522 = vst.msk [vmem:[#allocation2 + $0x40] sm:$0xff] %vm513, %v505
      %523 = vst.msk [vmem:[#allocation2 + $0x48] sm:$0xff] %vm513, %v506
      %524 = vst.msk [vmem:[#allocation2 + $0x50] sm:$0xff] %vm513, %v507
      %525 = vst.msk [vmem:[#allocation2 + $0x58] sm:$0xff] %vm513, %v508
      %526 = vst.msk [vmem:[#allocation2 + $0x60] sm:$0xff] %vm513, %v509
      %527 = vst.msk [vmem:[#allocation2 + $0x68] sm:$0xff] %vm513, %v510
      %528 = vst.msk [vmem:[#allocation2 + $0x70] sm:$0xff] %vm513, %v511
      %529 = vst.msk [vmem:[#allocation2 + $0x78] sm:$0xff] %vm513, %v512
      // Predicated region
      $region37: #{tracktor_forward.4} parent=31 // pred_check
        %p530 = pneg %p260
      $region38: #{tracktor_forward.4} parent=31 // pred_check_branch
        %532 = sbr.rel (%p530) target = $region40
      $region39: #{tracktor_forward.4} parent=31 // pred_region
        %v533 = vld [vmem:[#allocation2] sm:$0xff]
        %v534 = vld [vmem:[#allocation2 + $0x8] sm:$0xff]
        %v535 = vld [vmem:[#allocation2 + $0x10] sm:$0xff]
        %v536 = vld [vmem:[#allocation2 + $0x18] sm:$0xff]
        %v537 = vld [vmem:[#allocation2 + $0x20] sm:$0xff]
        %v538 = vld [vmem:[#allocation2 + $0x28] sm:$0xff]
        %v539 = vld [vmem:[#allocation2 + $0x30] sm:$0xff]
        %v540 = vld [vmem:[#allocation2 + $0x38] sm:$0xff]
        %v541 = vld [vmem:[#allocation2 + $0x40] sm:$0xff]
        %v542 = vld [vmem:[#allocation2 + $0x48] sm:$0xff]
        %v543 = vld [vmem:[#allocation2 + $0x50] sm:$0xff]
        %v544 = vld [vmem:[#allocation2 + $0x58] sm:$0xff]
        %v545 = vld [vmem:[#allocation2 + $0x60] sm:$0xff]
        %v546 = vld [vmem:[#allocation2 + $0x68] sm:$0xff]
        %v547 = vld [vmem:[#allocation2 + $0x70] sm:$0xff]
        %v548 = vld [vmem:[#allocation2 + $0x78] sm:$0xff]
        %v549 = vld [vmem:[%s249] sm:$0x1]
        %v551 = vlaneseq
        %v552 = vshrl.u32 %v551, 7
        %v553 = vsub.s32 0, %v552
        %v554 = vrot.slane %v549, %v553
        %v556 = vadd.f32 %v533, %v554
        %v557 = vadd.f32 %v534, %v554
        %v558 = vadd.f32 %v535, %v554
        %v559 = vadd.f32 %v536, %v554
        %v560 = vadd.f32 %v537, %v554
        %v561 = vadd.f32 %v538, %v554
        %v562 = vadd.f32 %v539, %v554
        %v563 = vadd.f32 %v540, %v554
        %v564 = vadd.f32 %v541, %v554
        %v565 = vadd.f32 %v542, %v554
        %v566 = vadd.f32 %v543, %v554
        %v567 = vadd.f32 %v544, %v554
        %v568 = vadd.f32 %v545, %v554
        %v569 = vadd.f32 %v546, %v554
        %v570 = vadd.f32 %v547, %v554
        %v571 = vadd.f32 %v548, %v554
        %v572 = vmax.f32 %v556, 0.0
        %v573 = vmax.f32 %v557, 0.0
        %v574 = vmax.f32 %v558, 0.0
        %v575 = vmax.f32 %v559, 0.0
        %v576 = vmax.f32 %v560, 0.0
        %v577 = vmax.f32 %v561, 0.0
        %v578 = vmax.f32 %v562, 0.0
        %v579 = vmax.f32 %v563, 0.0
        %v580 = vmax.f32 %v564, 0.0
        %v581 = vmax.f32 %v565, 0.0
        %v582 = vmax.f32 %v566, 0.0
        %v583 = vmax.f32 %v567, 0.0
        %v584 = vmax.f32 %v568, 0.0
        %v585 = vmax.f32 %v569, 0.0
        %v586 = vmax.f32 %v570, 0.0
        %v587 = vmax.f32 %v571, 0.0
        %v588 = vpack.c.bf16 %v573, %v572
        %v589 = vpack.c.bf16 %v575, %v574
        %v590 = vpack.c.bf16 %v577, %v576
        %v591 = vpack.c.bf16 %v579, %v578
        %v592 = vpack.c.bf16 %v581, %v580
        %v593 = vpack.c.bf16 %v583, %v582
        %v594 = vpack.c.bf16 %v585, %v584
        %v595 = vpack.c.bf16 %v587, %v586
        %v604 = vunpack.c.l.b16 %v588
        %v605 = vunpack.c.h.b16 %v588
        %v606 = vunpack.c.l.b16 %v589
        %v607 = vunpack.c.h.b16 %v589
        %v608 = vunpack.c.l.b16 %v590
        %v609 = vunpack.c.h.b16 %v590
        %v610 = vunpack.c.l.b16 %v591
        %v611 = vunpack.c.h.b16 %v591
        %v612 = vunpack.c.l.b16 %v592
        %v613 = vunpack.c.h.b16 %v592
        %v614 = vunpack.c.l.b16 %v593
        %v615 = vunpack.c.h.b16 %v593
        %v616 = vunpack.c.l.b16 %v594
        %v617 = vunpack.c.h.b16 %v594
        %v618 = vunpack.c.l.b16 %v595
        %v619 = vunpack.c.h.b16 %v595
        %v620 = vpack.c.b16 %v604, %v604
        %v621 = vpack.c.b16 %v605, %v605
        %v622 = vpack.c.b16 %v606, %v606
        %v623 = vpack.c.b16 %v607, %v607
        %v624 = vpack.c.b16 %v608, %v608
        %v625 = vpack.c.b16 %v609, %v609
        %v626 = vpack.c.b16 %v610, %v610
        %v627 = vpack.c.b16 %v611, %v611
        %v628 = vpack.c.b16 %v612, %v612
        %v629 = vpack.c.b16 %v613, %v613
        %v630 = vpack.c.b16 %v614, %v614
        %v631 = vpack.c.b16 %v615, %v615
        %v632 = vpack.c.b16 %v616, %v616
        %v633 = vpack.c.b16 %v617, %v617
        %v634 = vpack.c.b16 %v618, %v618
        %v635 = vpack.c.b16 %v619, %v619
        %vm652 = vcmask 125952
        %653 = vst.msk [vmem:[%s257] sm:$0xf] %vm652, %v620
        %654 = vst.msk [vmem:[%s257 + $0x4] sm:$0xf] %vm652, %v621
        %655 = vst.msk [vmem:[%s257 + $0x8] sm:$0xf] %vm652, %v622
        %656 = vst.msk [vmem:[%s257 + $0xc] sm:$0xf] %vm652, %v623
        %657 = vst.msk [vmem:[%s257 + $0x10] sm:$0xf] %vm652, %v624
        %658 = vst.msk [vmem:[%s257 + $0x14] sm:$0xf] %vm652, %v625
        %659 = vst.msk [vmem:[%s257 + $0x18] sm:$0xf] %vm652, %v626
        %660 = vst.msk [vmem:[%s257 + $0x1c] sm:$0xf] %vm652, %v627
        %661 = vst.msk [vmem:[%s257 + $0x20] sm:$0xf] %vm652, %v628
        %662 = vst.msk [vmem:[%s257 + $0x24] sm:$0xf] %vm652, %v629
        %663 = vst.msk [vmem:[%s257 + $0x28] sm:$0xf] %vm652, %v630
        %664 = vst.msk [vmem:[%s257 + $0x2c] sm:$0xf] %vm652, %v631
        %665 = vst.msk [vmem:[%s257 + $0x30] sm:$0xf] %vm652, %v632
        %666 = vst.msk [vmem:[%s257 + $0x34] sm:$0xf] %vm652, %v633
        %667 = vst.msk [vmem:[%s257 + $0x38] sm:$0xf] %vm652, %v634
        %668 = vst.msk [vmem:[%s257 + $0x3c] sm:$0xf] %vm652, %v635
      $region40: #{tracktor_forward.4} parent=31 // pred_fallthru
        _
      %s669 = smul.u32 16, %s19
      %p670 = scmp.lt.s32.totalorder %s669, 31
      %s671 = scalar_select %p670, %s669, 31
      %p672 = scmp.lt.s32.totalorder %s20, 0
      %s673 = scalar_select %p672, %s20, 0
      %s674 = sadd.s32 %s673, %s671
      %s675 = smul.addr %s674, 4
      %s676 = scalar_lea.vmem %s3, %s675
      // Predicated region
      $region41: #{tracktor_forward.4} parent=31 // pred_check
        %p677 = pneg %p135
      $region42: #{tracktor_forward.4} parent=31 // pred_check_branch
        %679 = sbr.rel (%p677) target = $region44
      $region43: #{tracktor_forward.4} parent=31 // pred_region
        %s680 = smul.u32 16, %s19
      $region44: #{tracktor_forward.4} parent=31 // pred_fallthru
        _
    $region32: #{tracktor_forward.4} parent=5 // pred_fallthru
      _
    %p681 = scmp.le.s32.totalorder 2, %s9
    // Predicated region
    $region45: #{tracktor_forward.4} parent=5 // pred_check
      %p682 = pneg %p681
    $region46: #{tracktor_forward.4} parent=5 // pred_check_branch
      %684 = sbr.rel (%p682) target = $region48
    $region47: #{tracktor_forward.4} parent=5 // pred_region
      %s685 = ssub.s32 %s9, 2
      // Predicated region
      $region49: #{tracktor_forward.4} parent=47 // pred_check
        %p686 = pneg %p141
      $region50: #{tracktor_forward.4} parent=47 // pred_check_branch
        %688 = sbr.rel (%p686) target = $region52
      $region51: #{tracktor_forward.4} parent=47 // pred_region
        %s689 = smul.u32 16, %s22
        %p690 = scmp.lt.s32.totalorder %s689, 31
        %s691 = scalar_select %p690, %s689, 31
        %p692 = scmp.lt.s32.totalorder %s23, 0
        %s693 = scalar_select %p692, %s23, 0
        %s694 = sadd.s32 %s693, %s691
        %s695 = smul.addr %s694, 4
        %s696 = scalar_lea.vmem %s3, %s695
      $region52: #{tracktor_forward.4} parent=47 // pred_fallthru
        _
    $region48: #{tracktor_forward.4} parent=5 // pred_fallthru
      _
  $region6: #{tracktor_forward.4} parent=0 // loop_footer
    %s13 = sadd.s32 1, %s9
  $region7: #{tracktor_forward.4} parent=0 // loop_footer_branch
    %8 = sbr.rel target = $region3
  $region8: #{tracktor_forward.4} parent=0 // loop_exit
    _

// kernel: tracktor_forward.5
$region0: #{tracktor_forward.5}
  #allocation0 [shape = 'u32[]', space=smem, size = 0x4, offset = 0x4, fixed_abs, tag = 'smem constant byte address 0x4 - core index']
  #allocation1 [shape = 'u32[144,128]{1,0:T(1,128)}', space=vmem, size = 0x12000, scoped, tag = 'internal scratch']
  #allocation2 [shape = 'f32[64,32]{1,0:T(8,128)}', space=vmem, size = 0x8000, scoped, tag = 'scratch operand']
  %s0 = inlined_call_operand.vmem [shape: bf16[64,144], index: 0, kind: input, shape index: {}]
  %s1 = inlined_call_operand.vmem [shape: bf16[144,32], index: 1, kind: input, shape index: {}]
  %s2 = inlined_call_operand.vmem [shape: f32[1,32], index: 2, kind: input, shape index: {}]
  %s3 = inlined_call_operand.vmem [shape: f32[64,32], index: 3, kind: output, shape index: {}]
  %s4 = sld [smem:[#allocation0]]
  $region30: #{tracktor_forward.5} parent=0
    _
  %s6 = ssub.s32 1, %s4
  %s7 = scalar_select 0, %s6, %s4
  // Predicated region
  $region2: #{tracktor_forward.5} parent=0 // pred_check
    _
  $region3: #{tracktor_forward.5} parent=0 // pred_check_branch
    %9 = sbr.rel (0) target = $region5
  $region4: #{tracktor_forward.5} parent=0 // pred_region
    _
  $region5: #{tracktor_forward.5} parent=0 // pred_fallthru
    _
  // Predicated region
  $region6: #{tracktor_forward.5} parent=0 // pred_check
    _
  $region7: #{tracktor_forward.5} parent=0 // pred_check_branch
    %11 = sbr.rel (0) target = $region9
  $region8: #{tracktor_forward.5} parent=0 // pred_region
    _
  $region9: #{tracktor_forward.5} parent=0 // pred_fallthru
    _
  // Predicated region
  $region10: #{tracktor_forward.5} parent=0 // pred_check
    _
  $region11: #{tracktor_forward.5} parent=0 // pred_check_branch
    %13 = sbr.rel (0) target = $region13
  $region12: #{tracktor_forward.5} parent=0 // pred_region
    _
  $region13: #{tracktor_forward.5} parent=0 // pred_fallthru
    _
  %p15 = scmp.eq.s32.totalorder 0, 0
  // Predicated region
  $region14: #{tracktor_forward.5} parent=0 // pred_check
    %p16 = pneg %p15
  $region15: #{tracktor_forward.5} parent=0 // pred_check_branch
    %18 = sbr.rel (%p16) target = $region17
  $region16: #{tracktor_forward.5} parent=0 // pred_region
    %vm19 = vcmask 261120
    %20 = vst.msk [vmem:[#allocation2] sm:$0xff] %vm19, 0.0
    %21 = vst.msk [vmem:[#allocation2 + $0x8] sm:$0xff] %vm19, 0.0
    %22 = vst.msk [vmem:[#allocation2 + $0x10] sm:$0xff] %vm19, 0.0
    %23 = vst.msk [vmem:[#allocation2 + $0x18] sm:$0xff] %vm19, 0.0
    %24 = vst.msk [vmem:[#allocation2 + $0x20] sm:$0xff] %vm19, 0.0
    %25 = vst.msk [vmem:[#allocation2 + $0x28] sm:$0xff] %vm19, 0.0
    %26 = vst.msk [vmem:[#allocation2 + $0x30] sm:$0xff] %vm19, 0.0
    %27 = vst.msk [vmem:[#allocation2 + $0x38] sm:$0xff] %vm19, 0.0
  $region17: #{tracktor_forward.5} parent=0 // pred_fallthru
    _
  %v28 = vld [vmem:[#allocation2] sm:$0xff]
  %v29 = vld [vmem:[#allocation2 + $0x8] sm:$0xff]
  %v30 = vld [vmem:[#allocation2 + $0x10] sm:$0xff]
  %v31 = vld [vmem:[#allocation2 + $0x18] sm:$0xff]
  %v32 = vld [vmem:[#allocation2 + $0x20] sm:$0xff]
  %v33 = vld [vmem:[#allocation2 + $0x28] sm:$0xff]
  %v34 = vld [vmem:[#allocation2 + $0x30] sm:$0xff]
  %v35 = vld [vmem:[#allocation2 + $0x38] sm:$0xff]
  %v36 = vld [vmem:[%s0] sm:$0xff]
  %v37 = vld [vmem:[%s0 + $0x8] sm:$0xff]
  %v38 = vld [vmem:[%s0 + $0x10] sm:$0xff]
  %v39 = vld [vmem:[%s0 + $0x18] sm:$0xff]
  %v40 = vld [vmem:[%s0 + $0x20] sm:$0xff]
  %v41 = vld [vmem:[%s0 + $0x28] sm:$0xff]
  %v42 = vld [vmem:[%s0 + $0x30] sm:$0xff]
  %v43 = vld [vmem:[%s0 + $0x38] sm:$0xff]
  %v44 = vld [vmem:[%s1] sm:$0xf]
  %v45 = vld [vmem:[%s1 + $0x4] sm:$0xf]
  %v46 = vld [vmem:[%s1 + $0x8] sm:$0xf]
  %v47 = vld [vmem:[%s1 + $0xc] sm:$0xf]
  %v48 = vld [vmem:[%s1 + $0x10] sm:$0xf]
  %v49 = vld [vmem:[%s1 + $0x14] sm:$0xf]
  %v50 = vld [vmem:[%s1 + $0x18] sm:$0xf]
  %v51 = vld [vmem:[%s1 + $0x1c] sm:$0xf]
  %v52 = vld [vmem:[%s1 + $0x20] sm:$0xf]
  %v53 = vld [vmem:[%s1 + $0x24] sm:$0xf]
  %v54 = vld [vmem:[%s1 + $0x28] sm:$0xf]
  %v55 = vld [vmem:[%s1 + $0x2c] sm:$0xf]
  %v56 = vld [vmem:[%s1 + $0x30] sm:$0xf]
  %v57 = vld [vmem:[%s1 + $0x34] sm:$0xf]
  %v58 = vld [vmem:[%s1 + $0x38] sm:$0xf]
  %v59 = vld [vmem:[%s1 + $0x3c] sm:$0xf]
  %v60 = vld [vmem:[%s1 + $0x40] sm:$0xf]
  %v61 = vld [vmem:[%s1 + $0x44] sm:$0xf]
  %v70 = vunpack.c.l.b16 %v36
  %v71 = vunpack.c.h.b16 %v36
  %v72 = vunpack.c.l.b16 %v37
  %v73 = vunpack.c.h.b16 %v37
  %v74 = vunpack.c.l.b16 %v38
  %v75 = vunpack.c.h.b16 %v38
  %v76 = vunpack.c.l.b16 %v39
  %v77 = vunpack.c.h.b16 %v39
  %v78 = vunpack.c.l.b16 %v40
  %v79 = vunpack.c.h.b16 %v40
  %v80 = vunpack.c.l.b16 %v41
  %v81 = vunpack.c.h.b16 %v41
  %v82 = vunpack.c.l.b16 %v42
  %v83 = vunpack.c.h.b16 %v42
  %v84 = vunpack.c.l.b16 %v43
  %v85 = vunpack.c.h.b16 %v43
  %v86 = vpack.c.b16 %v72, %v70
  %v87 = vpack.c.b16 %v73, %v71
  %v88 = vpack.c.b16 %v76, %v74
  %v89 = vpack.c.b16 %v77, %v75
  %v90 = vpack.c.b16 %v80, %v78
  %v91 = vpack.c.b16 %v81, %v79
  %v92 = vpack.c.b16 %v84, %v82
  %v93 = vpack.c.b16 %v85, %v83
  %v116 = vunpack.c.l.b16 %v44
  %v117 = vunpack.c.l.b16 %v45
  %v118 = vunpack.c.l.b16 %v46
  %v119 = vunpack.c.l.b16 %v47
  %v120 = vunpack.c.l.b16 %v48
  %v121 = vunpack.c.l.b16 %v49
  %v122 = vunpack.c.l.b16 %v50
  %v123 = vunpack.c.l.b16 %v51
  %v124 = vunpack.c.l.b16 %v52
  %v125 = vunpack.c.l.b16 %v53
  %v126 = vunpack.c.l.b16 %v54
  %v127 = vunpack.c.l.b16 %v55
  %v128 = vunpack.c.l.b16 %v56
  %v129 = vunpack.c.l.b16 %v57
  %v130 = vunpack.c.l.b16 %v58
  %v131 = vunpack.c.l.b16 %v59
  %v132 = vunpack.c.l.b16 %v60
  %v133 = vunpack.c.l.b16 %v61
  %v134 = vpack.c.b16 %v117, %v116
  %v135 = vpack.c.b16 %v119, %v118
  %v136 = vpack.c.b16 %v121, %v120
  %v137 = vpack.c.b16 %v123, %v122
  %v138 = vpack.c.b16 %v125, %v124
  %v139 = vpack.c.b16 %v127, %v126
  %v140 = vpack.c.b16 %v129, %v128
  %v141 = vpack.c.b16 %v131, %v130
  %v142 = vpack.c.b16 %v133, %v132
  %vm152 = vcmask 130048
  %v154 = vsel %vm152, %v87, 0
  %v157 = vsel %vm152, %v89, 0
  %v160 = vsel %vm152, %v91, 0
  %v163 = vsel %vm152, %v93, 0
  %165 = vmatprep.subr.bf16.mxu0 0
  %166 = vmatpush1.bf16.msra.mxu0 %v141
  %167 = vmatprep.subr.bf16.mxu0 0
  %168 = vmatpush1.bf16.msra.mxu0 %v140
  %169 = vmatprep.subr.bf16.mxu0 0
  %170 = vmatpush1.bf16.msra.mxu0 %v139
  %171 = vmatprep.subr.bf16.mxu0 0
  %172 = vmatpush1.bf16.msra.mxu0 %v138
  %173 = vmatprep.subr.bf16.mxu0 0
  %174 = vmatpush1.bf16.msra.mxu0 %v137
  %175 = vmatprep.subr.bf16.mxu0 0
  %176 = vmatpush1.bf16.msra.mxu0 %v136
  %177 = vmatprep.subr.bf16.mxu0 0
  %178 = vmatpush1.bf16.msra.mxu0 %v135
  %179 = vmatprep.subr.bf16.mxu0 0
  %180 = vmatpush1.bf16.msra.mxu0 %v134
  %181 = vmatprep.subr.bf16.mxu0 0
  %182 = vmatpush2.bf16.msra.mxu0 0
  %183 = vmatprep.subr.bf16.mxu0 0
  %184 = vmatpush2.bf16.msra.mxu0 0
  %185 = vmatprep.subr.bf16.mxu0 0
  %186 = vmatpush2.bf16.msra.mxu0 0
  %187 = vmatprep.subr.bf16.mxu0 0
  %188 = vmatpush2.bf16.msra.mxu0 0
  %189 = vmatprep.subr.bf16.mxu0 0
  %190 = vmatpush2.bf16.msra.mxu0 0
  %191 = vmatprep.subr.bf16.mxu0 0
  %192 = vmatpush2.bf16.msra.mxu0 0
  %193 = vmatprep.subr.bf16.mxu0 0
  %194 = vmatpush2.bf16.msra.mxu0 0
  %195 = vmatprep.subr.bf16.mxu0 0
  %196 = vmatpush2.bf16.msra.mxu0 %v142
  %197 = vmatprep.mubr.bf16.mxu0 %v154
  %198 = vmatmul.mubr.bf16.gmra.mxu0 %v86
  %v199 = vpop.f32.mrf.mxu0
  %v200 = vadd.f32 0.0, %v199
  %v201 = vpop.f32.mrf.mxu0
  %v202 = vpop.f32.mrf.mxu0
  %v203 = vadd.f32 0.0, %v202
  %v204 = vpop.f32.mrf.mxu0
  %205 = vmatprep.mubr.bf16.mxu0 %v157
  %206 = vmatmul.mubr.bf16.gmra.mxu0 %v88
  %v207 = vpop.f32.mrf.mxu0
  %v208 = vadd.f32 0.0, %v207
  %v209 = vpop.f32.mrf.mxu0
  %v210 = vpop.f32.mrf.mxu0
  %v211 = vadd.f32 0.0, %v210
  %v212 = vpop.f32.mrf.mxu0
  %213 = vmatprep.mubr.bf16.mxu0 %v160
  %214 = vmatmul.mubr.bf16.gmra.mxu0 %v90
  %v215 = vpop.f32.mrf.mxu0
  %v216 = vadd.f32 0.0, %v215
  %v217 = vpop.f32.mrf.mxu0
  %v218 = vpop.f32.mrf.mxu0
  %v219 = vadd.f32 0.0, %v218
  %v220 = vpop.f32.mrf.mxu0
  %221 = vmatprep.mubr.bf16.mxu0 %v163
  %222 = vmatmul.mubr.bf16.gmra.mxu0 %v92
  %v223 = vpop.f32.mrf.mxu0
  %v224 = vadd.f32 0.0, %v223
  %v225 = vpop.f32.mrf.mxu0
  %v226 = vpop.f32.mrf.mxu0
  %v227 = vadd.f32 0.0, %v226
  %v228 = vpop.f32.mrf.mxu0
  %229 = vdwg.mxu0
  %v230 = vadd.f32 %v28, %v200
  %v231 = vadd.f32 %v29, %v203
  %v232 = vadd.f32 %v30, %v208
  %v233 = vadd.f32 %v31, %v211
  %v234 = vadd.f32 %v32, %v216
  %v235 = vadd.f32 %v33, %v219
  %v236 = vadd.f32 %v34, %v224
  %v237 = vadd.f32 %v35, %v227
  %vm238 = vcmask 261120
  %239 = vst.msk [vmem:[#allocation2] sm:$0xff] %vm238, %v230
  %240 = vst.msk [vmem:[#allocation2 + $0x8] sm:$0xff] %vm238, %v231
  %241 = vst.msk [vmem:[#allocation2 + $0x10] sm:$0xff] %vm238, %v232
  %242 = vst.msk [vmem:[#allocation2 + $0x18] sm:$0xff] %vm238, %v233
  %243 = vst.msk [vmem:[#allocation2 + $0x20] sm:$0xff] %vm238, %v234
  %244 = vst.msk [vmem:[#allocation2 + $0x28] sm:$0xff] %vm238, %v235
  %245 = vst.msk [vmem:[#allocation2 + $0x30] sm:$0xff] %vm238, %v236
  %246 = vst.msk [vmem:[#allocation2 + $0x38] sm:$0xff] %vm238, %v237
  // Predicated region
  $region18: #{tracktor_forward.5} parent=0 // pred_check
    %p247 = pneg %p15
  $region19: #{tracktor_forward.5} parent=0 // pred_check_branch
    %249 = sbr.rel (%p247) target = $region21
  $region20: #{tracktor_forward.5} parent=0 // pred_region
    %v250 = vld [vmem:[#allocation2] sm:$0xff]
    %v251 = vld [vmem:[#allocation2 + $0x8] sm:$0xff]
    %v252 = vld [vmem:[#allocation2 + $0x10] sm:$0xff]
    %v253 = vld [vmem:[#allocation2 + $0x18] sm:$0xff]
    %v254 = vld [vmem:[#allocation2 + $0x20] sm:$0xff]
    %v255 = vld [vmem:[#allocation2 + $0x28] sm:$0xff]
    %v256 = vld [vmem:[#allocation2 + $0x30] sm:$0xff]
    %v257 = vld [vmem:[#allocation2 + $0x38] sm:$0xff]
    %v258 = vld [vmem:[%s2] sm:$0x1]
    %v260 = vlaneseq
    %v261 = vshrl.u32 %v260, 7
    %v262 = vsub.s32 0, %v261
    %v263 = vrot.slane %v258, %v262
    %v265 = vadd.f32 %v250, %v263
    %v266 = vadd.f32 %v251, %v263
    %v267 = vadd.f32 %v252, %v263
    %v268 = vadd.f32 %v253, %v263
    %v269 = vadd.f32 %v254, %v263
    %v270 = vadd.f32 %v255, %v263
    %v271 = vadd.f32 %v256, %v263
    %v272 = vadd.f32 %v257, %v263
    %v273 = vmax.f32 %v265, 0.0
    %v274 = vmax.f32 %v266, 0.0
    %v275 = vmax.f32 %v267, 0.0
    %v276 = vmax.f32 %v268, 0.0
    %v277 = vmax.f32 %v269, 0.0
    %v278 = vmax.f32 %v270, 0.0
    %v279 = vmax.f32 %v271, 0.0
    %v280 = vmax.f32 %v272, 0.0
    %281 = vst.msk [vmem:[%s3] sm:$0xff] %vm238, %v273
    %282 = vst.msk [vmem:[%s3 + $0x8] sm:$0xff] %vm238, %v274
    %283 = vst.msk [vmem:[%s3 + $0x10] sm:$0xff] %vm238, %v275
    %284 = vst.msk [vmem:[%s3 + $0x18] sm:$0xff] %vm238, %v276
    %285 = vst.msk [vmem:[%s3 + $0x20] sm:$0xff] %vm238, %v277
    %286 = vst.msk [vmem:[%s3 + $0x28] sm:$0xff] %vm238, %v278
    %287 = vst.msk [vmem:[%s3 + $0x30] sm:$0xff] %vm238, %v279
    %288 = vst.msk [vmem:[%s3 + $0x38] sm:$0xff] %vm238, %v280
  $region21: #{tracktor_forward.5} parent=0 // pred_fallthru
    _
  // Predicated region
  $region22: #{tracktor_forward.5} parent=0 // pred_check
    _
  $region23: #{tracktor_forward.5} parent=0 // pred_check_branch
    %290 = sbr.rel (0) target = $region25
  $region24: #{tracktor_forward.5} parent=0 // pred_region
    _
  $region25: #{tracktor_forward.5} parent=0 // pred_fallthru
    _
  // Predicated region
  $region26: #{tracktor_forward.5} parent=0 // pred_check
    _
  $region27: #{tracktor_forward.5} parent=0 // pred_check_branch
    %292 = sbr.rel (0) target = $region29
  $region28: #{tracktor_forward.5} parent=0 // pred_region
    _
  $region29: #{tracktor_forward.5} parent=0 // pred_fallthru
    _

// kernel: tracktor_forward.7
$region0: #{tracktor_forward.7}
  #allocation0 [shape = 'u32[]', space=smem, size = 0x4, offset = 0x4, fixed_abs, tag = 'smem constant byte address 0x4 - core index']
  #allocation1 [shape = 'u32[144,128]{1,0:T(1,128)}', space=vmem, size = 0x12000, scoped, tag = 'internal scratch']
  %s0 = inlined_call_operand.vmem [shape: bf16[8,512], index: 0, kind: input, shape index: {}]
  %s1 = inlined_call_operand.vmem [shape: f32[8,4], index: 1, kind: input, shape index: {}]
  %s2 = inlined_call_operand.vmem [shape: bf16[512,64], index: 2, kind: input, shape index: {}]
  %s3 = inlined_call_operand.vmem [shape: f32[1,64], index: 3, kind: input, shape index: {}]
  %s4 = inlined_call_operand.vmem [shape: bf16[64,6], index: 4, kind: input, shape index: {}]
  %s5 = inlined_call_operand.vmem [shape: f32[1,6], index: 5, kind: input, shape index: {}]
  %s6 = inlined_call_operand.vmem [shape: f32[4], index: 6, kind: input, shape index: {}]
  %s7 = inlined_call_operand.hbm [shape: f32[8,5], index: 7, kind: output, shape index: {}]
  %s8 = sld [smem:[#allocation0]]
  $region42: #{tracktor_forward.7} parent=0
    _
  %s10 = ssub.s32 1, %s8
  %s11 = scalar_select 0, %s10, %s8
  $region1: #{tracktor_forward.7} parent=0
    #allocation2 [shape = 'u8[512]{0}', space=smem, size = 0x200, scoped, tag = 'input window, operand 6, single buffered']
    #allocation3 [shape = 's32[1]{0}', space=sflag, size = 0x4, scoped, tag = 'scoped memory for tracktor_forward.7']
    #allocation4 [shape = 's32[1]{0}', space=sflag, size = 0x4, scoped, tag = 'scoped memory for tracktor_forward.7']
    #allocation5 [shape = 'u8[4096]{0}', space=vmem, size = 0x1000, scoped, tag = 'output window, operand 0, single buffered']
    %12 = vsyncpa [#allocation4], 0
    %13 = vsyncpa [#allocation3], 0
    // Predicated region
    $region2: #{tracktor_forward.7} parent=1 // pred_check
      _
    $region3: #{tracktor_forward.7} parent=1 // pred_check_branch
      %15 = sbr.rel (0) target = $region5
    $region4: #{tracktor_forward.7} parent=1 // pred_region
      _
    $region5: #{tracktor_forward.7} parent=1 // pred_fallthru
      _
    // Predicated region
    $region6: #{tracktor_forward.7} parent=1 // pred_check
      _
    $region7: #{tracktor_forward.7} parent=1 // pred_check_branch
      %17 = sbr.rel (0) target = $region9
    $region8: #{tracktor_forward.7} parent=1 // pred_region
      _
    $region9: #{tracktor_forward.7} parent=1 // pred_fallthru
      _
    // Predicated region
    $region10: #{tracktor_forward.7} parent=1 // pred_check
      _
    $region11: #{tracktor_forward.7} parent=1 // pred_check_branch
      %19 = sbr.rel (0) target = $region13
    $region12: #{tracktor_forward.7} parent=1 // pred_region
      _
    $region13: #{tracktor_forward.7} parent=1 // pred_fallthru
      _
    // Predicated region
    $region14: #{tracktor_forward.7} parent=1 // pred_check
      _
    $region15: #{tracktor_forward.7} parent=1 // pred_check_branch
      %21 = sbr.rel (0) target = $region17
    $region16: #{tracktor_forward.7} parent=1 // pred_region
      _
    $region17: #{tracktor_forward.7} parent=1 // pred_fallthru
      _
    // Predicated region
    $region18: #{tracktor_forward.7} parent=1 // pred_check
      _
    $region19: #{tracktor_forward.7} parent=1 // pred_check_branch
      %23 = sbr.rel (0) target = $region21
    $region20: #{tracktor_forward.7} parent=1 // pred_region
      _
    $region21: #{tracktor_forward.7} parent=1 // pred_fallthru
      _
    // Predicated region
    $region22: #{tracktor_forward.7} parent=1 // pred_check
      _
    $region23: #{tracktor_forward.7} parent=1 // pred_check_branch
      %25 = sbr.rel (0) target = $region25
    $region24: #{tracktor_forward.7} parent=1 // pred_region
      _
    $region25: #{tracktor_forward.7} parent=1 // pred_fallthru
      _
    // Predicated region
    $region26: #{tracktor_forward.7} parent=1 // pred_check
      _
    $region27: #{tracktor_forward.7} parent=1 // pred_check_branch
      %27 = sbr.rel (0) target = $region29
    $region28: #{tracktor_forward.7} parent=1 // pred_region
      %s29 = ssub.s32 16, 16
      %30 = vsyncadd [#allocation4], %s29
      %s32 = sshll.u32 %s6, 4
      %s33 = int_to_ptr.vmem [resolvable:$true] %s32
      %35 = dma.vmem_to_smem %s33, 16, [#allocation2], [#allocation4]
    $region29: #{tracktor_forward.7} parent=1 // pred_fallthru
      _
    // Predicated region
    $region30: #{tracktor_forward.7} parent=1 // pred_check
      _
    $region31: #{tracktor_forward.7} parent=1 // pred_check_branch
      %37 = sbr.rel (0) target = $region33
    $region32: #{tracktor_forward.7} parent=1 // pred_region
      %38 = dma.done [#allocation4], 16
    $region33: #{tracktor_forward.7} parent=1 // pred_fallthru
      _
    %39 = sfence
    %v41 = vld [vmem:[%s0] sm:$0xff]
    %v42 = vld [vmem:[%s0 + $0x8] sm:$0xff]
    %v43 = vld [vmem:[%s2] sm:$0xf]
    %v44 = vld [vmem:[%s2 + $0x4] sm:$0xf]
    %v45 = vld [vmem:[%s2 + $0x8] sm:$0xf]
    %v46 = vld [vmem:[%s2 + $0xc] sm:$0xf]
    %v47 = vld [vmem:[%s2 + $0x10] sm:$0xf]
    %v48 = vld [vmem:[%s2 + $0x14] sm:$0xf]
    %v49 = vld [vmem:[%s2 + $0x18] sm:$0xf]
    %v50 = vld [vmem:[%s2 + $0x1c] sm:$0xf]
    %v51 = vld [vmem:[%s2 + $0x20] sm:$0xf]
    %v52 = vld [vmem:[%s2 + $0x24] sm:$0xf]
    %v53 = vld [vmem:[%s2 + $0x28] sm:$0xf]
    %v54 = vld [vmem:[%s2 + $0x2c] sm:$0xf]
    %v55 = vld [vmem:[%s2 + $0x30] sm:$0xf]
    %v56 = vld [vmem:[%s2 + $0x34] sm:$0xf]
    %v57 = vld [vmem:[%s2 + $0x38] sm:$0xf]
    %v58 = vld [vmem:[%s2 + $0x3c] sm:$0xf]
    %v59 = vld [vmem:[%s2 + $0x40] sm:$0xf]
    %v60 = vld [vmem:[%s2 + $0x44] sm:$0xf]
    %v61 = vld [vmem:[%s2 + $0x48] sm:$0xf]
    %v62 = vld [vmem:[%s2 + $0x4c] sm:$0xf]
    %v63 = vld [vmem:[%s2 + $0x50] sm:$0xf]
    %v64 = vld [vmem:[%s2 + $0x54] sm:$0xf]
    %v65 = vld [vmem:[%s2 + $0x58] sm:$0xf]
    %v66 = vld [vmem:[%s2 + $0x5c] sm:$0xf]
    %v67 = vld [vmem:[%s2 + $0x60] sm:$0xf]
    %v68 = vld [vmem:[%s2 + $0x64] sm:$0xf]
    %v69 = vld [vmem:[%s2 + $0x68] sm:$0xf]
    %v70 = vld [vmem:[%s2 + $0x6c] sm:$0xf]
    %v71 = vld [vmem:[%s2 + $0x70] sm:$0xf]
    %v72 = vld [vmem:[%s2 + $0x74] sm:$0xf]
    %v73 = vld [vmem:[%s2 + $0x78] sm:$0xf]
    %v74 = vld [vmem:[%s2 + $0x7c] sm:$0xf]
    %v75 = vld [vmem:[%s2 + $0x80] sm:$0xf]
    %v76 = vld [vmem:[%s2 + $0x84] sm:$0xf]
    %v77 = vld [vmem:[%s2 + $0x88] sm:$0xf]
    %v78 = vld [vmem:[%s2 + $0x8c] sm:$0xf]
    %v79 = vld [vmem:[%s2 + $0x90] sm:$0xf]
    %v80 = vld [vmem:[%s2 + $0x94] sm:$0xf]
    %v81 = vld [vmem:[%s2 + $0x98] sm:$0xf]
    %v82 = vld [vmem:[%s2 + $0x9c] sm:$0xf]
    %v83 = vld [vmem:[%s2 + $0xa0] sm:$0xf]
    %v84 = vld [vmem:[%s2 + $0xa4] sm:$0xf]
    %v85 = vld [vmem:[%s2 + $0xa8] sm:$0xf]
    %v86 = vld [vmem:[%s2 + $0xac] sm:$0xf]
    %v87 = vld [vmem:[%s2 + $0xb0] sm:$0xf]
    %v88 = vld [vmem:[%s2 + $0xb4] sm:$0xf]
    %v89 = vld [vmem:[%s2 + $0xb8] sm:$0xf]
    %v90 = vld [vmem:[%s2 + $0xbc] sm:$0xf]
    %v91 = vld [vmem:[%s2 + $0xc0] sm:$0xf]
    %v92 = vld [vmem:[%s2 + $0xc4] sm:$0xf]
    %v93 = vld [vmem:[%s2 + $0xc8] sm:$0xf]
    %v94 = vld [vmem:[%s2 + $0xcc] sm:$0xf]
    %v95 = vld [vmem:[%s2 + $0xd0] sm:$0xf]
    %v96 = vld [vmem:[%s2 + $0xd4] sm:$0xf]
    %v97 = vld [vmem:[%s2 + $0xd8] sm:$0xf]
    %v98 = vld [vmem:[%s2 + $0xdc] sm:$0xf]
    %v99 = vld [vmem:[%s2 + $0xe0] sm:$0xf]
    %v100 = vld [vmem:[%s2 + $0xe4] sm:$0xf]
    %v101 = vld [vmem:[%s2 + $0xe8] sm:$0xf]
    %v102 = vld [vmem:[%s2 + $0xec] sm:$0xf]
    %v103 = vld [vmem:[%s2 + $0xf0] sm:$0xf]
    %v104 = vld [vmem:[%s2 + $0xf4] sm:$0xf]
    %v105 = vld [vmem:[%s2 + $0xf8] sm:$0xf]
    %v106 = vld [vmem:[%s2 + $0xfc] sm:$0xf]
    %v107 = vld [vmem:[%s3] sm:$0x1]
    %v109 = vlaneseq
    %v110 = vshrl.u32 %v109, 7
    %v111 = vsub.s32 0, %v110
    %v112 = vrot.slane %v107, %v111
    %v116 = vunpack.c.l.b16 %v41
    %v117 = vunpack.c.h.b16 %v41
    %v118 = vunpack.c.l.b16 %v42
    %v119 = vunpack.c.h.b16 %v42
    %v120 = vpack.c.b16 %v116, %v116
    %v121 = vpack.c.b16 %v117, %v117
    %v122 = vpack.c.b16 %v118, %v118
    %v123 = vpack.c.b16 %v119, %v119
    %v192 = vunpack.c.l.b16 %v43
    %v193 = vunpack.c.l.b16 %v44
    %v194 = vunpack.c.l.b16 %v45
    %v195 = vunpack.c.l.b16 %v46
    %v196 = vunpack.c.l.b16 %v47
    %v197 = vunpack.c.l.b16 %v48
    %v198 = vunpack.c.l.b16 %v49
    %v199 = vunpack.c.l.b16 %v50
    %v200 = vunpack.c.l.b16 %v51
    %v201 = vunpack.c.l.b16 %v52
    %v202 = vunpack.c.l.b16 %v53
    %v203 = vunpack.c.l.b16 %v54
    %v204 = vunpack.c.l.b16 %v55
    %v205 = vunpack.c.l.b16 %v56
    %v206 = vunpack.c.l.b16 %v57
    %v207 = vunpack.c.l.b16 %v58
    %v208 = vunpack.c.l.b16 %v59
    %v209 = vunpack.c.l.b16 %v60
    %v210 = vunpack.c.l.b16 %v61
    %v211 = vunpack.c.l.b16 %v62
    %v212 = vunpack.c.l.b16 %v63
    %v213 = vunpack.c.l.b16 %v64
    %v214 = vunpack.c.l.b16 %v65
    %v215 = vunpack.c.l.b16 %v66
    %v216 = vunpack.c.l.b16 %v67
    %v217 = vunpack.c.l.b16 %v68
    %v218 = vunpack.c.l.b16 %v69
    %v219 = vunpack.c.l.b16 %v70
    %v220 = vunpack.c.l.b16 %v71
    %v221 = vunpack.c.l.b16 %v72
    %v222 = vunpack.c.l.b16 %v73
    %v223 = vunpack.c.l.b16 %v74
    %v224 = vunpack.c.l.b16 %v75
    %v225 = vunpack.c.l.b16 %v76
    %v226 = vunpack.c.l.b16 %v77
    %v227 = vunpack.c.l.b16 %v78
    %v228 = vunpack.c.l.b16 %v79
    %v229 = vunpack.c.l.b16 %v80
    %v230 = vunpack.c.l.b16 %v81
    %v231 = vunpack.c.l.b16 %v82
    %v232 = vunpack.c.l.b16 %v83
    %v233 = vunpack.c.l.b16 %v84
    %v234 = vunpack.c.l.b16 %v85
    %v235 = vunpack.c.l.b16 %v86
    %v236 = vunpack.c.l.b16 %v87
    %v237 = vunpack.c.l.b16 %v88
    %v238 = vunpack.c.l.b16 %v89
    %v239 = vunpack.c.l.b16 %v90
    %v240 = vunpack.c.l.b16 %v91
    %v241 = vunpack.c.l.b16 %v92
    %v242 = vunpack.c.l.b16 %v93
    %v243 = vunpack.c.l.b16 %v94
    %v244 = vunpack.c.l.b16 %v95
    %v245 = vunpack.c.l.b16 %v96
    %v246 = vunpack.c.l.b16 %v97
    %v247 = vunpack.c.l.b16 %v98
    %v248 = vunpack.c.l.b16 %v99
    %v249 = vunpack.c.l.b16 %v100
    %v250 = vunpack.c.l.b16 %v101
    %v251 = vunpack.c.l.b16 %v102
    %v252 = vunpack.c.l.b16 %v103
    %v253 = vunpack.c.l.b16 %v104
    %v254 = vunpack.c.l.b16 %v105
    %v255 = vunpack.c.l.b16 %v106
    %v256 = vpack.c.b16 %v193, %v192
    %v257 = vpack.c.b16 %v195, %v194
    %v258 = vpack.c.b16 %v197, %v196
    %v259 = vpack.c.b16 %v199, %v198
    %v260 = vpack.c.b16 %v201, %v200
    %v261 = vpack.c.b16 %v203, %v202
    %v262 = vpack.c.b16 %v205, %v204
    %v263 = vpack.c.b16 %v207, %v206
    %v264 = vpack.c.b16 %v209, %v208
    %v265 = vpack.c.b16 %v211, %v210
    %v266 = vpack.c.b16 %v213, %v212
    %v267 = vpack.c.b16 %v215, %v214
    %v268 = vpack.c.b16 %v217, %v216
    %v269 = vpack.c.b16 %v219, %v218
    %v270 = vpack.c.b16 %v221, %v220
    %v271 = vpack.c.b16 %v223, %v222
    %v272 = vpack.c.b16 %v225, %v224
    %v273 = vpack.c.b16 %v227, %v226
    %v274 = vpack.c.b16 %v229, %v228
    %v275 = vpack.c.b16 %v231, %v230
    %v276 = vpack.c.b16 %v233, %v232
    %v277 = vpack.c.b16 %v235, %v234
    %v278 = vpack.c.b16 %v237, %v236
    %v279 = vpack.c.b16 %v239, %v238
    %v280 = vpack.c.b16 %v241, %v240
    %v281 = vpack.c.b16 %v243, %v242
    %v282 = vpack.c.b16 %v245, %v244
    %v283 = vpack.c.b16 %v247, %v246
    %v284 = vpack.c.b16 %v249, %v248
    %v285 = vpack.c.b16 %v251, %v250
    %v286 = vpack.c.b16 %v253, %v252
    %v287 = vpack.c.b16 %v255, %v254
    %320 = vmatprep.subr.bf16.mxu0 0
    %321 = vmatpush1.bf16.msra.mxu0 %v263
    %322 = vmatprep.subr.bf16.mxu0 0
    %323 = vmatpush1.bf16.msra.mxu0 %v262
    %324 = vmatprep.subr.bf16.mxu0 0
    %325 = vmatpush1.bf16.msra.mxu0 %v261
    %326 = vmatprep.subr.bf16.mxu0 0
    %327 = vmatpush1.bf16.msra.mxu0 %v260
    %328 = vmatprep.subr.bf16.mxu0 0
    %329 = vmatpush1.bf16.msra.mxu0 %v259
    %330 = vmatprep.subr.bf16.mxu0 0
    %331 = vmatpush1.bf16.msra.mxu0 %v258
    %332 = vmatprep.subr.bf16.mxu0 0
    %333 = vmatpush1.bf16.msra.mxu0 %v257
    %334 = vmatprep.subr.bf16.mxu0 0
    %335 = vmatpush1.bf16.msra.mxu0 %v256
    %336 = vmatprep.subr.bf16.mxu0 0
    %337 = vmatpush2.bf16.msra.mxu0 %v271
    %338 = vmatprep.subr.bf16.mxu0 0
    %339 = vmatpush2.bf16.msra.mxu0 %v270
    %340 = vmatprep.subr.bf16.mxu0 0
    %341 = vmatpush2.bf16.msra.mxu0 %v269
    %342 = vmatprep.subr.bf16.mxu0 0
    %343 = vmatpush2.bf16.msra.mxu0 %v268
    %344 = vmatprep.subr.bf16.mxu0 0
    %345 = vmatpush2.bf16.msra.mxu0 %v267
    %346 = vmatprep.subr.bf16.mxu0 0
    %347 = vmatpush2.bf16.msra.mxu0 %v266
    %348 = vmatprep.subr.bf16.mxu0 0
    %349 = vmatpush2.bf16.msra.mxu0 %v265
    %350 = vmatprep.subr.bf16.mxu0 0
    %351 = vmatpush2.bf16.msra.mxu0 %v264
    %352 = vmatprep.mubr.bf16.mxu0 %v121
    %353 = vmatmul.mubr.bf16.gmra.mxu0 %v120
    %v354 = vpop.f32.mrf.mxu0
    %v355 = vadd.f32 %v112, %v354
    %v356 = vpop.f32.mrf.mxu0
    %v357 = vpop.f32.mrf.mxu0
    %v358 = vpop.f32.mrf.mxu0
    %359 = vdwg.mxu0
    %360 = vmatprep.subr.bf16.mxu0 0
    %361 = vmatpush1.bf16.msra.mxu0 %v279
    %362 = vmatprep.subr.bf16.mxu0 0
    %363 = vmatpush1.bf16.msra.mxu0 %v278
    %364 = vmatprep.subr.bf16.mxu0 0
    %365 = vmatpush1.bf16.msra.mxu0 %v277
    %366 = vmatprep.subr.bf16.mxu0 0
    %367 = vmatpush1.bf16.msra.mxu0 %v276
    %368 = vmatprep.subr.bf16.mxu0 0
    %369 = vmatpush1.bf16.msra.mxu0 %v275
    %370 = vmatprep.subr.bf16.mxu0 0
    %371 = vmatpush1.bf16.msra.mxu0 %v274
    %372 = vmatprep.subr.bf16.mxu0 0
    %373 = vmatpush1.bf16.msra.mxu0 %v273
    %374 = vmatprep.subr.bf16.mxu0 0
    %375 = vmatpush1.bf16.msra.mxu0 %v272
    %376 = vmatprep.subr.bf16.mxu0 0
    %377 = vmatpush2.bf16.msra.mxu0 %v287
    %378 = vmatprep.subr.bf16.mxu0 0
    %379 = vmatpush2.bf16.msra.mxu0 %v286
    %380 = vmatprep.subr.bf16.mxu0 0
    %381 = vmatpush2.bf16.msra.mxu0 %v285
    %382 = vmatprep.subr.bf16.mxu0 0
    %383 = vmatpush2.bf16.msra.mxu0 %v284
    %384 = vmatprep.subr.bf16.mxu0 0
    %385 = vmatpush2.bf16.msra.mxu0 %v283
    %386 = vmatprep.subr.bf16.mxu0 0
    %387 = vmatpush2.bf16.msra.mxu0 %v282
    %388 = vmatprep.subr.bf16.mxu0 0
    %389 = vmatpush2.bf16.msra.mxu0 %v281
    %390 = vmatprep.subr.bf16.mxu0 0
    %391 = vmatpush2.bf16.msra.mxu0 %v280
    %392 = vmatprep.mubr.bf16.mxu0 %v123
    %393 = vmatmul.mubr.bf16.gmra.mxu0 %v122
    %v394 = vpop.f32.mrf.mxu0
    %v395 = vadd.f32 %v355, %v394
    %v396 = vpop.f32.mrf.mxu0
    %v397 = vpop.f32.mrf.mxu0
    %v398 = vpop.f32.mrf.mxu0
    %399 = vdwg.mxu0
    %v400 = vmax.f32 %v395, 0.0
    %v401 = vpack.c.bf16 %v400, %v400
    %v402 = vld [vmem:[%s4] sm:$0xf]
    %v403 = vld [vmem:[%s4 + $0x4] sm:$0xf]
    %v404 = vld [vmem:[%s4 + $0x8] sm:$0xf]
    %v405 = vld [vmem:[%s4 + $0xc] sm:$0xf]
    %v406 = vld [vmem:[%s4 + $0x10] sm:$0xf]
    %v407 = vld [vmem:[%s4 + $0x14] sm:$0xf]
    %v408 = vld [vmem:[%s4 + $0x18] sm:$0xf]
    %v409 = vld [vmem:[%s4 + $0x1c] sm:$0xf]
    %v410 = vld [vmem:[%s5] sm:$0x1]
    %v412 = vlaneseq
    %v413 = vshrl.u32 %v412, 7
    %v414 = vsub.s32 0, %v413
    %v415 = vrot.slane %v410, %v414
    %v425 = vunpack.c.l.b16 %v402
    %v426 = vunpack.c.l.b16 %v403
    %v427 = vunpack.c.l.b16 %v404
    %v428 = vunpack.c.l.b16 %v405
    %v429 = vunpack.c.l.b16 %v406
    %v430 = vunpack.c.l.b16 %v407
    %v431 = vunpack.c.l.b16 %v408
    %v432 = vunpack.c.l.b16 %v409
    %v433 = vpack.c.b16 %v426, %v425
    %v434 = vpack.c.b16 %v428, %v427
    %v435 = vpack.c.b16 %v430, %v429
    %v436 = vpack.c.b16 %v432, %v431
    %vm441 = vcmask 523264
    %v443 = vsel %vm441, %v401, 0
    %445 = vmatprep.subr.bf16.mxu0 0
    %446 = vmatpush1.bf16.msra.mxu0 0
    %447 = vmatprep.subr.bf16.mxu0 0
    %448 = vmatpush1.bf16.msra.mxu0 0
    %449 = vmatprep.subr.bf16.mxu0 0
    %450 = vmatpush1.bf16.msra.mxu0 0
    %451 = vmatprep.subr.bf16.mxu0 0
    %452 = vmatpush1.bf16.msra.mxu0 0
    %453 = vmatprep.subr.bf16.mxu0 0
    %454 = vmatpush1.bf16.msra.mxu0 %v436
    %455 = vmatprep.subr.bf16.mxu0 0
    %456 = vmatpush1.bf16.msra.mxu0 %v435
    %457 = vmatprep.subr.bf16.mxu0 0
    %458 = vmatpush1.bf16.msra.mxu0 %v434
    %459 = vmatprep.subr.bf16.mxu0 0
    %460 = vmatpush1.bf16.msra.mxu0 %v433
    %461 = vmatprep.subr.bf16.mxu0 0
    %462 = vmatpush2.bf16.msra.mxu0 0
    %463 = vmatprep.subr.bf16.mxu0 0
    %464 = vmatpush2.bf16.msra.mxu0 0
    %465 = vmatprep.subr.bf16.mxu0 0
    %466 = vmatpush2.bf16.msra.mxu0 0
    %467 = vmatprep.subr.bf16.mxu0 0
    %468 = vmatpush2.bf16.msra.mxu0 0
    %469 = vmatprep.subr.bf16.mxu0 0
    %470 = vmatpush2.bf16.msra.mxu0 0
    %471 = vmatprep.subr.bf16.mxu0 0
    %472 = vmatpush2.bf16.msra.mxu0 0
    %473 = vmatprep.subr.bf16.mxu0 0
    %474 = vmatpush2.bf16.msra.mxu0 0
    %475 = vmatprep.subr.bf16.mxu0 0
    %476 = vmatpush2.bf16.msra.mxu0 0
    %477 = vmatprep.mubr.bf16.mxu0 0
    %478 = vmatmul.mubr.bf16.gmra.mxu0 %v443
    %v479 = vpop.f32.mrf.mxu0
    %v480 = vadd.f32 %v415, %v479
    %v481 = vpop.f32.mrf.mxu0
    %v482 = vpop.f32.mrf.mxu0
    %v483 = vpop.f32.mrf.mxu0
    %484 = vdwg.mxu0
    %vm485 = vcmask 15360
    %v486 = vsel %vm485, %v480, -inf
    %487 = vmax.xlane.f32.xlu0 %v486
    %v488 = vpop.xlane.xlu0 %487
    %v489 = vsub.f32 %v480, %v488
    %v490 = vmul.f32 %v489, 1.442695
    %v491 = vpow.pop %v490
    %v492 = vsel %vm485, %v491, 0.0
    %493 = vadd.xlane.f32.xlu0 %v492
    %v494 = vpop.xlane.xlu0 %493
    %v495 = vrcp.pop %v494
    %v496 = vmul.f32 %v491, %v495
    %v497 = vld [vmem:[%s1] sm:$0xff]
    %499 = vrot.lane.b32.xlu0 %v497, 2
    %v500 = vpop.permute.xlu0 %499
    %v502 = vsub.f32 %v497, %v500
    %v503 = vmul.f32 %v502, 0.5
    %505 = vrot.lane.b32.xlu0 %v503, 126
    %v506 = vpop.permute.xlu0 %505
    %v508 = vadd.f32 %v497, %v506
    %v509 = vmul.f32 %v480, 0.1
    %v510 = vmul.f32 %v480, 0.2
    %v511 = vmax.f32 %v510, -4.1351666
    %v512 = vmin.f32 %v511, 4.1351666
    %v513 = vmul.f32 %v502, %v509
    %515 = vrot.lane.b32.xlu0 %v513, 126
    %v516 = vpop.permute.xlu0 %515
    %v518 = vadd.f32 %v508, %v516
    %v519 = vmul.f32 %v512, 1.442695
    %v520 = vpow.pop %v519
    %522 = vrot.lane.b32.xlu0 %v520, 126
    %v523 = vpop.permute.xlu0 %522
    %v525 = vmul.f32 %v502, %v523
    %v526 = vmul.f32 %v525, 0.5
    %528 = vrot.lane.b32.xlu0 %v526, 126
    %v529 = vpop.permute.xlu0 %528
    %v531 = vsub.f32 %v518, %v529
    %v532 = vmax.f32 %v531, 0.0
    %v533 = vmin.f32 %v532, 16.0
    %v534 = vadd.f32 %v518, %v529
    %v535 = vmax.f32 %v534, 0.0
    %v536 = vmin.f32 %v535, 16.0
    %s537 = sld [smem:[#allocation2]]
    %v538 = vstv %s537
    %v539 = vmul.f32 %v533, %v538
    %s540 = sld [smem:[#allocation2 + $0x1]]
    %v541 = vstv %s540
    %v542 = vmul.f32 %v533, %v541
    %s543 = sld [smem:[#allocation2 + $0x2]]
    %v544 = vstv %s543
    %v545 = vmul.f32 %v536, %v544
    %s546 = sld [smem:[#allocation2 + $0x3]]
    %v547 = vstv %s546
    %v548 = vmul.f32 %v536, %v547
    %550 = vrot.lane.b32.xlu0 %v545, 2
    %v551 = vpop.permute.xlu0 %550
    %554 = vrot.lane.b32.xlu0 %v548, 2
    %v555 = vpop.permute.xlu0 %554
    %558 = vrot.lane.b32.xlu0 %v496, 4
    %v559 = vpop.permute.xlu0 %558
    %vm561 = vcmask 7168
    %v562 = vsel %vm561, %v539, %v542
    %v563 = vsel %vm485, %v562, %v551
    %vm564 = vcmask 23552
    %v565 = vsel %vm564, %v563, %v555
    %vm566 = vcmask 31744
    %v567 = vsel %vm566, %v565, %v559
    %vm568 = vcmask 39936
    %569 = vst.msk [vmem:[#allocation5] sm:$0xff] %vm568, %v567
    // Predicated region
    $region34: #{tracktor_forward.7} parent=1 // pred_check
      _
    $region35: #{tracktor_forward.7} parent=1 // pred_check_branch
      %571 = sbr.rel (0) target = $region37
    $region36: #{tracktor_forward.7} parent=1 // pred_region
      %s573 = ssub.s32 128, 128
      %574 = vsyncadd [#allocation3], %s573
      %s576 = sshll.u32 [#allocation5], 4
      %s577 = int_to_ptr.vmem [resolvable:$true] %s576
      %579 = dma.vmem_to_hbm [thread:$0]  %s577, 128, %s7, [#allocation3]
    $region37: #{tracktor_forward.7} parent=1 // pred_fallthru
      _
    // Predicated region
    $region38: #{tracktor_forward.7} parent=1 // pred_check
      _
    $region39: #{tracktor_forward.7} parent=1 // pred_check_branch
      %581 = sbr.rel (0) target = $region41
    $region40: #{tracktor_forward.7} parent=1 // pred_region
      %582 = dma.done [#allocation3], 128
    $region41: #{tracktor_forward.7} parent=1 // pred_fallthru
      _
    %583 = vsyncpa [#allocation3], 1
    %584 = vsyncpa [#allocation4], 1

// kernel: tracktor_forward.6
$region0: #{tracktor_forward.6}
  #allocation0 [shape = 'u32[]', space=smem, size = 0x4, offset = 0x4, fixed_abs, tag = 'smem constant byte address 0x4 - core index']
  #allocation1 [shape = 'u32[144,128]{1,0:T(1,128)}', space=vmem, size = 0x12000, scoped, tag = 'internal scratch']
  #allocation2 [shape = 's32[1]{0}', space=sflag, size = 0x4, scoped, tag = 'scoped memory for tracktor_forward.6']
  #allocation3 [shape = 'u8[2048]{0}', space=smem, size = 0x800, scoped, tag = 'prefetched SMEM operand 0']
  %s0 = inlined_call_operand.vmem [shape: s32[512], index: 0, kind: input, shape index: {}]
  %s1 = inlined_call_operand.vmem [shape: f32[512], index: 1, kind: input, shape index: {}]
  %s2 = inlined_call_operand.vmem [shape: f32[64,32], index: 2, kind: input, shape index: {}]
  %s3 = inlined_call_operand.vmem [shape: f32[8,16,32], index: 3, kind: output, shape index: {}]
  %s4 = sld [smem:[#allocation0]]
  $region45: #{tracktor_forward.6} parent=0
    _
  %s6 = ssub.s32 1, %s4
  %s7 = scalar_select 0, %s6, %s4
  %s8 = sshll.u32 %s0, 4
  %s9 = int_to_ptr.vmem [resolvable:$true] %s8
  %11 = dma.vmem_to_smem %s9, 64, [#allocation3], [#allocation2]
  %12 = dma.done [#allocation2], 64
  %13 = sfence
  $region1: #{tracktor_forward.6} parent=0
    #allocation4 [shape = 'u8[2048]{0}', space=smem, size = 0x800, scoped, tag = 'input window, operand 1, single buffered']
    #allocation5 [shape = 's32[2]{0}', space=sflag, size = 0x8, scoped, tag = 'scoped memory for tracktor_forward.6']
    %14 = vsyncpa [#allocation5], 0
    loop: start=0, step=1, limit=10
    $region2: #{tracktor_forward.6} parent=1 // loop_pre_header
      _
    $region3: #{tracktor_forward.6} parent=1 // loop_header
      %s16 = sphi 0, %s20
      %p17 = scmp.ge.s32.totalorder %s16, 10
      %s24 = sphi 0, %s24
      %s26 = sphi 0, %s24
      %s27 = sphi 0, %s26
      %s41 = sphi 0, %s27
      %s45 = sphi 0, %s45
      %s47 = sphi 0, %s45
      %s48 = sphi 0, %s47
      %s62 = sphi 0, %s48
      %s68 = sphi 0, %s70
      %s71 = sphi 0, %s68
      %s72 = sphi 0, %s71
      %s88 = sphi 0, %s72
    $region4: #{tracktor_forward.6} parent=1 // loop_header_branch
      %19 = sbr.rel (%p17) target = $region8
    $region5: #{tracktor_forward.6} parent=1 // loop_body
      %s21 = ssub.s32 %s16, 1
      %s22 = ssub.s32 %s16, 2
      %s23 = sadd.s32 %s16, 1
      %s25 = sadd.s32 %s24, 1
      %p28 = scmp.eq.s32.totalorder %s16, 7
      %p29 = scmp.ne.s32.totalorder %s24, %s26
      %p30 = scmp.eq.s32.totalorder %s16, 0
      %p31 = por %p29, %p30
      %p32 = scmp.ne.s32.totalorder %s24, %s26
      %p33 = scmp.eq.s32.totalorder %s21, 7
      %p34 = por %p32, %p33
      %p35 = scmp.ne.s32.totalorder %s26, %s27
      %p36 = scmp.eq.s32.totalorder %s21, 0
      %p37 = por %p35, %p36
      %p38 = scmp.ne.s32.totalorder %s26, %s27
      %p39 = scmp.eq.s32.totalorder %s22, 7
      %p40 = por %p38, %p39
      %p42 = scmp.ne.s32.totalorder %s27, %s41
      %p43 = scmp.eq.s32.totalorder %s22, 0
      %p44 = por %p42, %p43
      %s46 = sadd.s32 %s45, 1
      %p49 = scmp.eq.s32.totalorder %s16, 7
      %p50 = scmp.ne.s32.totalorder %s45, %s47
      %p51 = scmp.eq.s32.totalorder %s16, 0
      %p52 = por %p50, %p51
      %p53 = scmp.ne.s32.totalorder %s45, %s47
      %p54 = scmp.eq.s32.totalorder %s21, 7
      %p55 = por %p53, %p54
      %p56 = scmp.ne.s32.totalorder %s47, %s48
      %p57 = scmp.eq.s32.totalorder %s21, 0
      %p58 = por %p56, %p57
      %p59 = scmp.ne.s32.totalorder %s47, %s48
      %p60 = scmp.eq.s32.totalorder %s22, 7
      %p61 = por %p59, %p60
      %p63 = scmp.ne.s32.totalorder %s48, %s62
      %p64 = scmp.eq.s32.totalorder %s22, 0
      %p65 = por %p63, %p64
      %s66 = ssub.s32 %s16, %s23
      %p67 = scmp.eq.s32.totalorder %s66, 0
      %s69 = sadd.s32 %s68, 1
      %s70 = scalar_select %p67, %s68, %s69
      %p73 = pneg %p67
      %p74 = scmp.eq.s32.totalorder %s16, 7
      %p75 = por %p73, %p74
      %p76 = scmp.ne.s32.totalorder %s68, %s71
      %p77 = scmp.eq.s32.totalorder %s16, 0
      %p78 = por %p76, %p77
      %p79 = scmp.ne.s32.totalorder %s68, %s71
      %p80 = scmp.eq.s32.totalorder %s21, 7
      %p81 = por %p79, %p80
      %p82 = scmp.ne.s32.totalorder %s71, %s72
      %p83 = scmp.eq.s32.totalorder %s21, 0
      %p84 = por %p82, %p83
      %p85 = scmp.ne.s32.totalorder %s71, %s72
      %p86 = scmp.eq.s32.totalorder %s22, 7
      %p87 = por %p85, %p86
      %p89 = scmp.ne.s32.totalorder %s72, %s88
      %p90 = scmp.eq.s32.totalorder %s22, 0
      %p91 = por %p89, %p90
      %p92 = scmp.le.s32.totalorder 1, %s16
      %p93 = scmp.lt.s32.totalorder %s16, 9
      %p94 = pnand %p92, %p93
      %p95 = pneg %p94
      // Predicated region
      $region9: #{tracktor_forward.6} parent=5 // pred_check
        _
      $region10: #{tracktor_forward.6} parent=5 // pred_check_branch
        %97 = sbr.rel (%p94) target = $region12
      $region11: #{tracktor_forward.6} parent=5 // pred_region
        %s98 = ssub.s32 %s16, 1
        // Predicated region
        $region13: #{tracktor_forward.6} parent=11 // pred_check
          %p99 = pneg %p37
        $region14: #{tracktor_forward.6} parent=11 // pred_check_branch
          %101 = sbr.rel (%p99) target = $region16
        $region15: #{tracktor_forward.6} parent=11 // pred_region
          %s103 = ssub.s32 64, 64
          %104 = vsyncadd [#allocation5], %s103
          %s106 = sshll.u32 %s1, 4
          %s107 = int_to_ptr.vmem [resolvable:$true] %s106
          %109 = dma.vmem_to_smem %s107, 64, [#allocation4], [#allocation5]
        $region16: #{tracktor_forward.6} parent=11 // pred_fallthru
          _
        // Predicated region
        $region17: #{tracktor_forward.6} parent=11 // pred_check
          %p110 = pneg %p58
        $region18: #{tracktor_forward.6} parent=11 // pred_check_branch
          %112 = sbr.rel (%p110) target = $region20
        $region19: #{tracktor_forward.6} parent=11 // pred_region
          _
        $region20: #{tracktor_forward.6} parent=11 // pred_fallthru
          _
      $region12: #{tracktor_forward.6} parent=5 // pred_fallthru
        _
      %p113 = scmp.lt.s32.totalorder %s16, 8
      // Predicated region
      $region21: #{tracktor_forward.6} parent=5 // pred_check
        %p114 = pneg %p113
      $region22: #{tracktor_forward.6} parent=5 // pred_check_branch
        %116 = sbr.rel (%p114) target = $region24
      $region23: #{tracktor_forward.6} parent=5 // pred_region
        _
      $region24: #{tracktor_forward.6} parent=5 // pred_fallthru
        _
      %p117 = scmp.le.s32.totalorder 1, %s16
      %p118 = scmp.lt.s32.totalorder %s16, 9
      %p119 = pnand %p117, %p118
      %p120 = pneg %p119
      // Predicated region
      $region25: #{tracktor_forward.6} parent=5 // pred_check
        _
      $region26: #{tracktor_forward.6} parent=5 // pred_check_branch
        %122 = sbr.rel (%p119) target = $region28
      $region27: #{tracktor_forward.6} parent=5 // pred_region
        %s123 = ssub.s32 %s16, 1
        // Predicated region
        $region29: #{tracktor_forward.6} parent=27 // pred_check
          %p124 = pneg %p37
        $region30: #{tracktor_forward.6} parent=27 // pred_check_branch
          %126 = sbr.rel (%p124) target = $region32
        $region31: #{tracktor_forward.6} parent=27 // pred_region
          %127 = dma.done [#allocation5], 64
        $region32: #{tracktor_forward.6} parent=27 // pred_fallthru
          _
        %128 = sfence
        %p129 = pneg %p37
        %p130 = pneg %p34
        %p131 = pneg %p58
        %p132 = pneg %p55
        %p133 = pneg %p84
        %p134 = pneg %p81
        %p135 = scmp.lt.s32.totalorder %s21, 7
        %s136 = scalar_select %p135, %s21, 7
        %s137 = smul.addr %s136, 2
        %s138 = smul.addr %s137, 8
        %s139 = scalar_lea.vmem %s3, %s138
        %p140 = scmp.lt.s32.totalorder %s21, 7
        %s141 = scalar_select %p140, %s21, 7
        %s142 = smul.addr %s141, 2
        %s143 = smul.addr %s142, 8
        %s144 = scalar_lea.vmem %s3, %s143
        %s145 = smul.u32 %s21, 64
        %s146 = sld [smem:[#allocation4 + %s145]]
        %s147 = sld [smem:[#allocation3 + %s145]]
        %s148 = scalar_lea.vmem %s2, %s147
        %v149 = vld [vmem:[%s148] sm:$0x1]
        %v150 = vstv %s146
        %v151 = vmul.f32 %v150, %v149
        %s152 = sadd.s32 %s145, 1
        %s153 = sld [smem:[#allocation4 + %s152]]
        %s154 = sld [smem:[#allocation3 + %s152]]
        %s155 = scalar_lea.vmem %s2, %s154
        %v156 = vld [vmem:[%s155] sm:$0x1]
        %v157 = vstv %s153
        %v158 = vmul.f32 %v157, %v156
        %v159 = vadd.f32 %v151, %v158
        %s160 = sadd.s32 %s145, 2
        %s161 = sld [smem:[#allocation4 + %s160]]
        %s162 = sld [smem:[#allocation3 + %s160]]
        %s163 = scalar_lea.vmem %s2, %s162
        %v164 = vld [vmem:[%s163] sm:$0x1]
        %v165 = vstv %s161
        %v166 = vmul.f32 %v165, %v164
        %v167 = vadd.f32 %v159, %v166
        %s168 = sadd.s32 %s145, 3
        %s169 = sld [smem:[#allocation4 + %s168]]
        %s170 = sld [smem:[#allocation3 + %s168]]
        %s171 = scalar_lea.vmem %s2, %s170
        %v172 = vld [vmem:[%s171] sm:$0x1]
        %v173 = vstv %s169
        %v174 = vmul.f32 %v173, %v172
        %v175 = vadd.f32 %v167, %v174
        %vm176 = vcmask 253952
        %177 = vst.msk [vmem:[%s144] sm:$0x1] %vm176, %v175
        %s178 = sadd.s32 %s145, 4
        %s179 = sld [smem:[#allocation4 + %s178]]
        %s180 = sld [smem:[#allocation3 + %s178]]
        %s181 = scalar_lea.vmem %s2, %s180
        %v182 = vld [vmem:[%s181] sm:$0x1]
        %v183 = vstv %s179
        %v184 = vmul.f32 %v183, %v182
        %s185 = sadd.s32 %s145, 5
        %s186 = sld [smem:[#allocation4 + %s185]]
        %s187 = sld [smem:[#allocation3 + %s185]]
        %s188 = scalar_lea.vmem %s2, %s187
        %v189 = vld [vmem:[%s188] sm:$0x1]
        %v190 = vstv %s186
        %v191 = vmul.f32 %v190, %v189
        %v192 = vadd.f32 %v184, %v191
        %s193 = sadd.s32 %s145, 6
        %s194 = sld [smem:[#allocation4 + %s193]]
        %s195 = sld [smem:[#allocation3 + %s193]]
        %s196 = scalar_lea.vmem %s2, %s195
        %v197 = vld [vmem:[%s196] sm:$0x1]
        %v198 = vstv %s194
        %v199 = vmul.f32 %v198, %v197
        %v200 = vadd.f32 %v192, %v199
        %s201 = sadd.s32 %s145, 7
        %s202 = sld [smem:[#allocation4 + %s201]]
        %s203 = sld [smem:[#allocation3 + %s201]]
        %s204 = scalar_lea.vmem %s2, %s203
        %v205 = vld [vmem:[%s204] sm:$0x1]
        %v206 = vstv %s202
        %v207 = vmul.f32 %v206, %v205
        %v208 = vadd.f32 %v200, %v207
        %209 = vst.msk [vmem:[%s144 + $0x1] sm:$0x1] %vm176, %v208
        %s210 = sadd.s32 %s145, 8
        %s211 = sld [smem:[#allocation4 + %s210]]
        %s212 = sld [smem:[#allocation3 + %s210]]
        %s213 = scalar_lea.vmem %s2, %s212
        %v214 = vld [vmem:[%s213] sm:$0x1]
        %v215 = vstv %s211
        %v216 = vmul.f32 %v215, %v214
        %s217 = sadd.s32 %s145, 9
        %s218 = sld [smem:[#allocation4 + %s217]]
        %s219 = sld [smem:[#allocation3 + %s217]]
        %s220 = scalar_lea.vmem %s2, %s219
        %v221 = vld [vmem:[%s220] sm:$0x1]
        %v222 = vstv %s218
        %v223 = vmul.f32 %v222, %v221
        %v224 = vadd.f32 %v216, %v223
        %s225 = sadd.s32 %s145, 10
        %s226 = sld [smem:[#allocation4 + %s225]]
        %s227 = sld [smem:[#allocation3 + %s225]]
        %s228 = scalar_lea.vmem %s2, %s227
        %v229 = vld [vmem:[%s228] sm:$0x1]
        %v230 = vstv %s226
        %v231 = vmul.f32 %v230, %v229
        %v232 = vadd.f32 %v224, %v231
        %s233 = sadd.s32 %s145, 11
        %s234 = sld [smem:[#allocation4 + %s233]]
        %s235 = sld [smem:[#allocation3 + %s233]]
        %s236 = scalar_lea.vmem %s2, %s235
        %v237 = vld [vmem:[%s236] sm:$0x1]
        %v238 = vstv %s234
        %v239 = vmul.f32 %v238, %v237
        %v240 = vadd.f32 %v232, %v239
        %241 = vst.msk [vmem:[%s144 + $0x2] sm:$0x1] %vm176, %v240
        %s242 = sadd.s32 %s145, 12
        %s243 = sld [smem:[#allocation4 + %s242]]
        %s244 = sld [smem:[#allocation3 + %s242]]
        %s245 = scalar_lea.vmem %s2, %s244
        %v246 = vld [vmem:[%s245] sm:$0x1]
        %v247 = vstv %s243
        %v248 = vmul.f32 %v247, %v246
        %s249 = sadd.s32 %s145, 13
        %s250 = sld [smem:[#allocation4 + %s249]]
        %s251 = sld [smem:[#allocation3 + %s249]]
        %s252 = scalar_lea.vmem %s2, %s251
        %v253 = vld [vmem:[%s252] sm:$0x1]
        %v254 = vstv %s250
        %v255 = vmul.f32 %v254, %v253
        %v256 = vadd.f32 %v248, %v255
        %s257 = sadd.s32 %s145, 14
        %s258 = sld [smem:[#allocation4 + %s257]]
        %s259 = sld [smem:[#allocation3 + %s257]]
        %s260 = scalar_lea.vmem %s2, %s259
        %v261 = vld [vmem:[%s260] sm:$0x1]
        %v262 = vstv %s258
        %v263 = vmul.f32 %v262, %v261
        %v264 = vadd.f32 %v256, %v263
        %s265 = sadd.s32 %s145, 15
        %s266 = sld [smem:[#allocation4 + %s265]]
        %s267 = sld [smem:[#allocation3 + %s265]]
        %s268 = scalar_lea.vmem %s2, %s267
        %v269 = vld [vmem:[%s268] sm:$0x1]
        %v270 = vstv %s266
        %v271 = vmul.f32 %v270, %v269
        %v272 = vadd.f32 %v264, %v271
        %273 = vst.msk [vmem:[%s144 + $0x3] sm:$0x1] %vm176, %v272
        %s274 = sadd.s32 %s145, 16
        %s275 = sld [smem:[#allocation4 + %s274]]
        %s276 = sld [smem:[#allocation3 + %s274]]
        %s277 = scalar_lea.vmem %s2, %s276
        %v278 = vld [vmem:[%s277] sm:$0x1]
        %v279 = vstv %s275
        %v280 = vmul.f32 %v279, %v278
        %s281 = sadd.s32 %s145, 17
        %s282 = sld [smem:[#allocation4 + %s281]]
        %s283 = sld [smem:[#allocation3 + %s281]]
        %s284 = scalar_lea.vmem %s2, %s283
        %v285 = vld [vmem:[%s284] sm:$0x1]
        %v286 = vstv %s282
        %v287 = vmul.f32 %v286, %v285
        %v288 = vadd.f32 %v280, %v287
        %s289 = sadd.s32 %s145, 18
        %s290 = sld [smem:[#allocation4 + %s289]]
        %s291 = sld [smem:[#allocation3 + %s289]]
        %s292 = scalar_lea.vmem %s2, %s291
        %v293 = vld [vmem:[%s292] sm:$0x1]
        %v294 = vstv %s290
        %v295 = vmul.f32 %v294, %v293
        %v296 = vadd.f32 %v288, %v295
        %s297 = sadd.s32 %s145, 19
        %s298 = sld [smem:[#allocation4 + %s297]]
        %s299 = sld [smem:[#allocation3 + %s297]]
        %s300 = scalar_lea.vmem %s2, %s299
        %v301 = vld [vmem:[%s300] sm:$0x1]
        %v302 = vstv %s298
        %v303 = vmul.f32 %v302, %v301
        %v304 = vadd.f32 %v296, %v303
        %305 = vst.msk [vmem:[%s144 + $0x4] sm:$0x1] %vm176, %v304
        %s306 = sadd.s32 %s145, 20
        %s307 = sld [smem:[#allocation4 + %s306]]
        %s308 = sld [smem:[#allocation3 + %s306]]
        %s309 = scalar_lea.vmem %s2, %s308
        %v310 = vld [vmem:[%s309] sm:$0x1]
        %v311 = vstv %s307
        %v312 = vmul.f32 %v311, %v310
        %s313 = sadd.s32 %s145, 21
        %s314 = sld [smem:[#allocation4 + %s313]]
        %s315 = sld [smem:[#allocation3 + %s313]]
        %s316 = scalar_lea.vmem %s2, %s315
        %v317 = vld [vmem:[%s316] sm:$0x1]
        %v318 = vstv %s314
        %v319 = vmul.f32 %v318, %v317
        %v320 = vadd.f32 %v312, %v319
        %s321 = sadd.s32 %s145, 22
        %s322 = sld [smem:[#allocation4 + %s321]]
        %s323 = sld [smem:[#allocation3 + %s321]]
        %s324 = scalar_lea.vmem %s2, %s323
        %v325 = vld [vmem:[%s324] sm:$0x1]
        %v326 = vstv %s322
        %v327 = vmul.f32 %v326, %v325
        %v328 = vadd.f32 %v320, %v327
        %s329 = sadd.s32 %s145, 23
        %s330 = sld [smem:[#allocation4 + %s329]]
        %s331 = sld [smem:[#allocation3 + %s329]]
        %s332 = scalar_lea.vmem %s2, %s331
        %v333 = vld [vmem:[%s332] sm:$0x1]
        %v334 = vstv %s330
        %v335 = vmul.f32 %v334, %v333
        %v336 = vadd.f32 %v328, %v335
        %337 = vst.msk [vmem:[%s144 + $0x5] sm:$0x1] %vm176, %v336
        %s338 = sadd.s32 %s145, 24
        %s339 = sld [smem:[#allocation4 + %s338]]
        %s340 = sld [smem:[#allocation3 + %s338]]
        %s341 = scalar_lea.vmem %s2, %s340
        %v342 = vld [vmem:[%s341] sm:$0x1]
        %v343 = vstv %s339
        %v344 = vmul.f32 %v343, %v342
        %s345 = sadd.s32 %s145, 25
        %s346 = sld [smem:[#allocation4 + %s345]]
        %s347 = sld [smem:[#allocation3 + %s345]]
        %s348 = scalar_lea.vmem %s2, %s347
        %v349 = vld [vmem:[%s348] sm:$0x1]
        %v350 = vstv %s346
        %v351 = vmul.f32 %v350, %v349
        %v352 = vadd.f32 %v344, %v351
        %s353 = sadd.s32 %s145, 26
        %s354 = sld [smem:[#allocation4 + %s353]]
        %s355 = sld [smem:[#allocation3 + %s353]]
        %s356 = scalar_lea.vmem %s2, %s355
        %v357 = vld [vmem:[%s356] sm:$0x1]
        %v358 = vstv %s354
        %v359 = vmul.f32 %v358, %v357
        %v360 = vadd.f32 %v352, %v359
        %s361 = sadd.s32 %s145, 27
        %s362 = sld [smem:[#allocation4 + %s361]]
        %s363 = sld [smem:[#allocation3 + %s361]]
        %s364 = scalar_lea.vmem %s2, %s363
        %v365 = vld [vmem:[%s364] sm:$0x1]
        %v366 = vstv %s362
        %v367 = vmul.f32 %v366, %v365
        %v368 = vadd.f32 %v360, %v367
        %369 = vst.msk [vmem:[%s144 + $0x6] sm:$0x1] %vm176, %v368
        %s370 = sadd.s32 %s145, 28
        %s371 = sld [smem:[#allocation4 + %s370]]
        %s372 = sld [smem:[#allocation3 + %s370]]
        %s373 = scalar_lea.vmem %s2, %s372
        %v374 = vld [vmem:[%s373] sm:$0x1]
        %v375 = vstv %s371
        %v376 = vmul.f32 %v375, %v374
        %s377 = sadd.s32 %s145, 29
        %s378 = sld [smem:[#allocation4 + %s377]]
        %s379 = sld [smem:[#allocation3 + %s377]]
        %s380 = scalar_lea.vmem %s2, %s379
        %v381 = vld [vmem:[%s380] sm:$0x1]
        %v382 = vstv %s378
        %v383 = vmul.f32 %v382, %v381
        %v384 = vadd.f32 %v376, %v383
        %s385 = sadd.s32 %s145, 30
        %s386 = sld [smem:[#allocation4 + %s385]]
        %s387 = sld [smem:[#allocation3 + %s385]]
        %s388 = scalar_lea.vmem %s2, %s387
        %v389 = vld [vmem:[%s388] sm:$0x1]
        %v390 = vstv %s386
        %v391 = vmul.f32 %v390, %v389
        %v392 = vadd.f32 %v384, %v391
        %s393 = sadd.s32 %s145, 31
        %s394 = sld [smem:[#allocation4 + %s393]]
        %s395 = sld [smem:[#allocation3 + %s393]]
        %s396 = scalar_lea.vmem %s2, %s395
        %v397 = vld [vmem:[%s396] sm:$0x1]
        %v398 = vstv %s394
        %v399 = vmul.f32 %v398, %v397
        %v400 = vadd.f32 %v392, %v399
        %401 = vst.msk [vmem:[%s144 + $0x7] sm:$0x1] %vm176, %v400
        %s402 = sadd.s32 %s145, 32
        %s403 = sld [smem:[#allocation4 + %s402]]
        %s404 = sld [smem:[#allocation3 + %s402]]
        %s405 = scalar_lea.vmem %s2, %s404
        %v406 = vld [vmem:[%s405] sm:$0x1]
        %v407 = vstv %s403
        %v408 = vmul.f32 %v407, %v406
        %s409 = sadd.s32 %s145, 33
        %s410 = sld [smem:[#allocation4 + %s409]]
        %s411 = sld [smem:[#allocation3 + %s409]]
        %s412 = scalar_lea.vmem %s2, %s411
        %v413 = vld [vmem:[%s412] sm:$0x1]
        %v414 = vstv %s410
        %v415 = vmul.f32 %v414, %v413
        %v416 = vadd.f32 %v408, %v415
        %s417 = sadd.s32 %s145, 34
        %s418 = sld [smem:[#allocation4 + %s417]]
        %s419 = sld [smem:[#allocation3 + %s417]]
        %s420 = scalar_lea.vmem %s2, %s419
        %v421 = vld [vmem:[%s420] sm:$0x1]
        %v422 = vstv %s418
        %v423 = vmul.f32 %v422, %v421
        %v424 = vadd.f32 %v416, %v423
        %s425 = sadd.s32 %s145, 35
        %s426 = sld [smem:[#allocation4 + %s425]]
        %s427 = sld [smem:[#allocation3 + %s425]]
        %s428 = scalar_lea.vmem %s2, %s427
        %v429 = vld [vmem:[%s428] sm:$0x1]
        %v430 = vstv %s426
        %v431 = vmul.f32 %v430, %v429
        %v432 = vadd.f32 %v424, %v431
        %433 = vst.msk [vmem:[%s144 + $0x8] sm:$0x1] %vm176, %v432
        %s434 = sadd.s32 %s145, 36
        %s435 = sld [smem:[#allocation4 + %s434]]
        %s436 = sld [smem:[#allocation3 + %s434]]
        %s437 = scalar_lea.vmem %s2, %s436
        %v438 = vld [vmem:[%s437] sm:$0x1]
        %v439 = vstv %s435
        %v440 = vmul.f32 %v439, %v438
        %s441 = sadd.s32 %s145, 37
        %s442 = sld [smem:[#allocation4 + %s441]]
        %s443 = sld [smem:[#allocation3 + %s441]]
        %s444 = scalar_lea.vmem %s2, %s443
        %v445 = vld [vmem:[%s444] sm:$0x1]
        %v446 = vstv %s442
        %v447 = vmul.f32 %v446, %v445
        %v448 = vadd.f32 %v440, %v447
        %s449 = sadd.s32 %s145, 38
        %s450 = sld [smem:[#allocation4 + %s449]]
        %s451 = sld [smem:[#allocation3 + %s449]]
        %s452 = scalar_lea.vmem %s2, %s451
        %v453 = vld [vmem:[%s452] sm:$0x1]
        %v454 = vstv %s450
        %v455 = vmul.f32 %v454, %v453
        %v456 = vadd.f32 %v448, %v455
        %s457 = sadd.s32 %s145, 39
        %s458 = sld [smem:[#allocation4 + %s457]]
        %s459 = sld [smem:[#allocation3 + %s457]]
        %s460 = scalar_lea.vmem %s2, %s459
        %v461 = vld [vmem:[%s460] sm:$0x1]
        %v462 = vstv %s458
        %v463 = vmul.f32 %v462, %v461
        %v464 = vadd.f32 %v456, %v463
        %465 = vst.msk [vmem:[%s144 + $0x9] sm:$0x1] %vm176, %v464
        %s466 = sadd.s32 %s145, 40
        %s467 = sld [smem:[#allocation4 + %s466]]
        %s468 = sld [smem:[#allocation3 + %s466]]
        %s469 = scalar_lea.vmem %s2, %s468
        %v470 = vld [vmem:[%s469] sm:$0x1]
        %v471 = vstv %s467
        %v472 = vmul.f32 %v471, %v470
        %s473 = sadd.s32 %s145, 41
        %s474 = sld [smem:[#allocation4 + %s473]]
        %s475 = sld [smem:[#allocation3 + %s473]]
        %s476 = scalar_lea.vmem %s2, %s475
        %v477 = vld [vmem:[%s476] sm:$0x1]
        %v478 = vstv %s474
        %v479 = vmul.f32 %v478, %v477
        %v480 = vadd.f32 %v472, %v479
        %s481 = sadd.s32 %s145, 42
        %s482 = sld [smem:[#allocation4 + %s481]]
        %s483 = sld [smem:[#allocation3 + %s481]]
        %s484 = scalar_lea.vmem %s2, %s483
        %v485 = vld [vmem:[%s484] sm:$0x1]
        %v486 = vstv %s482
        %v487 = vmul.f32 %v486, %v485
        %v488 = vadd.f32 %v480, %v487
        %s489 = sadd.s32 %s145, 43
        %s490 = sld [smem:[#allocation4 + %s489]]
        %s491 = sld [smem:[#allocation3 + %s489]]
        %s492 = scalar_lea.vmem %s2, %s491
        %v493 = vld [vmem:[%s492] sm:$0x1]
        %v494 = vstv %s490
        %v495 = vmul.f32 %v494, %v493
        %v496 = vadd.f32 %v488, %v495
        %497 = vst.msk [vmem:[%s144 + $0xa] sm:$0x1] %vm176, %v496
        %s498 = sadd.s32 %s145, 44
        %s499 = sld [smem:[#allocation4 + %s498]]
        %s500 = sld [smem:[#allocation3 + %s498]]
        %s501 = scalar_lea.vmem %s2, %s500
        %v502 = vld [vmem:[%s501] sm:$0x1]
        %v503 = vstv %s499
        %v504 = vmul.f32 %v503, %v502
        %s505 = sadd.s32 %s145, 45
        %s506 = sld [smem:[#allocation4 + %s505]]
        %s507 = sld [smem:[#allocation3 + %s505]]
        %s508 = scalar_lea.vmem %s2, %s507
        %v509 = vld [vmem:[%s508] sm:$0x1]
        %v510 = vstv %s506
        %v511 = vmul.f32 %v510, %v509
        %v512 = vadd.f32 %v504, %v511
        %s513 = sadd.s32 %s145, 46
        %s514 = sld [smem:[#allocation4 + %s513]]
        %s515 = sld [smem:[#allocation3 + %s513]]
        %s516 = scalar_lea.vmem %s2, %s515
        %v517 = vld [vmem:[%s516] sm:$0x1]
        %v518 = vstv %s514
        %v519 = vmul.f32 %v518, %v517
        %v520 = vadd.f32 %v512, %v519
        %s521 = sadd.s32 %s145, 47
        %s522 = sld [smem:[#allocation4 + %s521]]
        %s523 = sld [smem:[#allocation3 + %s521]]
        %s524 = scalar_lea.vmem %s2, %s523
        %v525 = vld [vmem:[%s524] sm:$0x1]
        %v526 = vstv %s522
        %v527 = vmul.f32 %v526, %v525
        %v528 = vadd.f32 %v520, %v527
        %529 = vst.msk [vmem:[%s144 + $0xb] sm:$0x1] %vm176, %v528
        %s530 = sadd.s32 %s145, 48
        %s531 = sld [smem:[#allocation4 + %s530]]
        %s532 = sld [smem:[#allocation3 + %s530]]
        %s533 = scalar_lea.vmem %s2, %s532
        %v534 = vld [vmem:[%s533] sm:$0x1]
        %v535 = vstv %s531
        %v536 = vmul.f32 %v535, %v534
        %s537 = sadd.s32 %s145, 49
        %s538 = sld [smem:[#allocation4 + %s537]]
        %s539 = sld [smem:[#allocation3 + %s537]]
        %s540 = scalar_lea.vmem %s2, %s539
        %v541 = vld [vmem:[%s540] sm:$0x1]
        %v542 = vstv %s538
        %v543 = vmul.f32 %v542, %v541
        %v544 = vadd.f32 %v536, %v543
        %s545 = sadd.s32 %s145, 50
        %s546 = sld [smem:[#allocation4 + %s545]]
        %s547 = sld [smem:[#allocation3 + %s545]]
        %s548 = scalar_lea.vmem %s2, %s547
        %v549 = vld [vmem:[%s548] sm:$0x1]
        %v550 = vstv %s546
        %v551 = vmul.f32 %v550, %v549
        %v552 = vadd.f32 %v544, %v551
        %s553 = sadd.s32 %s145, 51
        %s554 = sld [smem:[#allocation4 + %s553]]
        %s555 = sld [smem:[#allocation3 + %s553]]
        %s556 = scalar_lea.vmem %s2, %s555
        %v557 = vld [vmem:[%s556] sm:$0x1]
        %v558 = vstv %s554
        %v559 = vmul.f32 %v558, %v557
        %v560 = vadd.f32 %v552, %v559
        %561 = vst.msk [vmem:[%s144 + $0xc] sm:$0x1] %vm176, %v560
        %s562 = sadd.s32 %s145, 52
        %s563 = sld [smem:[#allocation4 + %s562]]
        %s564 = sld [smem:[#allocation3 + %s562]]
        %s565 = scalar_lea.vmem %s2, %s564
        %v566 = vld [vmem:[%s565] sm:$0x1]
        %v567 = vstv %s563
        %v568 = vmul.f32 %v567, %v566
        %s569 = sadd.s32 %s145, 53
        %s570 = sld [smem:[#allocation4 + %s569]]
        %s571 = sld [smem:[#allocation3 + %s569]]
        %s572 = scalar_lea.vmem %s2, %s571
        %v573 = vld [vmem:[%s572] sm:$0x1]
        %v574 = vstv %s570
        %v575 = vmul.f32 %v574, %v573
        %v576 = vadd.f32 %v568, %v575
        %s577 = sadd.s32 %s145, 54
        %s578 = sld [smem:[#allocation4 + %s577]]
        %s579 = sld [smem:[#allocation3 + %s577]]
        %s580 = scalar_lea.vmem %s2, %s579
        %v581 = vld [vmem:[%s580] sm:$0x1]
        %v582 = vstv %s578
        %v583 = vmul.f32 %v582, %v581
        %v584 = vadd.f32 %v576, %v583
        %s585 = sadd.s32 %s145, 55
        %s586 = sld [smem:[#allocation4 + %s585]]
        %s587 = sld [smem:[#allocation3 + %s585]]
        %s588 = scalar_lea.vmem %s2, %s587
        %v589 = vld [vmem:[%s588] sm:$0x1]
        %v590 = vstv %s586
        %v591 = vmul.f32 %v590, %v589
        %v592 = vadd.f32 %v584, %v591
        %593 = vst.msk [vmem:[%s144 + $0xd] sm:$0x1] %vm176, %v592
        %s594 = sadd.s32 %s145, 56
        %s595 = sld [smem:[#allocation4 + %s594]]
        %s596 = sld [smem:[#allocation3 + %s594]]
        %s597 = scalar_lea.vmem %s2, %s596
        %v598 = vld [vmem:[%s597] sm:$0x1]
        %v599 = vstv %s595
        %v600 = vmul.f32 %v599, %v598
        %s601 = sadd.s32 %s145, 57
        %s602 = sld [smem:[#allocation4 + %s601]]
        %s603 = sld [smem:[#allocation3 + %s601]]
        %s604 = scalar_lea.vmem %s2, %s603
        %v605 = vld [vmem:[%s604] sm:$0x1]
        %v606 = vstv %s602
        %v607 = vmul.f32 %v606, %v605
        %v608 = vadd.f32 %v600, %v607
        %s609 = sadd.s32 %s145, 58
        %s610 = sld [smem:[#allocation4 + %s609]]
        %s611 = sld [smem:[#allocation3 + %s609]]
        %s612 = scalar_lea.vmem %s2, %s611
        %v613 = vld [vmem:[%s612] sm:$0x1]
        %v614 = vstv %s610
        %v615 = vmul.f32 %v614, %v613
        %v616 = vadd.f32 %v608, %v615
        %s617 = sadd.s32 %s145, 59
        %s618 = sld [smem:[#allocation4 + %s617]]
        %s619 = sld [smem:[#allocation3 + %s617]]
        %s620 = scalar_lea.vmem %s2, %s619
        %v621 = vld [vmem:[%s620] sm:$0x1]
        %v622 = vstv %s618
        %v623 = vmul.f32 %v622, %v621
        %v624 = vadd.f32 %v616, %v623
        %625 = vst.msk [vmem:[%s144 + $0xe] sm:$0x1] %vm176, %v624
        %s626 = sadd.s32 %s145, 60
        %s627 = sld [smem:[#allocation4 + %s626]]
        %s628 = sld [smem:[#allocation3 + %s626]]
        %s629 = scalar_lea.vmem %s2, %s628
        %v630 = vld [vmem:[%s629] sm:$0x1]
        %v631 = vstv %s627
        %v632 = vmul.f32 %v631, %v630
        %s633 = sadd.s32 %s145, 61
        %s634 = sld [smem:[#allocation4 + %s633]]
        %s635 = sld [smem:[#allocation3 + %s633]]
        %s636 = scalar_lea.vmem %s2, %s635
        %v637 = vld [vmem:[%s636] sm:$0x1]
        %v638 = vstv %s634
        %v639 = vmul.f32 %v638, %v637
        %v640 = vadd.f32 %v632, %v639
        %s641 = sadd.s32 %s145, 62
        %s642 = sld [smem:[#allocation4 + %s641]]
        %s643 = sld [smem:[#allocation3 + %s641]]
        %s644 = scalar_lea.vmem %s2, %s643
        %v645 = vld [vmem:[%s644] sm:$0x1]
        %v646 = vstv %s642
        %v647 = vmul.f32 %v646, %v645
        %v648 = vadd.f32 %v640, %v647
        %s649 = sadd.s32 %s145, 63
        %s650 = sld [smem:[#allocation4 + %s649]]
        %s651 = sld [smem:[#allocation3 + %s649]]
        %s652 = scalar_lea.vmem %s2, %s651
        %v653 = vld [vmem:[%s652] sm:$0x1]
        %v654 = vstv %s650
        %v655 = vmul.f32 %v654, %v653
        %v656 = vadd.f32 %v648, %v655
        %657 = vst.msk [vmem:[%s144 + $0xf] sm:$0x1] %vm176, %v656
        %p658 = scmp.lt.s32.totalorder %s21, 7
        %s659 = scalar_select %p658, %s21, 7
        %s660 = smul.addr %s659, 2
        %s661 = smul.addr %s660, 8
        %s662 = scalar_lea.vmem %s3, %s661
        // Predicated region
        $region33: #{tracktor_forward.6} parent=27 // pred_check
          %p663 = pneg %p81
        $region34: #{tracktor_forward.6} parent=27 // pred_check_branch
          %665 = sbr.rel (%p663) target = $region36
        $region35: #{tracktor_forward.6} parent=27 // pred_region
          _
        $region36: #{tracktor_forward.6} parent=27 // pred_fallthru
          _
      $region28: #{tracktor_forward.6} parent=5 // pred_fallthru
        _
      %p666 = scmp.le.s32.totalorder 2, %s16
      // Predicated region
      $region37: #{tracktor_forward.6} parent=5 // pred_check
        %p667 = pneg %p666
      $region38: #{tracktor_forward.6} parent=5 // pred_check_branch
        %669 = sbr.rel (%p667) target = $region40
      $region39: #{tracktor_forward.6} parent=5 // pred_region
        %s670 = ssub.s32 %s16, 2
        // Predicated region
        $region41: #{tracktor_forward.6} parent=39 // pred_check
          %p671 = pneg %p87
        $region42: #{tracktor_forward.6} parent=39 // pred_check_branch
          %673 = sbr.rel (%p671) target = $region44
        $region43: #{tracktor_forward.6} parent=39 // pred_region
          %p674 = scmp.lt.s32.totalorder %s22, 7
          %s675 = scalar_select %p674, %s22, 7
          %s676 = smul.addr %s675, 2
          %s677 = smul.addr %s676, 8
          %s678 = scalar_lea.vmem %s3, %s677
        $region44: #{tracktor_forward.6} parent=39 // pred_fallthru
          _
      $region40: #{tracktor_forward.6} parent=5 // pred_fallthru
        _
    $region6: #{tracktor_forward.6} parent=1 // loop_footer
      %s20 = sadd.s32 1, %s16
    $region7: #{tracktor_forward.6} parent=1 // loop_footer_branch
      %15 = sbr.rel target = $region3
    $region8: #{tracktor_forward.6} parent=1 // loop_exit
      _
    %679 = vsyncpa [#allocation5], 1
    %s680 = scalar_lea.sflag [#allocation5], 1
    %681 = vsyncpa %s680, 1

</llo_original>
